<compile_context>
chip_gen: v7x
topology: tpu7x:2x2x1
jax: 0.10.0
libtpu: 0.0.40
codegen_flags: <defaults>
</compile_context>

<pallas_src>
import numpy as np
import jax
import jax.numpy as jnp
from jax.experimental import pallas as pl
from jax.experimental.pallas import tpu as pltpu


# ----------------------------------------------------------------------------
# circular pad + bilinear width resize (align_corners=False) + crop,
# folded into a (W, out_w) matrix (PyTorch F.interpolate semantics).
# ----------------------------------------------------------------------------
def build_interp_matrix(W, out_w):
    factor = out_w // W
    assert factor >= 1
    Win = W + 2                       # after cat([x[..., -1:], x, x[..., :1]])
    Wtot = out_w + 2 * factor
    scale = Win / Wtot
    M = np.zeros((Win, Wtot), np.float32)
    for j in range(Wtot):
        src = scale * (j + 0.5) - 0.5
        if src < 0.0:
            src = 0.0
        x0 = min(int(np.floor(src)), Win - 1)
        lam = src - x0
        x1 = min(x0 + 1, Win - 1)
        M[x0, j] += 1.0 - lam
        M[x1, j] += lam
    M = M[:, factor:Wtot - factor]    # crop  x[..., factor:-factor]
    # fold circular pad: padded col 0 <- W-1, cols 1..W <- 0..W-1, col W+1 <- 0
    Mc = np.zeros((W, out_w), np.float32)
    Mc[W - 1, :] += M[0, :]
    Mc[:, :] += M[1:W + 1, :]
    Mc[0, :] += M[W + 1, :]
    return jnp.asarray(Mc)


# ----------------------------------------------------------------------------
# Fused kernel: 4x (conv3x3 stride(2,1) pad1 + folded BN + ReLU) + resample
# ----------------------------------------------------------------------------
def make_kernel(n_layers, cdt):
    def conv_bn_relu(xp, w_ref, b_ref):
        """xp: (Hin+2, W+2, C) f32 padded value.  w_ref: (9, C, Cout) bf16,
        b_ref: (1, Cout) f32.  Returns (Hout, W, Cout) f32."""
        Hp, Wp, C = xp.shape
        Hin, W = Hp - 2, Wp - 2
        Hout = Hin // 2
        cout = w_ref.shape[-1]

        # Even/odd padded-row split via a leading-dim reshape: the stride-2 conv
        # then needs only unit-stride slices (no strided value slicing).
        xp4 = xp.reshape(Hp // 2, 2, Wp, C)
        rows_eo = (xp4[:, 0], xp4[:, 1])          # padded rows 2i / 2i+1

        # 9 accumulating MXU matmuls; taps are register/VMEM *values*
        # (no im2col scratch, no masked channel-offset stores).
        acc = None
        for kh in range(3):
            par, start = kh & 1, kh // 2          # kh = 2*start + par
            base = rows_eo[par][start:start + Hout]          # (Hout, Wp, C)
            for kw in range(3):
                lhs = base[:, kw:kw + W, :].reshape(Hout * W, C).astype(cdt)
                d = jnp.dot(lhs, w_ref[kh * 3 + kw],
                            preferred_element_type=jnp.float32)
                acc = d if acc is None else acc + d
        acc = jnp.maximum(acc + b_ref[...], 0.0)  # folded BN bias + ReLU in f32
        return acc.reshape(Hout, W, cout)

    def kernel(*refs):
        x_ref = refs[0]
        wb = refs[1:1 + 2 * n_layers]
        m_ref = refs[1 + 2 * n_layers]
        o_ref = refs[2 + 2 * n_layers]
        pads = refs[3 + 2 * n_layers:]

        # layer 0 reads the host-padded input block directly (no in-kernel pad)
        a = conv_bn_relu(x_ref[0], wb[0], wb[1])

        for l in range(1, n_layers):
            pad_ref = pads[l - 1]
            Hp, Wp, C = pad_ref.shape
            Hin, W = Hp - 2, Wp - 2
            # Re-zero only the 1-wide borders each step (cheap, megacore-safe);
            # the interior is fully overwritten below, so no full clear needed.
            zr = jnp.zeros((1, Wp, C), pad_ref.dtype)
            zc = jnp.zeros((Hp, 1, C), pad_ref.dtype)
            pad_ref[0:1, :, :] = zr
            pad_ref[Hp - 1:Hp, :, :] = zr
            pad_ref[:, 0:1, :] = zc
            pad_ref[:, Wp - 1:Wp, :] = zc
            pad_ref[1:Hin + 1, 1:W + 1, :] = a
            a = conv_bn_relu(pad_ref[...], wb[2 * l], wb[2 * l + 1])

        # circular pad + bilinear width resize + crop == ONE matmul against M,
        # written straight into the NCHW output block (lane dim = out_w).
        Hf, W, Cf = a.shape
        rows = [a[h].T for h in range(Hf)]                     # (Cf, W) each
        lhs = rows[0] if Hf == 1 else jnp.concatenate(rows, axis=0)
        res = jnp.dot(lhs.astype(cdt), m_ref[...],
                      preferred_element_type=jnp.float32)      # (Hf*Cf, out_w)
        for h in range(Hf):
            o_ref[0, :, h, :] = res[h * Cf:(h + 1) * Cf, :].astype(o_ref.dtype)

    return kernel


# ----------------------------------------------------------------------------
# Full module wrapper: one pallas_call, grid over batch
# ----------------------------------------------------------------------------
def global_height_conv(x_nchw, params, out_w, cdt=jnp.bfloat16):
    """x_nchw: (B, Cin, H, W) f32; params: list of (w(3,3,ci,co), b(co,)) with
    BatchNorm already folded into the conv weight / bias."""
    B, Cin, H, W = map(int, x_nchw.shape)
    n_layers = len(params)
    assert H % (1 << n_layers) == 0, "height must stay even through every layer"
    assert W % 8 == 0, "width must be a multiple of 8 (free sublane merges)"

    # Only host-side prep on the raw input: NCHW -> NHWC and a single zero pad
    # of the spatial borders, so layer 0 needs no in-kernel padding at all.
    x_p = jnp.pad(jnp.transpose(x_nchw, (0, 2, 3, 1)),
                  ((0, 0), (1, 1), (1, 1), (0, 0))).astype(jnp.float32)

    flat_args = [x_p]
    in_specs = [pl.BlockSpec((1, H + 2, W + 2, Cin), lambda n: (n, 0, 0, 0))]
    scratch, scratch_bytes = [], 0
    h = H
    for li, (w4, b) in enumerate(params):
        ci, co = int(w4.shape[2]), int(w4.shape[3])
        flat_args.append(jnp.asarray(w4).reshape(9, ci, co).astype(cdt))
        flat_args.append(jnp.asarray(b).reshape(1, co).astype(jnp.float32))
        in_specs.append(pl.BlockSpec((9, ci, co), lambda n: (0, 0, 0)))
        in_specs.append(pl.BlockSpec((1, co), lambda n: (0, 0)))
        if li > 0:                      # layers >= 1 pad their input in VMEM
            scratch.append(pltpu.VMEM((h + 2, W + 2, ci), jnp.float32))
            scratch_bytes += (h + 2) * (W + 2) * ci * 4
        h = h // 2
    Hf, Cf = h, int(params[-1][0].shape[3])

    M = build_interp_matrix(W, out_w).astype(cdt)
    flat_args.append(M)
    in_specs.append(pl.BlockSpec((W, out_w), lambda n: (0, 0)))

    # VMEM budget from the actual buffers (double-buffered pipeline blocks +
    # VMEM-resident weights/M + pad scratch) with headroom for in-kernel values.
    blk_bytes = (H + 2) * (W + 2) * Cin * 4 + Cf * Hf * out_w * 4
    arg_bytes = sum(int(np.prod(a.shape)) * a.dtype.itemsize for a in flat_args[1:])
    est = 2 * (blk_bytes + arg_bytes) + scratch_bytes
    vmem_limit = int(min(64 << 20, max(8 << 20, 4 * est)))

    return pl.pallas_call(
        make_kernel(n_layers, cdt),
        out_shape=jax.ShapeDtypeStruct((B, Cf, Hf, out_w), jnp.float32),
        grid=(B,),
        in_specs=in_specs,
        out_specs=pl.BlockSpec((1, Cf, Hf, out_w), lambda n: (n, 0, 0, 0)),
        scratch_shapes=scratch,
        compiler_params=pltpu.CompilerParams(
            dimension_semantics=("parallel",),   # B >= 2 keeps both v7x TCs busy
            vmem_limit_bytes=vmem_limit),
    )(*flat_args)


# ----------------------------------------------------------------------------
# Deterministic synthetic parameters (Conv2d weight+bias, BN folded)
# ----------------------------------------------------------------------------
def init_params(key, in_c, out_c):
    chans = [(in_c, in_c // 2), (in_c // 2, in_c // 2),
             (in_c // 2, in_c // 4), (in_c // 4, out_c)]
    params = []
    for ci, co in chans:
        key, k0, k1, k2, k3, k4, k5 = jax.random.split(key, 7)
        w = jax.random.normal(k0, (3, 3, ci, co), jnp.float32) / np.sqrt(9.0 * ci)
        b = jax.random.normal(k1, (co,), jnp.float32) * 0.1
        gamma = jax.random.uniform(k2, (co,), jnp.float32, 0.5, 1.5)
        beta = jax.random.normal(k3, (co,), jnp.float32) * 0.1
        mean = jax.random.normal(k4, (co,), jnp.float32) * 0.1
        var = jax.random.uniform(k5, (co,), jnp.float32, 0.5, 1.5)
        scale = gamma / jnp.sqrt(var + 1e-5)
        params.append((w * scale, (b - mean) * scale + beta))
    return params


# ----------------------------------------------------------------------------
# Pure-JAX reference (same folded params, same bf16 rounding points)
# ----------------------------------------------------------------------------
def reference(x_nchw, params, out_w, cdt):
    q = lambda t: t.astype(cdt).astype(jnp.float32)   # kernel's MXU-input rounding
    x = q(jnp.transpose(x_nchw, (0, 2, 3, 1)))
    for w4, b in params:
        y = jax.lax.conv_general_dilated(
            x, q(w4), window_strides=(2, 1), padding=((1, 1), (1, 1)),
            dimension_numbers=('NHWC', 'HWIO', 'NHWC'))
        x = q(jnp.maximum(y + b, 0.0))
    W = x.shape[2]
    M = build_interp_matrix(W, out_w)
    return jnp.einsum('bhwc,wj->bchj', x, q(M))


if __name__ == "__main__":
    key = jax.random.PRNGKey(0)
    kx, kp = jax.random.split(key)
    B, in_c, H, W = 2, 16, 16, 16
    out_c, out_w = 8, 128      # out_w kept a multiple of 128 -> lane-dense stores

    x = jax.random.normal(kx, (B, in_c, H, W), jnp.float32)
    params = init_params(kp, in_c, out_c)

    out = jax.block_until_ready(global_height_conv(x, params, out_w))
    assert out.shape == (B, out_c, 1, out_w), out.shape

    ref = jax.block_until_ready(reference(x, params, out_w, jnp.bfloat16))
    np.testing.assert_allclose(np.asarray(out), np.asarray(ref),
                               rtol=2e-2, atol=2e-3)
    print("KERNEL_OK")
</pallas_src>

<mosaic_0001>
module attributes {stable_mosaic.version = 11 : i64} {
  func.func @kernel(%arg0: i32, %arg1: memref<1x18x18x16xf32, #tpu.memory_space<vmem>>, %arg2: memref<9x16x8xbf16, #tpu.memory_space<vmem>>, %arg3: memref<1x8xf32, #tpu.memory_space<vmem>>, %arg4: memref<9x8x8xbf16, #tpu.memory_space<vmem>>, %arg5: memref<1x8xf32, #tpu.memory_space<vmem>>, %arg6: memref<9x8x4xbf16, #tpu.memory_space<vmem>>, %arg7: memref<1x4xf32, #tpu.memory_space<vmem>>, %arg8: memref<9x4x8xbf16, #tpu.memory_space<vmem>>, %arg9: memref<1x8xf32, #tpu.memory_space<vmem>>, %arg10: memref<16x128xbf16, #tpu.memory_space<vmem>>, %arg11: memref<1x8x1x128xf32, #tpu.memory_space<vmem>>, %arg12: memref<10x18x8xf32, #tpu.memory_space<vmem>>, %arg13: memref<6x18x8xf32, #tpu.memory_space<vmem>>, %arg14: memref<4x18x4xf32, #tpu.memory_space<vmem>>) attributes {dimension_semantics = [#tpu.dimension_semantics<parallel>], iteration_bounds = array<i64: 2>, scalar_prefetch = 0 : i64, scratch_operands = 3 : i64, tpu.core_type = #tpu.core_type<tc>, window_params = [{transform_indices = @transform_0, window_bounds = array<i64: 1, 18, 18, 16>}, {pipeline_mode = #tpu.pipeline_mode<synchronous>, transform_indices = @transform_1, window_bounds = array<i64: 9, 16, 8>}, {pipeline_mode = #tpu.pipeline_mode<synchronous>, transform_indices = @transform_2, window_bounds = array<i64: 1, 8>}, {pipeline_mode = #tpu.pipeline_mode<synchronous>, transform_indices = @transform_3, window_bounds = array<i64: 9, 8, 8>}, {pipeline_mode = #tpu.pipeline_mode<synchronous>, transform_indices = @transform_4, window_bounds = array<i64: 1, 8>}, {pipeline_mode = #tpu.pipeline_mode<synchronous>, transform_indices = @transform_5, window_bounds = array<i64: 9, 8, 4>}, {pipeline_mode = #tpu.pipeline_mode<synchronous>, transform_indices = @transform_6, window_bounds = array<i64: 1, 4>}, {pipeline_mode = #tpu.pipeline_mode<synchronous>, transform_indices = @transform_7, window_bounds = array<i64: 9, 4, 8>}, {pipeline_mode = #tpu.pipeline_mode<synchronous>, transform_indices = @transform_8, window_bounds = array<i64: 1, 8>}, {pipeline_mode = #tpu.pipeline_mode<synchronous>, transform_indices = @transform_9, window_bounds = array<i64: 16, 128>}, {transform_indices = @transform_10, window_bounds = array<i64: 1, 8, 1, 128>}]} {
    %c0 = arith.constant 0 : index
    %c0_0 = arith.constant 0 : index
    %c0_1 = arith.constant 0 : index
    %c0_2 = arith.constant 0 : index
    %0 = vector.load %arg1[%c0, %c0_0, %c0_1, %c0_2] : memref<1x18x18x16xf32, #tpu.memory_space<vmem>>, vector<1x18x18x16xf32>
    %1 = vector.shape_cast %0 : vector<1x18x18x16xf32> to vector<18x18x16xf32>
    %2 = vector.shape_cast %1 : vector<18x18x16xf32> to vector<9x2x18x16xf32>
    %3 = vector.extract_strided_slice %2 {offsets = [0, 0, 0, 0], sizes = [9, 1, 18, 16], strides = [1, 1, 1, 1]} : vector<9x2x18x16xf32> to vector<9x1x18x16xf32>
    %4 = vector.shape_cast %3 : vector<9x1x18x16xf32> to vector<9x18x16xf32>
    %5 = vector.extract_strided_slice %2 {offsets = [0, 1, 0, 0], sizes = [9, 1, 18, 16], strides = [1, 1, 1, 1]} : vector<9x2x18x16xf32> to vector<9x1x18x16xf32>
    %6 = vector.shape_cast %5 : vector<9x1x18x16xf32> to vector<9x18x16xf32>
    %7 = vector.extract_strided_slice %4 {offsets = [0, 0, 0], sizes = [8, 18, 16], strides = [1, 1, 1]} : vector<9x18x16xf32> to vector<8x18x16xf32>
    %8 = vector.extract_strided_slice %7 {offsets = [0, 0, 0], sizes = [8, 16, 16], strides = [1, 1, 1]} : vector<8x18x16xf32> to vector<8x16x16xf32>
    %9 = vector.shape_cast %8 : vector<8x16x16xf32> to vector<128x16xf32>
    %10 = arith.truncf %9 : vector<128x16xf32> to vector<128x16xbf16>
    %c0_3 = arith.constant 0 : index
    %c0_4 = arith.constant 0 : index
    %c0_5 = arith.constant 0 : index
    %11 = vector.load %arg2[%c0_3, %c0_4, %c0_5] : memref<9x16x8xbf16, #tpu.memory_space<vmem>>, vector<1x16x8xbf16>
    %12 = vector.shape_cast %11 : vector<1x16x8xbf16> to vector<16x8xbf16>
    %cst = arith.constant dense<0.000000e+00> : vector<128x8xf32>
    %13 = tpu.matmul %10, %12, %cst {dimension_numbers = #tpu.dot_dimension_numbers<[1], [0], [0], [1], [0, 0, 1, 1], [], []>} : vector<128x16xbf16>, vector<16x8xbf16>, vector<128x8xf32> -> vector<128x8xf32>
    %14 = vector.extract_strided_slice %7 {offsets = [0, 1, 0], sizes = [8, 16, 16], strides = [1, 1, 1]} : vector<8x18x16xf32> to vector<8x16x16xf32>
    %15 = vector.shape_cast %14 : vector<8x16x16xf32> to vector<128x16xf32>
    %16 = arith.truncf %15 : vector<128x16xf32> to vector<128x16xbf16>
    %c1 = arith.constant 1 : index
    %c0_6 = arith.constant 0 : index
    %c0_7 = arith.constant 0 : index
    %17 = vector.load %arg2[%c1, %c0_6, %c0_7] : memref<9x16x8xbf16, #tpu.memory_space<vmem>>, vector<1x16x8xbf16>
    %18 = vector.shape_cast %17 : vector<1x16x8xbf16> to vector<16x8xbf16>
    %cst_8 = arith.constant dense<0.000000e+00> : vector<128x8xf32>
    %19 = tpu.matmul %16, %18, %cst_8 {dimension_numbers = #tpu.dot_dimension_numbers<[1], [0], [0], [1], [0, 0, 1, 1], [], []>} : vector<128x16xbf16>, vector<16x8xbf16>, vector<128x8xf32> -> vector<128x8xf32>
    %20 = arith.addf %13, %19 : vector<128x8xf32>
    %21 = vector.extract_strided_slice %7 {offsets = [0, 2, 0], sizes = [8, 16, 16], strides = [1, 1, 1]} : vector<8x18x16xf32> to vector<8x16x16xf32>
    %22 = vector.shape_cast %21 : vector<8x16x16xf32> to vector<128x16xf32>
    %23 = arith.truncf %22 : vector<128x16xf32> to vector<128x16xbf16>
    %c2 = arith.constant 2 : index
    %c0_9 = arith.constant 0 : index
    %c0_10 = arith.constant 0 : index
    %24 = vector.load %arg2[%c2, %c0_9, %c0_10] : memref<9x16x8xbf16, #tpu.memory_space<vmem>>, vector<1x16x8xbf16>
    %25 = vector.shape_cast %24 : vector<1x16x8xbf16> to vector<16x8xbf16>
    %cst_11 = arith.constant dense<0.000000e+00> : vector<128x8xf32>
    %26 = tpu.matmul %23, %25, %cst_11 {dimension_numbers = #tpu.dot_dimension_numbers<[1], [0], [0], [1], [0, 0, 1, 1], [], []>} : vector<128x16xbf16>, vector<16x8xbf16>, vector<128x8xf32> -> vector<128x8xf32>
    %27 = arith.addf %20, %26 : vector<128x8xf32>
    %28 = vector.extract_strided_slice %6 {offsets = [0, 0, 0], sizes = [8, 18, 16], strides = [1, 1, 1]} : vector<9x18x16xf32> to vector<8x18x16xf32>
    %29 = vector.extract_strided_slice %28 {offsets = [0, 0, 0], sizes = [8, 16, 16], strides = [1, 1, 1]} : vector<8x18x16xf32> to vector<8x16x16xf32>
    %30 = vector.shape_cast %29 : vector<8x16x16xf32> to vector<128x16xf32>
    %31 = arith.truncf %30 : vector<128x16xf32> to vector<128x16xbf16>
    %c3 = arith.constant 3 : index
    %c0_12 = arith.constant 0 : index
    %c0_13 = arith.constant 0 : index
    %32 = vector.load %arg2[%c3, %c0_12, %c0_13] : memref<9x16x8xbf16, #tpu.memory_space<vmem>>, vector<1x16x8xbf16>
    %33 = vector.shape_cast %32 : vector<1x16x8xbf16> to vector<16x8xbf16>
    %cst_14 = arith.constant dense<0.000000e+00> : vector<128x8xf32>
    %34 = tpu.matmul %31, %33, %cst_14 {dimension_numbers = #tpu.dot_dimension_numbers<[1], [0], [0], [1], [0, 0, 1, 1], [], []>} : vector<128x16xbf16>, vector<16x8xbf16>, vector<128x8xf32> -> vector<128x8xf32>
    %35 = arith.addf %27, %34 : vector<128x8xf32>
    %36 = vector.extract_strided_slice %28 {offsets = [0, 1, 0], sizes = [8, 16, 16], strides = [1, 1, 1]} : vector<8x18x16xf32> to vector<8x16x16xf32>
    %37 = vector.shape_cast %36 : vector<8x16x16xf32> to vector<128x16xf32>
    %38 = arith.truncf %37 : vector<128x16xf32> to vector<128x16xbf16>
    %c4 = arith.constant 4 : index
    %c0_15 = arith.constant 0 : index
    %c0_16 = arith.constant 0 : index
    %39 = vector.load %arg2[%c4, %c0_15, %c0_16] : memref<9x16x8xbf16, #tpu.memory_space<vmem>>, vector<1x16x8xbf16>
    %40 = vector.shape_cast %39 : vector<1x16x8xbf16> to vector<16x8xbf16>
    %cst_17 = arith.constant dense<0.000000e+00> : vector<128x8xf32>
    %41 = tpu.matmul %38, %40, %cst_17 {dimension_numbers = #tpu.dot_dimension_numbers<[1], [0], [0], [1], [0, 0, 1, 1], [], []>} : vector<128x16xbf16>, vector<16x8xbf16>, vector<128x8xf32> -> vector<128x8xf32>
    %42 = arith.addf %35, %41 : vector<128x8xf32>
    %43 = vector.extract_strided_slice %28 {offsets = [0, 2, 0], sizes = [8, 16, 16], strides = [1, 1, 1]} : vector<8x18x16xf32> to vector<8x16x16xf32>
    %44 = vector.shape_cast %43 : vector<8x16x16xf32> to vector<128x16xf32>
    %45 = arith.truncf %44 : vector<128x16xf32> to vector<128x16xbf16>
    %c5 = arith.constant 5 : index
    %c0_18 = arith.constant 0 : index
    %c0_19 = arith.constant 0 : index
    %46 = vector.load %arg2[%c5, %c0_18, %c0_19] : memref<9x16x8xbf16, #tpu.memory_space<vmem>>, vector<1x16x8xbf16>
    %47 = vector.shape_cast %46 : vector<1x16x8xbf16> to vector<16x8xbf16>
    %cst_20 = arith.constant dense<0.000000e+00> : vector<128x8xf32>
    %48 = tpu.matmul %45, %47, %cst_20 {dimension_numbers = #tpu.dot_dimension_numbers<[1], [0], [0], [1], [0, 0, 1, 1], [], []>} : vector<128x16xbf16>, vector<16x8xbf16>, vector<128x8xf32> -> vector<128x8xf32>
    %49 = arith.addf %42, %48 : vector<128x8xf32>
    %50 = vector.extract_strided_slice %4 {offsets = [1, 0, 0], sizes = [8, 18, 16], strides = [1, 1, 1]} : vector<9x18x16xf32> to vector<8x18x16xf32>
    %51 = vector.extract_strided_slice %50 {offsets = [0, 0, 0], sizes = [8, 16, 16], strides = [1, 1, 1]} : vector<8x18x16xf32> to vector<8x16x16xf32>
    %52 = vector.shape_cast %51 : vector<8x16x16xf32> to vector<128x16xf32>
    %53 = arith.truncf %52 : vector<128x16xf32> to vector<128x16xbf16>
    %c6 = arith.constant 6 : index
    %c0_21 = arith.constant 0 : index
    %c0_22 = arith.constant 0 : index
    %54 = vector.load %arg2[%c6, %c0_21, %c0_22] : memref<9x16x8xbf16, #tpu.memory_space<vmem>>, vector<1x16x8xbf16>
    %55 = vector.shape_cast %54 : vector<1x16x8xbf16> to vector<16x8xbf16>
    %cst_23 = arith.constant dense<0.000000e+00> : vector<128x8xf32>
    %56 = tpu.matmul %53, %55, %cst_23 {dimension_numbers = #tpu.dot_dimension_numbers<[1], [0], [0], [1], [0, 0, 1, 1], [], []>} : vector<128x16xbf16>, vector<16x8xbf16>, vector<128x8xf32> -> vector<128x8xf32>
    %57 = arith.addf %49, %56 : vector<128x8xf32>
    %58 = vector.extract_strided_slice %50 {offsets = [0, 1, 0], sizes = [8, 16, 16], strides = [1, 1, 1]} : vector<8x18x16xf32> to vector<8x16x16xf32>
    %59 = vector.shape_cast %58 : vector<8x16x16xf32> to vector<128x16xf32>
    %60 = arith.truncf %59 : vector<128x16xf32> to vector<128x16xbf16>
    %c7 = arith.constant 7 : index
    %c0_24 = arith.constant 0 : index
    %c0_25 = arith.constant 0 : index
    %61 = vector.load %arg2[%c7, %c0_24, %c0_25] : memref<9x16x8xbf16, #tpu.memory_space<vmem>>, vector<1x16x8xbf16>
    %62 = vector.shape_cast %61 : vector<1x16x8xbf16> to vector<16x8xbf16>
    %cst_26 = arith.constant dense<0.000000e+00> : vector<128x8xf32>
    %63 = tpu.matmul %60, %62, %cst_26 {dimension_numbers = #tpu.dot_dimension_numbers<[1], [0], [0], [1], [0, 0, 1, 1], [], []>} : vector<128x16xbf16>, vector<16x8xbf16>, vector<128x8xf32> -> vector<128x8xf32>
    %64 = arith.addf %57, %63 : vector<128x8xf32>
    %65 = vector.extract_strided_slice %50 {offsets = [0, 2, 0], sizes = [8, 16, 16], strides = [1, 1, 1]} : vector<8x18x16xf32> to vector<8x16x16xf32>
    %66 = vector.shape_cast %65 : vector<8x16x16xf32> to vector<128x16xf32>
    %67 = arith.truncf %66 : vector<128x16xf32> to vector<128x16xbf16>
    %c8 = arith.constant 8 : index
    %c0_27 = arith.constant 0 : index
    %c0_28 = arith.constant 0 : index
    %68 = vector.load %arg2[%c8, %c0_27, %c0_28] : memref<9x16x8xbf16, #tpu.memory_space<vmem>>, vector<1x16x8xbf16>
    %69 = vector.shape_cast %68 : vector<1x16x8xbf16> to vector<16x8xbf16>
    %cst_29 = arith.constant dense<0.000000e+00> : vector<128x8xf32>
    %70 = tpu.matmul %67, %69, %cst_29 {dimension_numbers = #tpu.dot_dimension_numbers<[1], [0], [0], [1], [0, 0, 1, 1], [], []>} : vector<128x16xbf16>, vector<16x8xbf16>, vector<128x8xf32> -> vector<128x8xf32>
    %71 = arith.addf %64, %70 : vector<128x8xf32>
    %c0_30 = arith.constant 0 : index
    %c0_31 = arith.constant 0 : index
    %72 = vector.load %arg3[%c0_30, %c0_31] : memref<1x8xf32, #tpu.memory_space<vmem>>, vector<1x8xf32>
    %73 = vector.broadcast %72 : vector<1x8xf32> to vector<128x8xf32>
    %74 = arith.addf %71, %73 : vector<128x8xf32>
    %cst_32 = arith.constant 0.000000e+00 : f32
    %75 = vector.broadcast %cst_32 : f32 to vector<128x8xf32>
    %76 = arith.maximumf %74, %75 : vector<128x8xf32>
    %77 = vector.shape_cast %76 : vector<128x8xf32> to vector<8x16x8xf32>
    %cst_33 = arith.constant 0.000000e+00 : f32
    %78 = vector.broadcast %cst_33 : f32 to vector<1x18x8xf32>
    %cst_34 = arith.constant 0.000000e+00 : f32
    %79 = vector.broadcast %cst_34 : f32 to vector<10x1x8xf32>
    %c0_35 = arith.constant 0 : index
    %c0_36 = arith.constant 0 : index
    %c0_37 = arith.constant 0 : index
    %80 = vector.load %arg12[%c0_35, %c0_36, %c0_37] : memref<10x18x8xf32, #tpu.memory_space<vmem>>, vector<1x18x8xf32>
    tpu.vector_store %arg12[%c0_35, %c0_36, %c0_37], %78 {strides = array<i32>} : memref<10x18x8xf32, #tpu.memory_space<vmem>>, vector<1x18x8xf32>,
    %c9 = arith.constant 9 : index
    %c0_38 = arith.constant 0 : index
    %c0_39 = arith.constant 0 : index
    %81 = vector.load %arg12[%c9, %c0_38, %c0_39] : memref<10x18x8xf32, #tpu.memory_space<vmem>>, vector<1x18x8xf32>
    tpu.vector_store %arg12[%c9, %c0_38, %c0_39], %78 {strides = array<i32>} : memref<10x18x8xf32, #tpu.memory_space<vmem>>, vector<1x18x8xf32>,
    %c0_40 = arith.constant 0 : index
    %c0_41 = arith.constant 0 : index
    %c0_42 = arith.constant 0 : index
    %82 = vector.load %arg12[%c0_40, %c0_41, %c0_42] : memref<10x18x8xf32, #tpu.memory_space<vmem>>, vector<10x1x8xf32>
    tpu.vector_store %arg12[%c0_40, %c0_41, %c0_42], %79 {strides = array<i32>} : memref<10x18x8xf32, #tpu.memory_space<vmem>>, vector<10x1x8xf32>,
    %c0_43 = arith.constant 0 : index
    %c17 = arith.constant 17 : index
    %c0_44 = arith.constant 0 : index
    %83 = vector.load %arg12[%c0_43, %c17, %c0_44] : memref<10x18x8xf32, #tpu.memory_space<vmem>>, vector<10x1x8xf32>
    tpu.vector_store %arg12[%c0_43, %c17, %c0_44], %79 {strides = array<i32>} : memref<10x18x8xf32, #tpu.memory_space<vmem>>, vector<10x1x8xf32>,
    %c1_45 = arith.constant 1 : index
    %c1_46 = arith.constant 1 : index
    %c0_47 = arith.constant 0 : index
    %84 = vector.load %arg12[%c1_45, %c1_46, %c0_47] : memref<10x18x8xf32, #tpu.memory_space<vmem>>, vector<8x16x8xf32>
    tpu.vector_store %arg12[%c1_45, %c1_46, %c0_47], %77 {strides = array<i32>} : memref<10x18x8xf32, #tpu.memory_space<vmem>>, vector<8x16x8xf32>,
    %c0_48 = arith.constant 0 : index
    %c0_49 = arith.constant 0 : index
    %c0_50 = arith.constant 0 : index
    %85 = vector.load %arg12[%c0_48, %c0_49, %c0_50] : memref<10x18x8xf32, #tpu.memory_space<vmem>>, vector<10x18x8xf32>
    %86 = vector.shape_cast %85 : vector<10x18x8xf32> to vector<5x2x18x8xf32>
    %87 = vector.extract_strided_slice %86 {offsets = [0, 0, 0, 0], sizes = [5, 1, 18, 8], strides = [1, 1, 1, 1]} : vector<5x2x18x8xf32> to vector<5x1x18x8xf32>
    %88 = vector.shape_cast %87 : vector<5x1x18x8xf32> to vector<5x18x8xf32>
    %89 = vector.extract_strided_slice %86 {offsets = [0, 1, 0, 0], sizes = [5, 1, 18, 8], strides = [1, 1, 1, 1]} : vector<5x2x18x8xf32> to vector<5x1x18x8xf32>
    %90 = vector.shape_cast %89 : vector<5x1x18x8xf32> to vector<5x18x8xf32>
    %91 = vector.extract_strided_slice %88 {offsets = [0, 0, 0], sizes = [4, 18, 8], strides = [1, 1, 1]} : vector<5x18x8xf32> to vector<4x18x8xf32>
    %92 = vector.extract_strided_slice %91 {offsets = [0, 0, 0], sizes = [4, 16, 8], strides = [1, 1, 1]} : vector<4x18x8xf32> to vector<4x16x8xf32>
    %93 = vector.shape_cast %92 : vector<4x16x8xf32> to vector<64x8xf32>
    %94 = arith.truncf %93 : vector<64x8xf32> to vector<64x8xbf16>
    %c0_51 = arith.constant 0 : index
    %c0_52 = arith.constant 0 : index
    %c0_53 = arith.constant 0 : index
    %95 = vector.load %arg4[%c0_51, %c0_52, %c0_53] : memref<9x8x8xbf16, #tpu.memory_space<vmem>>, vector<1x8x8xbf16>
    %96 = vector.shape_cast %95 : vector<1x8x8xbf16> to vector<8x8xbf16>
    %cst_54 = arith.constant dense<0.000000e+00> : vector<64x8xf32>
    %97 = tpu.matmul %94, %96, %cst_54 {dimension_numbers = #tpu.dot_dimension_numbers<[1], [0], [0], [1], [0, 0, 1, 1], [], []>} : vector<64x8xbf16>, vector<8x8xbf16>, vector<64x8xf32> -> vector<64x8xf32>
    %98 = vector.extract_strided_slice %91 {offsets = [0, 1, 0], sizes = [4, 16, 8], strides = [1, 1, 1]} : vector<4x18x8xf32> to vector<4x16x8xf32>
    %99 = vector.shape_cast %98 : vector<4x16x8xf32> to vector<64x8xf32>
    %100 = arith.truncf %99 : vector<64x8xf32> to vector<64x8xbf16>
    %c1_55 = arith.constant 1 : index
    %c0_56 = arith.constant 0 : index
    %c0_57 = arith.constant 0 : index
    %101 = vector.load %arg4[%c1_55, %c0_56, %c0_57] : memref<9x8x8xbf16, #tpu.memory_space<vmem>>, vector<1x8x8xbf16>
    %102 = vector.shape_cast %101 : vector<1x8x8xbf16> to vector<8x8xbf16>
    %cst_58 = arith.constant dense<0.000000e+00> : vector<64x8xf32>
    %103 = tpu.matmul %100, %102, %cst_58 {dimension_numbers = #tpu.dot_dimension_numbers<[1], [0], [0], [1], [0, 0, 1, 1], [], []>} : vector<64x8xbf16>, vector<8x8xbf16>, vector<64x8xf32> -> vector<64x8xf32>
    %104 = arith.addf %97, %103 : vector<64x8xf32>
    %105 = vector.extract_strided_slice %91 {offsets = [0, 2, 0], sizes = [4, 16, 8], strides = [1, 1, 1]} : vector<4x18x8xf32> to vector<4x16x8xf32>
    %106 = vector.shape_cast %105 : vector<4x16x8xf32> to vector<64x8xf32>
    %107 = arith.truncf %106 : vector<64x8xf32> to vector<64x8xbf16>
    %c2_59 = arith.constant 2 : index
    %c0_60 = arith.constant 0 : index
    %c0_61 = arith.constant 0 : index
    %108 = vector.load %arg4[%c2_59, %c0_60, %c0_61] : memref<9x8x8xbf16, #tpu.memory_space<vmem>>, vector<1x8x8xbf16>
    %109 = vector.shape_cast %108 : vector<1x8x8xbf16> to vector<8x8xbf16>
    %cst_62 = arith.constant dense<0.000000e+00> : vector<64x8xf32>
    %110 = tpu.matmul %107, %109, %cst_62 {dimension_numbers = #tpu.dot_dimension_numbers<[1], [0], [0], [1], [0, 0, 1, 1], [], []>} : vector<64x8xbf16>, vector<8x8xbf16>, vector<64x8xf32> -> vector<64x8xf32>
    %111 = arith.addf %104, %110 : vector<64x8xf32>
    %112 = vector.extract_strided_slice %90 {offsets = [0, 0, 0], sizes = [4, 18, 8], strides = [1, 1, 1]} : vector<5x18x8xf32> to vector<4x18x8xf32>
    %113 = vector.extract_strided_slice %112 {offsets = [0, 0, 0], sizes = [4, 16, 8], strides = [1, 1, 1]} : vector<4x18x8xf32> to vector<4x16x8xf32>
    %114 = vector.shape_cast %113 : vector<4x16x8xf32> to vector<64x8xf32>
    %115 = arith.truncf %114 : vector<64x8xf32> to vector<64x8xbf16>
    %c3_63 = arith.constant 3 : index
    %c0_64 = arith.constant 0 : index
    %c0_65 = arith.constant 0 : index
    %116 = vector.load %arg4[%c3_63, %c0_64, %c0_65] : memref<9x8x8xbf16, #tpu.memory_space<vmem>>, vector<1x8x8xbf16>
    %117 = vector.shape_cast %116 : vector<1x8x8xbf16> to vector<8x8xbf16>
    %cst_66 = arith.constant dense<0.000000e+00> : vector<64x8xf32>
    %118 = tpu.matmul %115, %117, %cst_66 {dimension_numbers = #tpu.dot_dimension_numbers<[1], [0], [0], [1], [0, 0, 1, 1], [], []>} : vector<64x8xbf16>, vector<8x8xbf16>, vector<64x8xf32> -> vector<64x8xf32>
    %119 = arith.addf %111, %118 : vector<64x8xf32>
    %120 = vector.extract_strided_slice %112 {offsets = [0, 1, 0], sizes = [4, 16, 8], strides = [1, 1, 1]} : vector<4x18x8xf32> to vector<4x16x8xf32>
    %121 = vector.shape_cast %120 : vector<4x16x8xf32> to vector<64x8xf32>
    %122 = arith.truncf %121 : vector<64x8xf32> to vector<64x8xbf16>
    %c4_67 = arith.constant 4 : index
    %c0_68 = arith.constant 0 : index
    %c0_69 = arith.constant 0 : index
    %123 = vector.load %arg4[%c4_67, %c0_68, %c0_69] : memref<9x8x8xbf16, #tpu.memory_space<vmem>>, vector<1x8x8xbf16>
    %124 = vector.shape_cast %123 : vector<1x8x8xbf16> to vector<8x8xbf16>
    %cst_70 = arith.constant dense<0.000000e+00> : vector<64x8xf32>
    %125 = tpu.matmul %122, %124, %cst_70 {dimension_numbers = #tpu.dot_dimension_numbers<[1], [0], [0], [1], [0, 0, 1, 1], [], []>} : vector<64x8xbf16>, vector<8x8xbf16>, vector<64x8xf32> -> vector<64x8xf32>
    %126 = arith.addf %119, %125 : vector<64x8xf32>
    %127 = vector.extract_strided_slice %112 {offsets = [0, 2, 0], sizes = [4, 16, 8], strides = [1, 1, 1]} : vector<4x18x8xf32> to vector<4x16x8xf32>
    %128 = vector.shape_cast %127 : vector<4x16x8xf32> to vector<64x8xf32>
    %129 = arith.truncf %128 : vector<64x8xf32> to vector<64x8xbf16>
    %c5_71 = arith.constant 5 : index
    %c0_72 = arith.constant 0 : index
    %c0_73 = arith.constant 0 : index
    %130 = vector.load %arg4[%c5_71, %c0_72, %c0_73] : memref<9x8x8xbf16, #tpu.memory_space<vmem>>, vector<1x8x8xbf16>
    %131 = vector.shape_cast %130 : vector<1x8x8xbf16> to vector<8x8xbf16>
    %cst_74 = arith.constant dense<0.000000e+00> : vector<64x8xf32>
    %132 = tpu.matmul %129, %131, %cst_74 {dimension_numbers = #tpu.dot_dimension_numbers<[1], [0], [0], [1], [0, 0, 1, 1], [], []>} : vector<64x8xbf16>, vector<8x8xbf16>, vector<64x8xf32> -> vector<64x8xf32>
    %133 = arith.addf %126, %132 : vector<64x8xf32>
    %134 = vector.extract_strided_slice %88 {offsets = [1, 0, 0], sizes = [4, 18, 8], strides = [1, 1, 1]} : vector<5x18x8xf32> to vector<4x18x8xf32>
    %135 = vector.extract_strided_slice %134 {offsets = [0, 0, 0], sizes = [4, 16, 8], strides = [1, 1, 1]} : vector<4x18x8xf32> to vector<4x16x8xf32>
    %136 = vector.shape_cast %135 : vector<4x16x8xf32> to vector<64x8xf32>
    %137 = arith.truncf %136 : vector<64x8xf32> to vector<64x8xbf16>
    %c6_75 = arith.constant 6 : index
    %c0_76 = arith.constant 0 : index
    %c0_77 = arith.constant 0 : index
    %138 = vector.load %arg4[%c6_75, %c0_76, %c0_77] : memref<9x8x8xbf16, #tpu.memory_space<vmem>>, vector<1x8x8xbf16>
    %139 = vector.shape_cast %138 : vector<1x8x8xbf16> to vector<8x8xbf16>
    %cst_78 = arith.constant dense<0.000000e+00> : vector<64x8xf32>
    %140 = tpu.matmul %137, %139, %cst_78 {dimension_numbers = #tpu.dot_dimension_numbers<[1], [0], [0], [1], [0, 0, 1, 1], [], []>} : vector<64x8xbf16>, vector<8x8xbf16>, vector<64x8xf32> -> vector<64x8xf32>
    %141 = arith.addf %133, %140 : vector<64x8xf32>
    %142 = vector.extract_strided_slice %134 {offsets = [0, 1, 0], sizes = [4, 16, 8], strides = [1, 1, 1]} : vector<4x18x8xf32> to vector<4x16x8xf32>
    %143 = vector.shape_cast %142 : vector<4x16x8xf32> to vector<64x8xf32>
    %144 = arith.truncf %143 : vector<64x8xf32> to vector<64x8xbf16>
    %c7_79 = arith.constant 7 : index
    %c0_80 = arith.constant 0 : index
    %c0_81 = arith.constant 0 : index
    %145 = vector.load %arg4[%c7_79, %c0_80, %c0_81] : memref<9x8x8xbf16, #tpu.memory_space<vmem>>, vector<1x8x8xbf16>
    %146 = vector.shape_cast %145 : vector<1x8x8xbf16> to vector<8x8xbf16>
    %cst_82 = arith.constant dense<0.000000e+00> : vector<64x8xf32>
    %147 = tpu.matmul %144, %146, %cst_82 {dimension_numbers = #tpu.dot_dimension_numbers<[1], [0], [0], [1], [0, 0, 1, 1], [], []>} : vector<64x8xbf16>, vector<8x8xbf16>, vector<64x8xf32> -> vector<64x8xf32>
    %148 = arith.addf %141, %147 : vector<64x8xf32>
    %149 = vector.extract_strided_slice %134 {offsets = [0, 2, 0], sizes = [4, 16, 8], strides = [1, 1, 1]} : vector<4x18x8xf32> to vector<4x16x8xf32>
    %150 = vector.shape_cast %149 : vector<4x16x8xf32> to vector<64x8xf32>
    %151 = arith.truncf %150 : vector<64x8xf32> to vector<64x8xbf16>
    %c8_83 = arith.constant 8 : index
    %c0_84 = arith.constant 0 : index
    %c0_85 = arith.constant 0 : index
    %152 = vector.load %arg4[%c8_83, %c0_84, %c0_85] : memref<9x8x8xbf16, #tpu.memory_space<vmem>>, vector<1x8x8xbf16>
    %153 = vector.shape_cast %152 : vector<1x8x8xbf16> to vector<8x8xbf16>
    %cst_86 = arith.constant dense<0.000000e+00> : vector<64x8xf32>
    %154 = tpu.matmul %151, %153, %cst_86 {dimension_numbers = #tpu.dot_dimension_numbers<[1], [0], [0], [1], [0, 0, 1, 1], [], []>} : vector<64x8xbf16>, vector<8x8xbf16>, vector<64x8xf32> -> vector<64x8xf32>
    %155 = arith.addf %148, %154 : vector<64x8xf32>
    %c0_87 = arith.constant 0 : index
    %c0_88 = arith.constant 0 : index
    %156 = vector.load %arg5[%c0_87, %c0_88] : memref<1x8xf32, #tpu.memory_space<vmem>>, vector<1x8xf32>
    %157 = vector.broadcast %156 : vector<1x8xf32> to vector<64x8xf32>
    %158 = arith.addf %155, %157 : vector<64x8xf32>
    %cst_89 = arith.constant 0.000000e+00 : f32
    %159 = vector.broadcast %cst_89 : f32 to vector<64x8xf32>
    %160 = arith.maximumf %158, %159 : vector<64x8xf32>
    %161 = vector.shape_cast %160 : vector<64x8xf32> to vector<4x16x8xf32>
    %cst_90 = arith.constant 0.000000e+00 : f32
    %162 = vector.broadcast %cst_90 : f32 to vector<1x18x8xf32>
    %cst_91 = arith.constant 0.000000e+00 : f32
    %163 = vector.broadcast %cst_91 : f32 to vector<6x1x8xf32>
    %c0_92 = arith.constant 0 : index
    %c0_93 = arith.constant 0 : index
    %c0_94 = arith.constant 0 : index
    %164 = vector.load %arg13[%c0_92, %c0_93, %c0_94] : memref<6x18x8xf32, #tpu.memory_space<vmem>>, vector<1x18x8xf32>
    tpu.vector_store %arg13[%c0_92, %c0_93, %c0_94], %162 {strides = array<i32>} : memref<6x18x8xf32, #tpu.memory_space<vmem>>, vector<1x18x8xf32>,
    %c5_95 = arith.constant 5 : index
    %c0_96 = arith.constant 0 : index
    %c0_97 = arith.constant 0 : index
    %165 = vector.load %arg13[%c5_95, %c0_96, %c0_97] : memref<6x18x8xf32, #tpu.memory_space<vmem>>, vector<1x18x8xf32>
    tpu.vector_store %arg13[%c5_95, %c0_96, %c0_97], %162 {strides = array<i32>} : memref<6x18x8xf32, #tpu.memory_space<vmem>>, vector<1x18x8xf32>,
    %c0_98 = arith.constant 0 : index
    %c0_99 = arith.constant 0 : index
    %c0_100 = arith.constant 0 : index
    %166 = vector.load %arg13[%c0_98, %c0_99, %c0_100] : memref<6x18x8xf32, #tpu.memory_space<vmem>>, vector<6x1x8xf32>
    tpu.vector_store %arg13[%c0_98, %c0_99, %c0_100], %163 {strides = array<i32>} : memref<6x18x8xf32, #tpu.memory_space<vmem>>, vector<6x1x8xf32>,
    %c0_101 = arith.constant 0 : index
    %c17_102 = arith.constant 17 : index
    %c0_103 = arith.constant 0 : index
    %167 = vector.load %arg13[%c0_101, %c17_102, %c0_103] : memref<6x18x8xf32, #tpu.memory_space<vmem>>, vector<6x1x8xf32>
    tpu.vector_store %arg13[%c0_101, %c17_102, %c0_103], %163 {strides = array<i32>} : memref<6x18x8xf32, #tpu.memory_space<vmem>>, vector<6x1x8xf32>,
    %c1_104 = arith.constant 1 : index
    %c1_105 = arith.constant 1 : index
    %c0_106 = arith.constant 0 : index
    %168 = vector.load %arg13[%c1_104, %c1_105, %c0_106] : memref<6x18x8xf32, #tpu.memory_space<vmem>>, vector<4x16x8xf32>
    tpu.vector_store %arg13[%c1_104, %c1_105, %c0_106], %161 {strides = array<i32>} : memref<6x18x8xf32, #tpu.memory_space<vmem>>, vector<4x16x8xf32>,
    %c0_107 = arith.constant 0 : index
    %c0_108 = arith.constant 0 : index
    %c0_109 = arith.constant 0 : index
    %169 = vector.load %arg13[%c0_107, %c0_108, %c0_109] : memref<6x18x8xf32, #tpu.memory_space<vmem>>, vector<6x18x8xf32>
    %170 = vector.shape_cast %169 : vector<6x18x8xf32> to vector<3x2x18x8xf32>
    %171 = vector.extract_strided_slice %170 {offsets = [0, 0, 0, 0], sizes = [3, 1, 18, 8], strides = [1, 1, 1, 1]} : vector<3x2x18x8xf32> to vector<3x1x18x8xf32>
    %172 = vector.shape_cast %171 : vector<3x1x18x8xf32> to vector<3x18x8xf32>
    %173 = vector.extract_strided_slice %170 {offsets = [0, 1, 0, 0], sizes = [3, 1, 18, 8], strides = [1, 1, 1, 1]} : vector<3x2x18x8xf32> to vector<3x1x18x8xf32>
    %174 = vector.shape_cast %173 : vector<3x1x18x8xf32> to vector<3x18x8xf32>
    %175 = vector.extract_strided_slice %172 {offsets = [0, 0, 0], sizes = [2, 18, 8], strides = [1, 1, 1]} : vector<3x18x8xf32> to vector<2x18x8xf32>
    %176 = vector.extract_strided_slice %175 {offsets = [0, 0, 0], sizes = [2, 16, 8], strides = [1, 1, 1]} : vector<2x18x8xf32> to vector<2x16x8xf32>
    %177 = vector.shape_cast %176 : vector<2x16x8xf32> to vector<32x8xf32>
    %178 = arith.truncf %177 : vector<32x8xf32> to vector<32x8xbf16>
    %c0_110 = arith.constant 0 : index
    %c0_111 = arith.constant 0 : index
    %c0_112 = arith.constant 0 : index
    %179 = vector.load %arg6[%c0_110, %c0_111, %c0_112] : memref<9x8x4xbf16, #tpu.memory_space<vmem>>, vector<1x8x4xbf16>
    %180 = vector.shape_cast %179 : vector<1x8x4xbf16> to vector<8x4xbf16>
    %cst_113 = arith.constant dense<0.000000e+00> : vector<32x4xf32>
    %181 = tpu.matmul %178, %180, %cst_113 {dimension_numbers = #tpu.dot_dimension_numbers<[1], [0], [0], [1], [0, 0, 1, 1], [], []>} : vector<32x8xbf16>, vector<8x4xbf16>, vector<32x4xf32> -> vector<32x4xf32>
    %182 = vector.extract_strided_slice %175 {offsets = [0, 1, 0], sizes = [2, 16, 8], strides = [1, 1, 1]} : vector<2x18x8xf32> to vector<2x16x8xf32>
    %183 = vector.shape_cast %182 : vector<2x16x8xf32> to vector<32x8xf32>
    %184 = arith.truncf %183 : vector<32x8xf32> to vector<32x8xbf16>
    %c1_114 = arith.constant 1 : index
    %c0_115 = arith.constant 0 : index
    %c0_116 = arith.constant 0 : index
    %185 = vector.load %arg6[%c1_114, %c0_115, %c0_116] : memref<9x8x4xbf16, #tpu.memory_space<vmem>>, vector<1x8x4xbf16>
    %186 = vector.shape_cast %185 : vector<1x8x4xbf16> to vector<8x4xbf16>
    %cst_117 = arith.constant dense<0.000000e+00> : vector<32x4xf32>
    %187 = tpu.matmul %184, %186, %cst_117 {dimension_numbers = #tpu.dot_dimension_numbers<[1], [0], [0], [1], [0, 0, 1, 1], [], []>} : vector<32x8xbf16>, vector<8x4xbf16>, vector<32x4xf32> -> vector<32x4xf32>
    %188 = arith.addf %181, %187 : vector<32x4xf32>
    %189 = vector.extract_strided_slice %175 {offsets = [0, 2, 0], sizes = [2, 16, 8], strides = [1, 1, 1]} : vector<2x18x8xf32> to vector<2x16x8xf32>
    %190 = vector.shape_cast %189 : vector<2x16x8xf32> to vector<32x8xf32>
    %191 = arith.truncf %190 : vector<32x8xf32> to vector<32x8xbf16>
    %c2_118 = arith.constant 2 : index
    %c0_119 = arith.constant 0 : index
    %c0_120 = arith.constant 0 : index
    %192 = vector.load %arg6[%c2_118, %c0_119, %c0_120] : memref<9x8x4xbf16, #tpu.memory_space<vmem>>, vector<1x8x4xbf16>
    %193 = vector.shape_cast %192 : vector<1x8x4xbf16> to vector<8x4xbf16>
    %cst_121 = arith.constant dense<0.000000e+00> : vector<32x4xf32>
    %194 = tpu.matmul %191, %193, %cst_121 {dimension_numbers = #tpu.dot_dimension_numbers<[1], [0], [0], [1], [0, 0, 1, 1], [], []>} : vector<32x8xbf16>, vector<8x4xbf16>, vector<32x4xf32> -> vector<32x4xf32>
    %195 = arith.addf %188, %194 : vector<32x4xf32>
    %196 = vector.extract_strided_slice %174 {offsets = [0, 0, 0], sizes = [2, 18, 8], strides = [1, 1, 1]} : vector<3x18x8xf32> to vector<2x18x8xf32>
    %197 = vector.extract_strided_slice %196 {offsets = [0, 0, 0], sizes = [2, 16, 8], strides = [1, 1, 1]} : vector<2x18x8xf32> to vector<2x16x8xf32>
    %198 = vector.shape_cast %197 : vector<2x16x8xf32> to vector<32x8xf32>
    %199 = arith.truncf %198 : vector<32x8xf32> to vector<32x8xbf16>
    %c3_122 = arith.constant 3 : index
    %c0_123 = arith.constant 0 : index
    %c0_124 = arith.constant 0 : index
    %200 = vector.load %arg6[%c3_122, %c0_123, %c0_124] : memref<9x8x4xbf16, #tpu.memory_space<vmem>>, vector<1x8x4xbf16>
    %201 = vector.shape_cast %200 : vector<1x8x4xbf16> to vector<8x4xbf16>
    %cst_125 = arith.constant dense<0.000000e+00> : vector<32x4xf32>
    %202 = tpu.matmul %199, %201, %cst_125 {dimension_numbers = #tpu.dot_dimension_numbers<[1], [0], [0], [1], [0, 0, 1, 1], [], []>} : vector<32x8xbf16>, vector<8x4xbf16>, vector<32x4xf32> -> vector<32x4xf32>
    %203 = arith.addf %195, %202 : vector<32x4xf32>
    %204 = vector.extract_strided_slice %196 {offsets = [0, 1, 0], sizes = [2, 16, 8], strides = [1, 1, 1]} : vector<2x18x8xf32> to vector<2x16x8xf32>
    %205 = vector.shape_cast %204 : vector<2x16x8xf32> to vector<32x8xf32>
    %206 = arith.truncf %205 : vector<32x8xf32> to vector<32x8xbf16>
    %c4_126 = arith.constant 4 : index
    %c0_127 = arith.constant 0 : index
    %c0_128 = arith.constant 0 : index
    %207 = vector.load %arg6[%c4_126, %c0_127, %c0_128] : memref<9x8x4xbf16, #tpu.memory_space<vmem>>, vector<1x8x4xbf16>
    %208 = vector.shape_cast %207 : vector<1x8x4xbf16> to vector<8x4xbf16>
    %cst_129 = arith.constant dense<0.000000e+00> : vector<32x4xf32>
    %209 = tpu.matmul %206, %208, %cst_129 {dimension_numbers = #tpu.dot_dimension_numbers<[1], [0], [0], [1], [0, 0, 1, 1], [], []>} : vector<32x8xbf16>, vector<8x4xbf16>, vector<32x4xf32> -> vector<32x4xf32>
    %210 = arith.addf %203, %209 : vector<32x4xf32>
    %211 = vector.extract_strided_slice %196 {offsets = [0, 2, 0], sizes = [2, 16, 8], strides = [1, 1, 1]} : vector<2x18x8xf32> to vector<2x16x8xf32>
    %212 = vector.shape_cast %211 : vector<2x16x8xf32> to vector<32x8xf32>
    %213 = arith.truncf %212 : vector<32x8xf32> to vector<32x8xbf16>
    %c5_130 = arith.constant 5 : index
    %c0_131 = arith.constant 0 : index
    %c0_132 = arith.constant 0 : index
    %214 = vector.load %arg6[%c5_130, %c0_131, %c0_132] : memref<9x8x4xbf16, #tpu.memory_space<vmem>>, vector<1x8x4xbf16>
    %215 = vector.shape_cast %214 : vector<1x8x4xbf16> to vector<8x4xbf16>
    %cst_133 = arith.constant dense<0.000000e+00> : vector<32x4xf32>
    %216 = tpu.matmul %213, %215, %cst_133 {dimension_numbers = #tpu.dot_dimension_numbers<[1], [0], [0], [1], [0, 0, 1, 1], [], []>} : vector<32x8xbf16>, vector<8x4xbf16>, vector<32x4xf32> -> vector<32x4xf32>
    %217 = arith.addf %210, %216 : vector<32x4xf32>
    %218 = vector.extract_strided_slice %172 {offsets = [1, 0, 0], sizes = [2, 18, 8], strides = [1, 1, 1]} : vector<3x18x8xf32> to vector<2x18x8xf32>
    %219 = vector.extract_strided_slice %218 {offsets = [0, 0, 0], sizes = [2, 16, 8], strides = [1, 1, 1]} : vector<2x18x8xf32> to vector<2x16x8xf32>
    %220 = vector.shape_cast %219 : vector<2x16x8xf32> to vector<32x8xf32>
    %221 = arith.truncf %220 : vector<32x8xf32> to vector<32x8xbf16>
    %c6_134 = arith.constant 6 : index
    %c0_135 = arith.constant 0 : index
    %c0_136 = arith.constant 0 : index
    %222 = vector.load %arg6[%c6_134, %c0_135, %c0_136] : memref<9x8x4xbf16, #tpu.memory_space<vmem>>, vector<1x8x4xbf16>
    %223 = vector.shape_cast %222 : vector<1x8x4xbf16> to vector<8x4xbf16>
    %cst_137 = arith.constant dense<0.000000e+00> : vector<32x4xf32>
    %224 = tpu.matmul %221, %223, %cst_137 {dimension_numbers = #tpu.dot_dimension_numbers<[1], [0], [0], [1], [0, 0, 1, 1], [], []>} : vector<32x8xbf16>, vector<8x4xbf16>, vector<32x4xf32> -> vector<32x4xf32>
    %225 = arith.addf %217, %224 : vector<32x4xf32>
    %226 = vector.extract_strided_slice %218 {offsets = [0, 1, 0], sizes = [2, 16, 8], strides = [1, 1, 1]} : vector<2x18x8xf32> to vector<2x16x8xf32>
    %227 = vector.shape_cast %226 : vector<2x16x8xf32> to vector<32x8xf32>
    %228 = arith.truncf %227 : vector<32x8xf32> to vector<32x8xbf16>
    %c7_138 = arith.constant 7 : index
    %c0_139 = arith.constant 0 : index
    %c0_140 = arith.constant 0 : index
    %229 = vector.load %arg6[%c7_138, %c0_139, %c0_140] : memref<9x8x4xbf16, #tpu.memory_space<vmem>>, vector<1x8x4xbf16>
    %230 = vector.shape_cast %229 : vector<1x8x4xbf16> to vector<8x4xbf16>
    %cst_141 = arith.constant dense<0.000000e+00> : vector<32x4xf32>
    %231 = tpu.matmul %228, %230, %cst_141 {dimension_numbers = #tpu.dot_dimension_numbers<[1], [0], [0], [1], [0, 0, 1, 1], [], []>} : vector<32x8xbf16>, vector<8x4xbf16>, vector<32x4xf32> -> vector<32x4xf32>
    %232 = arith.addf %225, %231 : vector<32x4xf32>
    %233 = vector.extract_strided_slice %218 {offsets = [0, 2, 0], sizes = [2, 16, 8], strides = [1, 1, 1]} : vector<2x18x8xf32> to vector<2x16x8xf32>
    %234 = vector.shape_cast %233 : vector<2x16x8xf32> to vector<32x8xf32>
    %235 = arith.truncf %234 : vector<32x8xf32> to vector<32x8xbf16>
    %c8_142 = arith.constant 8 : index
    %c0_143 = arith.constant 0 : index
    %c0_144 = arith.constant 0 : index
    %236 = vector.load %arg6[%c8_142, %c0_143, %c0_144] : memref<9x8x4xbf16, #tpu.memory_space<vmem>>, vector<1x8x4xbf16>
    %237 = vector.shape_cast %236 : vector<1x8x4xbf16> to vector<8x4xbf16>
    %cst_145 = arith.constant dense<0.000000e+00> : vector<32x4xf32>
    %238 = tpu.matmul %235, %237, %cst_145 {dimension_numbers = #tpu.dot_dimension_numbers<[1], [0], [0], [1], [0, 0, 1, 1], [], []>} : vector<32x8xbf16>, vector<8x4xbf16>, vector<32x4xf32> -> vector<32x4xf32>
    %239 = arith.addf %232, %238 : vector<32x4xf32>
    %c0_146 = arith.constant 0 : index
    %c0_147 = arith.constant 0 : index
    %240 = vector.load %arg7[%c0_146, %c0_147] : memref<1x4xf32, #tpu.memory_space<vmem>>, vector<1x4xf32>
    %241 = vector.broadcast %240 : vector<1x4xf32> to vector<32x4xf32>
    %242 = arith.addf %239, %241 : vector<32x4xf32>
    %cst_148 = arith.constant 0.000000e+00 : f32
    %243 = vector.broadcast %cst_148 : f32 to vector<32x4xf32>
    %244 = arith.maximumf %242, %243 : vector<32x4xf32>
    %245 = vector.shape_cast %244 : vector<32x4xf32> to vector<2x16x4xf32>
    %cst_149 = arith.constant 0.000000e+00 : f32
    %246 = vector.broadcast %cst_149 : f32 to vector<1x18x4xf32>
    %cst_150 = arith.constant 0.000000e+00 : f32
    %247 = vector.broadcast %cst_150 : f32 to vector<4x1x4xf32>
    %c0_151 = arith.constant 0 : index
    %c0_152 = arith.constant 0 : index
    %c0_153 = arith.constant 0 : index
    %248 = vector.load %arg14[%c0_151, %c0_152, %c0_153] : memref<4x18x4xf32, #tpu.memory_space<vmem>>, vector<1x18x4xf32>
    tpu.vector_store %arg14[%c0_151, %c0_152, %c0_153], %246 {strides = array<i32>} : memref<4x18x4xf32, #tpu.memory_space<vmem>>, vector<1x18x4xf32>,
    %c3_154 = arith.constant 3 : index
    %c0_155 = arith.constant 0 : index
    %c0_156 = arith.constant 0 : index
    %249 = vector.load %arg14[%c3_154, %c0_155, %c0_156] : memref<4x18x4xf32, #tpu.memory_space<vmem>>, vector<1x18x4xf32>
    tpu.vector_store %arg14[%c3_154, %c0_155, %c0_156], %246 {strides = array<i32>} : memref<4x18x4xf32, #tpu.memory_space<vmem>>, vector<1x18x4xf32>,
    %c0_157 = arith.constant 0 : index
    %c0_158 = arith.constant 0 : index
    %c0_159 = arith.constant 0 : index
    %250 = vector.load %arg14[%c0_157, %c0_158, %c0_159] : memref<4x18x4xf32, #tpu.memory_space<vmem>>, vector<4x1x4xf32>
    tpu.vector_store %arg14[%c0_157, %c0_158, %c0_159], %247 {strides = array<i32>} : memref<4x18x4xf32, #tpu.memory_space<vmem>>, vector<4x1x4xf32>,
    %c0_160 = arith.constant 0 : index
    %c17_161 = arith.constant 17 : index
    %c0_162 = arith.constant 0 : index
    %251 = vector.load %arg14[%c0_160, %c17_161, %c0_162] : memref<4x18x4xf32, #tpu.memory_space<vmem>>, vector<4x1x4xf32>
    tpu.vector_store %arg14[%c0_160, %c17_161, %c0_162], %247 {strides = array<i32>} : memref<4x18x4xf32, #tpu.memory_space<vmem>>, vector<4x1x4xf32>,
    %c1_163 = arith.constant 1 : index
    %c1_164 = arith.constant 1 : index
    %c0_165 = arith.constant 0 : index
    %252 = vector.load %arg14[%c1_163, %c1_164, %c0_165] : memref<4x18x4xf32, #tpu.memory_space<vmem>>, vector<2x16x4xf32>
    tpu.vector_store %arg14[%c1_163, %c1_164, %c0_165], %245 {strides = array<i32>} : memref<4x18x4xf32, #tpu.memory_space<vmem>>, vector<2x16x4xf32>,
    %c0_166 = arith.constant 0 : index
    %c0_167 = arith.constant 0 : index
    %c0_168 = arith.constant 0 : index
    %253 = vector.load %arg14[%c0_166, %c0_167, %c0_168] : memref<4x18x4xf32, #tpu.memory_space<vmem>>, vector<4x18x4xf32>
    %254 = vector.shape_cast %253 : vector<4x18x4xf32> to vector<2x2x18x4xf32>
    %255 = vector.extract_strided_slice %254 {offsets = [0, 0, 0, 0], sizes = [2, 1, 18, 4], strides = [1, 1, 1, 1]} : vector<2x2x18x4xf32> to vector<2x1x18x4xf32>
    %256 = vector.shape_cast %255 : vector<2x1x18x4xf32> to vector<2x18x4xf32>
    %257 = vector.extract_strided_slice %254 {offsets = [0, 1, 0, 0], sizes = [2, 1, 18, 4], strides = [1, 1, 1, 1]} : vector<2x2x18x4xf32> to vector<2x1x18x4xf32>
    %258 = vector.shape_cast %257 : vector<2x1x18x4xf32> to vector<2x18x4xf32>
    %259 = vector.extract_strided_slice %256 {offsets = [0, 0, 0], sizes = [1, 18, 4], strides = [1, 1, 1]} : vector<2x18x4xf32> to vector<1x18x4xf32>
    %260 = vector.extract_strided_slice %259 {offsets = [0, 0, 0], sizes = [1, 16, 4], strides = [1, 1, 1]} : vector<1x18x4xf32> to vector<1x16x4xf32>
    %261 = vector.shape_cast %260 : vector<1x16x4xf32> to vector<16x4xf32>
    %262 = arith.truncf %261 : vector<16x4xf32> to vector<16x4xbf16>
    %c0_169 = arith.constant 0 : index
    %c0_170 = arith.constant 0 : index
    %c0_171 = arith.constant 0 : index
    %263 = vector.load %arg8[%c0_169, %c0_170, %c0_171] : memref<9x4x8xbf16, #tpu.memory_space<vmem>>, vector<1x4x8xbf16>
    %264 = vector.shape_cast %263 : vector<1x4x8xbf16> to vector<4x8xbf16>
    %cst_172 = arith.constant dense<0.000000e+00> : vector<16x8xf32>
    %265 = tpu.matmul %262, %264, %cst_172 {dimension_numbers = #tpu.dot_dimension_numbers<[1], [0], [0], [1], [0, 0, 1, 1], [], []>} : vector<16x4xbf16>, vector<4x8xbf16>, vector<16x8xf32> -> vector<16x8xf32>
    %266 = vector.extract_strided_slice %259 {offsets = [0, 1, 0], sizes = [1, 16, 4], strides = [1, 1, 1]} : vector<1x18x4xf32> to vector<1x16x4xf32>
    %267 = vector.shape_cast %266 : vector<1x16x4xf32> to vector<16x4xf32>
    %268 = arith.truncf %267 : vector<16x4xf32> to vector<16x4xbf16>
    %c1_173 = arith.constant 1 : index
    %c0_174 = arith.constant 0 : index
    %c0_175 = arith.constant 0 : index
    %269 = vector.load %arg8[%c1_173, %c0_174, %c0_175] : memref<9x4x8xbf16, #tpu.memory_space<vmem>>, vector<1x4x8xbf16>
    %270 = vector.shape_cast %269 : vector<1x4x8xbf16> to vector<4x8xbf16>
    %cst_176 = arith.constant dense<0.000000e+00> : vector<16x8xf32>
    %271 = tpu.matmul %268, %270, %cst_176 {dimension_numbers = #tpu.dot_dimension_numbers<[1], [0], [0], [1], [0, 0, 1, 1], [], []>} : vector<16x4xbf16>, vector<4x8xbf16>, vector<16x8xf32> -> vector<16x8xf32>
    %272 = arith.addf %265, %271 : vector<16x8xf32>
    %273 = vector.extract_strided_slice %259 {offsets = [0, 2, 0], sizes = [1, 16, 4], strides = [1, 1, 1]} : vector<1x18x4xf32> to vector<1x16x4xf32>
    %274 = vector.shape_cast %273 : vector<1x16x4xf32> to vector<16x4xf32>
    %275 = arith.truncf %274 : vector<16x4xf32> to vector<16x4xbf16>
    %c2_177 = arith.constant 2 : index
    %c0_178 = arith.constant 0 : index
    %c0_179 = arith.constant 0 : index
    %276 = vector.load %arg8[%c2_177, %c0_178, %c0_179] : memref<9x4x8xbf16, #tpu.memory_space<vmem>>, vector<1x4x8xbf16>
    %277 = vector.shape_cast %276 : vector<1x4x8xbf16> to vector<4x8xbf16>
    %cst_180 = arith.constant dense<0.000000e+00> : vector<16x8xf32>
    %278 = tpu.matmul %275, %277, %cst_180 {dimension_numbers = #tpu.dot_dimension_numbers<[1], [0], [0], [1], [0, 0, 1, 1], [], []>} : vector<16x4xbf16>, vector<4x8xbf16>, vector<16x8xf32> -> vector<16x8xf32>
    %279 = arith.addf %272, %278 : vector<16x8xf32>
    %280 = vector.extract_strided_slice %258 {offsets = [0, 0, 0], sizes = [1, 18, 4], strides = [1, 1, 1]} : vector<2x18x4xf32> to vector<1x18x4xf32>
    %281 = vector.extract_strided_slice %280 {offsets = [0, 0, 0], sizes = [1, 16, 4], strides = [1, 1, 1]} : vector<1x18x4xf32> to vector<1x16x4xf32>
    %282 = vector.shape_cast %281 : vector<1x16x4xf32> to vector<16x4xf32>
    %283 = arith.truncf %282 : vector<16x4xf32> to vector<16x4xbf16>
    %c3_181 = arith.constant 3 : index
    %c0_182 = arith.constant 0 : index
    %c0_183 = arith.constant 0 : index
    %284 = vector.load %arg8[%c3_181, %c0_182, %c0_183] : memref<9x4x8xbf16, #tpu.memory_space<vmem>>, vector<1x4x8xbf16>
    %285 = vector.shape_cast %284 : vector<1x4x8xbf16> to vector<4x8xbf16>
    %cst_184 = arith.constant dense<0.000000e+00> : vector<16x8xf32>
    %286 = tpu.matmul %283, %285, %cst_184 {dimension_numbers = #tpu.dot_dimension_numbers<[1], [0], [0], [1], [0, 0, 1, 1], [], []>} : vector<16x4xbf16>, vector<4x8xbf16>, vector<16x8xf32> -> vector<16x8xf32>
    %287 = arith.addf %279, %286 : vector<16x8xf32>
    %288 = vector.extract_strided_slice %280 {offsets = [0, 1, 0], sizes = [1, 16, 4], strides = [1, 1, 1]} : vector<1x18x4xf32> to vector<1x16x4xf32>
    %289 = vector.shape_cast %288 : vector<1x16x4xf32> to vector<16x4xf32>
    %290 = arith.truncf %289 : vector<16x4xf32> to vector<16x4xbf16>
    %c4_185 = arith.constant 4 : index
    %c0_186 = arith.constant 0 : index
    %c0_187 = arith.constant 0 : index
    %291 = vector.load %arg8[%c4_185, %c0_186, %c0_187] : memref<9x4x8xbf16, #tpu.memory_space<vmem>>, vector<1x4x8xbf16>
    %292 = vector.shape_cast %291 : vector<1x4x8xbf16> to vector<4x8xbf16>
    %cst_188 = arith.constant dense<0.000000e+00> : vector<16x8xf32>
    %293 = tpu.matmul %290, %292, %cst_188 {dimension_numbers = #tpu.dot_dimension_numbers<[1], [0], [0], [1], [0, 0, 1, 1], [], []>} : vector<16x4xbf16>, vector<4x8xbf16>, vector<16x8xf32> -> vector<16x8xf32>
    %294 = arith.addf %287, %293 : vector<16x8xf32>
    %295 = vector.extract_strided_slice %280 {offsets = [0, 2, 0], sizes = [1, 16, 4], strides = [1, 1, 1]} : vector<1x18x4xf32> to vector<1x16x4xf32>
    %296 = vector.shape_cast %295 : vector<1x16x4xf32> to vector<16x4xf32>
    %297 = arith.truncf %296 : vector<16x4xf32> to vector<16x4xbf16>
    %c5_189 = arith.constant 5 : index
    %c0_190 = arith.constant 0 : index
    %c0_191 = arith.constant 0 : index
    %298 = vector.load %arg8[%c5_189, %c0_190, %c0_191] : memref<9x4x8xbf16, #tpu.memory_space<vmem>>, vector<1x4x8xbf16>
    %299 = vector.shape_cast %298 : vector<1x4x8xbf16> to vector<4x8xbf16>
    %cst_192 = arith.constant dense<0.000000e+00> : vector<16x8xf32>
    %300 = tpu.matmul %297, %299, %cst_192 {dimension_numbers = #tpu.dot_dimension_numbers<[1], [0], [0], [1], [0, 0, 1, 1], [], []>} : vector<16x4xbf16>, vector<4x8xbf16>, vector<16x8xf32> -> vector<16x8xf32>
    %301 = arith.addf %294, %300 : vector<16x8xf32>
    %302 = vector.extract_strided_slice %256 {offsets = [1, 0, 0], sizes = [1, 18, 4], strides = [1, 1, 1]} : vector<2x18x4xf32> to vector<1x18x4xf32>
    %303 = vector.extract_strided_slice %302 {offsets = [0, 0, 0], sizes = [1, 16, 4], strides = [1, 1, 1]} : vector<1x18x4xf32> to vector<1x16x4xf32>
    %304 = vector.shape_cast %303 : vector<1x16x4xf32> to vector<16x4xf32>
    %305 = arith.truncf %304 : vector<16x4xf32> to vector<16x4xbf16>
    %c6_193 = arith.constant 6 : index
    %c0_194 = arith.constant 0 : index
    %c0_195 = arith.constant 0 : index
    %306 = vector.load %arg8[%c6_193, %c0_194, %c0_195] : memref<9x4x8xbf16, #tpu.memory_space<vmem>>, vector<1x4x8xbf16>
    %307 = vector.shape_cast %306 : vector<1x4x8xbf16> to vector<4x8xbf16>
    %cst_196 = arith.constant dense<0.000000e+00> : vector<16x8xf32>
    %308 = tpu.matmul %305, %307, %cst_196 {dimension_numbers = #tpu.dot_dimension_numbers<[1], [0], [0], [1], [0, 0, 1, 1], [], []>} : vector<16x4xbf16>, vector<4x8xbf16>, vector<16x8xf32> -> vector<16x8xf32>
    %309 = arith.addf %301, %308 : vector<16x8xf32>
    %310 = vector.extract_strided_slice %302 {offsets = [0, 1, 0], sizes = [1, 16, 4], strides = [1, 1, 1]} : vector<1x18x4xf32> to vector<1x16x4xf32>
    %311 = vector.shape_cast %310 : vector<1x16x4xf32> to vector<16x4xf32>
    %312 = arith.truncf %311 : vector<16x4xf32> to vector<16x4xbf16>
    %c7_197 = arith.constant 7 : index
    %c0_198 = arith.constant 0 : index
    %c0_199 = arith.constant 0 : index
    %313 = vector.load %arg8[%c7_197, %c0_198, %c0_199] : memref<9x4x8xbf16, #tpu.memory_space<vmem>>, vector<1x4x8xbf16>
    %314 = vector.shape_cast %313 : vector<1x4x8xbf16> to vector<4x8xbf16>
    %cst_200 = arith.constant dense<0.000000e+00> : vector<16x8xf32>
    %315 = tpu.matmul %312, %314, %cst_200 {dimension_numbers = #tpu.dot_dimension_numbers<[1], [0], [0], [1], [0, 0, 1, 1], [], []>} : vector<16x4xbf16>, vector<4x8xbf16>, vector<16x8xf32> -> vector<16x8xf32>
    %316 = arith.addf %309, %315 : vector<16x8xf32>
    %317 = vector.extract_strided_slice %302 {offsets = [0, 2, 0], sizes = [1, 16, 4], strides = [1, 1, 1]} : vector<1x18x4xf32> to vector<1x16x4xf32>
    %318 = vector.shape_cast %317 : vector<1x16x4xf32> to vector<16x4xf32>
    %319 = arith.truncf %318 : vector<16x4xf32> to vector<16x4xbf16>
    %c8_201 = arith.constant 8 : index
    %c0_202 = arith.constant 0 : index
    %c0_203 = arith.constant 0 : index
    %320 = vector.load %arg8[%c8_201, %c0_202, %c0_203] : memref<9x4x8xbf16, #tpu.memory_space<vmem>>, vector<1x4x8xbf16>
    %321 = vector.shape_cast %320 : vector<1x4x8xbf16> to vector<4x8xbf16>
    %cst_204 = arith.constant dense<0.000000e+00> : vector<16x8xf32>
    %322 = tpu.matmul %319, %321, %cst_204 {dimension_numbers = #tpu.dot_dimension_numbers<[1], [0], [0], [1], [0, 0, 1, 1], [], []>} : vector<16x4xbf16>, vector<4x8xbf16>, vector<16x8xf32> -> vector<16x8xf32>
    %323 = arith.addf %316, %322 : vector<16x8xf32>
    %c0_205 = arith.constant 0 : index
    %c0_206 = arith.constant 0 : index
    %324 = vector.load %arg9[%c0_205, %c0_206] : memref<1x8xf32, #tpu.memory_space<vmem>>, vector<1x8xf32>
    %325 = vector.broadcast %324 : vector<1x8xf32> to vector<16x8xf32>
    %326 = arith.addf %323, %325 : vector<16x8xf32>
    %cst_207 = arith.constant 0.000000e+00 : f32
    %327 = vector.broadcast %cst_207 : f32 to vector<16x8xf32>
    %328 = arith.maximumf %326, %327 : vector<16x8xf32>
    %329 = vector.shape_cast %328 : vector<16x8xf32> to vector<1x16x8xf32>
    %330 = vector.shape_cast %329 : vector<1x16x8xf32> to vector<16x8xf32>
    %331 = tpu.transpose %330, [1, 0] : vector<16x8xf32> -> vector<8x16xf32>
    %332 = arith.truncf %331 : vector<8x16xf32> to vector<8x16xbf16>
    %c0_208 = arith.constant 0 : index
    %c0_209 = arith.constant 0 : index
    %333 = vector.load %arg10[%c0_208, %c0_209] : memref<16x128xbf16, #tpu.memory_space<vmem>>, vector<16x128xbf16>
    %cst_210 = arith.constant dense<0.000000e+00> : vector<8x128xf32>
    %334 = tpu.matmul %332, %333, %cst_210 {dimension_numbers = #tpu.dot_dimension_numbers<[1], [0], [0], [1], [0, 0, 1, 1], [], []>} : vector<8x16xbf16>, vector<16x128xbf16>, vector<8x128xf32> -> vector<8x128xf32>
    %c0_211 = arith.constant 0 : index
    %c0_212 = arith.constant 0 : index
    %c0_213 = arith.constant 0 : index
    %c0_214 = arith.constant 0 : index
    %335 = vector.load %arg11[%c0_211, %c0_212, %c0_213, %c0_214] : memref<1x8x1x128xf32, #tpu.memory_space<vmem>>, vector<1x8x1x128xf32>
    %336 = vector.shape_cast %335 : vector<1x8x1x128xf32> to vector<8x128xf32>
    %337 = vector.shape_cast %334 : vector<8x128xf32> to vector<1x8x1x128xf32>
    tpu.vector_store %arg11[%c0_211, %c0_212, %c0_213, %c0_214], %337 {strides = array<i32>} : memref<1x8x1x128xf32, #tpu.memory_space<vmem>>, vector<1x8x1x128xf32>,
    return
  }
  func.func @transform_0(%arg0: i32) -> (i32, i32, i32, i32) {
    %c0_i32 = arith.constant 0 : i32
    %c0_i32_0 = arith.constant 0 : i32
    %c0_i32_1 = arith.constant 0 : i32
    %c0_i32_2 = arith.constant 0 : i32
    return %arg0, %c0_i32, %c0_i32_0, %c0_i32_1 : i32, i32, i32, i32
  }
  func.func @transform_1(%arg0: i32) -> (i32, i32, i32) {
    %c0_i32 = arith.constant 0 : i32
    %c0_i32_0 = arith.constant 0 : i32
    %c0_i32_1 = arith.constant 0 : i32
    %c0_i32_2 = arith.constant 0 : i32
    return %c0_i32, %c0_i32_0, %c0_i32_1 : i32, i32, i32
  }
  func.func @transform_2(%arg0: i32) -> (i32, i32) {
    %c0_i32 = arith.constant 0 : i32
    %c0_i32_0 = arith.constant 0 : i32
    %c0_i32_1 = arith.constant 0 : i32
    return %c0_i32, %c0_i32_0 : i32, i32
  }
  func.func @transform_3(%arg0: i32) -> (i32, i32, i32) {
    %c0_i32 = arith.constant 0 : i32
    %c0_i32_0 = arith.constant 0 : i32
    %c0_i32_1 = arith.constant 0 : i32
    %c0_i32_2 = arith.constant 0 : i32
    return %c0_i32, %c0_i32_0, %c0_i32_1 : i32, i32, i32
  }
  func.func @transform_4(%arg0: i32) -> (i32, i32) {
    %c0_i32 = arith.constant 0 : i32
    %c0_i32_0 = arith.constant 0 : i32
    %c0_i32_1 = arith.constant 0 : i32
    return %c0_i32, %c0_i32_0 : i32, i32
  }
  func.func @transform_5(%arg0: i32) -> (i32, i32, i32) {
    %c0_i32 = arith.constant 0 : i32
    %c0_i32_0 = arith.constant 0 : i32
    %c0_i32_1 = arith.constant 0 : i32
    %c0_i32_2 = arith.constant 0 : i32
    return %c0_i32, %c0_i32_0, %c0_i32_1 : i32, i32, i32
  }
  func.func @transform_6(%arg0: i32) -> (i32, i32) {
    %c0_i32 = arith.constant 0 : i32
    %c0_i32_0 = arith.constant 0 : i32
    %c0_i32_1 = arith.constant 0 : i32
    return %c0_i32, %c0_i32_0 : i32, i32
  }
  func.func @transform_7(%arg0: i32) -> (i32, i32, i32) {
    %c0_i32 = arith.constant 0 : i32
    %c0_i32_0 = arith.constant 0 : i32
    %c0_i32_1 = arith.constant 0 : i32
    %c0_i32_2 = arith.constant 0 : i32
    return %c0_i32, %c0_i32_0, %c0_i32_1 : i32, i32, i32
  }
  func.func @transform_8(%arg0: i32) -> (i32, i32) {
    %c0_i32 = arith.constant 0 : i32
    %c0_i32_0 = arith.constant 0 : i32
    %c0_i32_1 = arith.constant 0 : i32
    return %c0_i32, %c0_i32_0 : i32, i32
  }
  func.func @transform_9(%arg0: i32) -> (i32, i32) {
    %c0_i32 = arith.constant 0 : i32
    %c0_i32_0 = arith.constant 0 : i32
    %c0_i32_1 = arith.constant 0 : i32
    return %c0_i32, %c0_i32_0 : i32, i32
  }
  func.func @transform_10(%arg0: i32) -> (i32, i32, i32, i32) {
    %c0_i32 = arith.constant 0 : i32
    %c0_i32_0 = arith.constant 0 : i32
    %c0_i32_1 = arith.constant 0 : i32
    %c0_i32_2 = arith.constant 0 : i32
    return %arg0, %c0_i32, %c0_i32_0, %c0_i32_1 : i32, i32, i32, i32
  }
}

</mosaic_0001>

<llo_original>
// kernel: tpu_custom_call.1
$region0: #{tpu_custom_call.1}
  #allocation0 [shape = 'u32[]', space=smem, size = 0x4, offset = 0x4, fixed_abs, tag = 'smem constant byte address 0x4 - core index']
  #allocation1 [shape = 'u32[144,128]{1,0:T(1,128)}', space=vmem, size = 0x12000, scoped, tag = 'internal scratch']
  #allocation2 [shape = 'f32[10,18,8]{2,1,0:T(8,128)}', space=vmem, size = 0x1e000, scoped, tag = 'scratch operand']
  #allocation3 [shape = 'f32[6,18,8]{2,1,0:T(8,128)}', space=vmem, size = 0x12000, scoped, tag = 'scratch operand']
  #allocation4 [shape = 'f32[4,18,4]{2,1,0:T(8,128)}', space=vmem, size = 0xc000, scoped, tag = 'scratch operand']
  %s0 = inlined_call_operand.vmem [shape: f32[2,18,18,16], index: 0, kind: input, shape index: {}]
  %s1 = inlined_call_operand.vmem [shape: bf16[9,16,8], index: 1, kind: input, shape index: {}]
  %s2 = inlined_call_operand.vmem [shape: f32[1,8], index: 2, kind: input, shape index: {}]
  %s3 = inlined_call_operand.vmem [shape: bf16[9,8,8], index: 3, kind: input, shape index: {}]
  %s4 = inlined_call_operand.vmem [shape: f32[1,8], index: 4, kind: input, shape index: {}]
  %s5 = inlined_call_operand.vmem [shape: bf16[9,8,4], index: 5, kind: input, shape index: {}]
  %s6 = inlined_call_operand.vmem [shape: f32[1,4], index: 6, kind: input, shape index: {}]
  %s7 = inlined_call_operand.vmem [shape: bf16[9,4,8], index: 7, kind: input, shape index: {}]
  %s8 = inlined_call_operand.vmem [shape: f32[1,8], index: 8, kind: input, shape index: {}]
  %s9 = inlined_call_operand.vmem [shape: bf16[16,128], index: 9, kind: input, shape index: {}]
  %s10 = inlined_call_operand.hbm [shape: f32[2,8,1,128], index: 10, kind: output, shape index: {}]
  %s11 = sld [smem:[#allocation0]]
  $region73: #{tpu_custom_call.1} parent=0
    _
  %s13 = ssub.s32 1, %s11
  %s14 = scalar_select 0, %s13, %s11
  $region1: #{tpu_custom_call.1} parent=0
    #allocation5 [shape = 'u8[8192]{0}', space=vmem, size = 0x2000, scoped, tag = 'output window, operand 0']
    #allocation6 [shape = 's32[2]{0}', space=sflag, size = 0x8, scoped, tag = 'scoped memory for tpu_custom_call.1']
    %15 = vsyncpa [#allocation6], 0
    %s16 = scalar_lea.sflag [#allocation6], 1
    %17 = vsyncpa %s16, 0
    loop: start=0, step=1, limit=4
    $region2: #{tpu_custom_call.1} parent=1 // loop_pre_header
      _
    $region3: #{tpu_custom_call.1} parent=1 // loop_header
      %s19 = sphi 0, %s23
      %p20 = scmp.ge.s32.totalorder %s19, 4
      %s29 = sphi 0, %s31
      %s32 = sphi 0, %s29
      %s33 = sphi 0, %s32
      %s49 = sphi 0, %s33
      %s53 = sphi 0, %s53
      %s55 = sphi 0, %s53
      %s56 = sphi 0, %s55
      %s70 = sphi 0, %s56
      %s74 = sphi 0, %s74
      %s76 = sphi 0, %s74
      %s77 = sphi 0, %s76
      %s91 = sphi 0, %s77
      %s95 = sphi 0, %s95
      %s97 = sphi 0, %s95
      %s98 = sphi 0, %s97
      %s112 = sphi 0, %s98
      %s116 = sphi 0, %s116
      %s118 = sphi 0, %s116
      %s119 = sphi 0, %s118
      %s133 = sphi 0, %s119
      %s137 = sphi 0, %s137
      %s139 = sphi 0, %s137
      %s140 = sphi 0, %s139
      %s154 = sphi 0, %s140
      %s158 = sphi 0, %s158
      %s160 = sphi 0, %s158
      %s161 = sphi 0, %s160
      %s175 = sphi 0, %s161
      %s179 = sphi 0, %s179
      %s181 = sphi 0, %s179
      %s182 = sphi 0, %s181
      %s196 = sphi 0, %s182
      %s200 = sphi 0, %s200
      %s202 = sphi 0, %s200
      %s203 = sphi 0, %s202
      %s217 = sphi 0, %s203
      %s221 = sphi 0, %s221
      %s223 = sphi 0, %s221
      %s224 = sphi 0, %s223
      %s238 = sphi 0, %s224
      %s244 = sphi 0, %s246
      %s247 = sphi 0, %s244
      %s248 = sphi 0, %s247
      %s264 = sphi 0, %s248
    $region4: #{tpu_custom_call.1} parent=1 // loop_header_branch
      %22 = sbr.rel (%p20) target = $region8
    $region5: #{tpu_custom_call.1} parent=1 // loop_body
      %s24 = ssub.s32 %s19, 1
      %s25 = ssub.s32 %s19, 2
      %s26 = sadd.s32 %s19, 1
      %s27 = ssub.s32 %s19, %s26
      %p28 = scmp.eq.s32.totalorder %s27, 0
      %s30 = sadd.s32 %s29, 1
      %s31 = scalar_select %p28, %s29, %s30
      %p34 = pneg %p28
      %p35 = scmp.eq.s32.totalorder %s19, 1
      %p36 = por %p34, %p35
      %p37 = scmp.ne.s32.totalorder %s29, %s32
      %p38 = scmp.eq.s32.totalorder %s19, 0
      %p39 = por %p37, %p38
      %p40 = scmp.ne.s32.totalorder %s29, %s32
      %p41 = scmp.eq.s32.totalorder %s24, 1
      %p42 = por %p40, %p41
      %p43 = scmp.ne.s32.totalorder %s32, %s33
      %p44 = scmp.eq.s32.totalorder %s24, 0
      %p45 = por %p43, %p44
      %p46 = scmp.ne.s32.totalorder %s32, %s33
      %p47 = scmp.eq.s32.totalorder %s25, 1
      %p48 = por %p46, %p47
      %p50 = scmp.ne.s32.totalorder %s33, %s49
      %p51 = scmp.eq.s32.totalorder %s25, 0
      %p52 = por %p50, %p51
      %s54 = sadd.s32 %s53, 1
      %p57 = scmp.eq.s32.totalorder %s19, 1
      %p58 = scmp.ne.s32.totalorder %s53, %s55
      %p59 = scmp.eq.s32.totalorder %s19, 0
      %p60 = por %p58, %p59
      %p61 = scmp.ne.s32.totalorder %s53, %s55
      %p62 = scmp.eq.s32.totalorder %s24, 1
      %p63 = por %p61, %p62
      %p64 = scmp.ne.s32.totalorder %s55, %s56
      %p65 = scmp.eq.s32.totalorder %s24, 0
      %p66 = por %p64, %p65
      %p67 = scmp.ne.s32.totalorder %s55, %s56
      %p68 = scmp.eq.s32.totalorder %s25, 1
      %p69 = por %p67, %p68
      %p71 = scmp.ne.s32.totalorder %s56, %s70
      %p72 = scmp.eq.s32.totalorder %s25, 0
      %p73 = por %p71, %p72
      %s75 = sadd.s32 %s74, 1
      %p78 = scmp.eq.s32.totalorder %s19, 1
      %p79 = scmp.ne.s32.totalorder %s74, %s76
      %p80 = scmp.eq.s32.totalorder %s19, 0
      %p81 = por %p79, %p80
      %p82 = scmp.ne.s32.totalorder %s74, %s76
      %p83 = scmp.eq.s32.totalorder %s24, 1
      %p84 = por %p82, %p83
      %p85 = scmp.ne.s32.totalorder %s76, %s77
      %p86 = scmp.eq.s32.totalorder %s24, 0
      %p87 = por %p85, %p86
      %p88 = scmp.ne.s32.totalorder %s76, %s77
      %p89 = scmp.eq.s32.totalorder %s25, 1
      %p90 = por %p88, %p89
      %p92 = scmp.ne.s32.totalorder %s77, %s91
      %p93 = scmp.eq.s32.totalorder %s25, 0
      %p94 = por %p92, %p93
      %s96 = sadd.s32 %s95, 1
      %p99 = scmp.eq.s32.totalorder %s19, 1
      %p100 = scmp.ne.s32.totalorder %s95, %s97
      %p101 = scmp.eq.s32.totalorder %s19, 0
      %p102 = por %p100, %p101
      %p103 = scmp.ne.s32.totalorder %s95, %s97
      %p104 = scmp.eq.s32.totalorder %s24, 1
      %p105 = por %p103, %p104
      %p106 = scmp.ne.s32.totalorder %s97, %s98
      %p107 = scmp.eq.s32.totalorder %s24, 0
      %p108 = por %p106, %p107
      %p109 = scmp.ne.s32.totalorder %s97, %s98
      %p110 = scmp.eq.s32.totalorder %s25, 1
      %p111 = por %p109, %p110
      %p113 = scmp.ne.s32.totalorder %s98, %s112
      %p114 = scmp.eq.s32.totalorder %s25, 0
      %p115 = por %p113, %p114
      %s117 = sadd.s32 %s116, 1
      %p120 = scmp.eq.s32.totalorder %s19, 1
      %p121 = scmp.ne.s32.totalorder %s116, %s118
      %p122 = scmp.eq.s32.totalorder %s19, 0
      %p123 = por %p121, %p122
      %p124 = scmp.ne.s32.totalorder %s116, %s118
      %p125 = scmp.eq.s32.totalorder %s24, 1
      %p126 = por %p124, %p125
      %p127 = scmp.ne.s32.totalorder %s118, %s119
      %p128 = scmp.eq.s32.totalorder %s24, 0
      %p129 = por %p127, %p128
      %p130 = scmp.ne.s32.totalorder %s118, %s119
      %p131 = scmp.eq.s32.totalorder %s25, 1
      %p132 = por %p130, %p131
      %p134 = scmp.ne.s32.totalorder %s119, %s133
      %p135 = scmp.eq.s32.totalorder %s25, 0
      %p136 = por %p134, %p135
      %s138 = sadd.s32 %s137, 1
      %p141 = scmp.eq.s32.totalorder %s19, 1
      %p142 = scmp.ne.s32.totalorder %s137, %s139
      %p143 = scmp.eq.s32.totalorder %s19, 0
      %p144 = por %p142, %p143
      %p145 = scmp.ne.s32.totalorder %s137, %s139
      %p146 = scmp.eq.s32.totalorder %s24, 1
      %p147 = por %p145, %p146
      %p148 = scmp.ne.s32.totalorder %s139, %s140
      %p149 = scmp.eq.s32.totalorder %s24, 0
      %p150 = por %p148, %p149
      %p151 = scmp.ne.s32.totalorder %s139, %s140
      %p152 = scmp.eq.s32.totalorder %s25, 1
      %p153 = por %p151, %p152
      %p155 = scmp.ne.s32.totalorder %s140, %s154
      %p156 = scmp.eq.s32.totalorder %s25, 0
      %p157 = por %p155, %p156
      %s159 = sadd.s32 %s158, 1
      %p162 = scmp.eq.s32.totalorder %s19, 1
      %p163 = scmp.ne.s32.totalorder %s158, %s160
      %p164 = scmp.eq.s32.totalorder %s19, 0
      %p165 = por %p163, %p164
      %p166 = scmp.ne.s32.totalorder %s158, %s160
      %p167 = scmp.eq.s32.totalorder %s24, 1
      %p168 = por %p166, %p167
      %p169 = scmp.ne.s32.totalorder %s160, %s161
      %p170 = scmp.eq.s32.totalorder %s24, 0
      %p171 = por %p169, %p170
      %p172 = scmp.ne.s32.totalorder %s160, %s161
      %p173 = scmp.eq.s32.totalorder %s25, 1
      %p174 = por %p172, %p173
      %p176 = scmp.ne.s32.totalorder %s161, %s175
      %p177 = scmp.eq.s32.totalorder %s25, 0
      %p178 = por %p176, %p177
      %s180 = sadd.s32 %s179, 1
      %p183 = scmp.eq.s32.totalorder %s19, 1
      %p184 = scmp.ne.s32.totalorder %s179, %s181
      %p185 = scmp.eq.s32.totalorder %s19, 0
      %p186 = por %p184, %p185
      %p187 = scmp.ne.s32.totalorder %s179, %s181
      %p188 = scmp.eq.s32.totalorder %s24, 1
      %p189 = por %p187, %p188
      %p190 = scmp.ne.s32.totalorder %s181, %s182
      %p191 = scmp.eq.s32.totalorder %s24, 0
      %p192 = por %p190, %p191
      %p193 = scmp.ne.s32.totalorder %s181, %s182
      %p194 = scmp.eq.s32.totalorder %s25, 1
      %p195 = por %p193, %p194
      %p197 = scmp.ne.s32.totalorder %s182, %s196
      %p198 = scmp.eq.s32.totalorder %s25, 0
      %p199 = por %p197, %p198
      %s201 = sadd.s32 %s200, 1
      %p204 = scmp.eq.s32.totalorder %s19, 1
      %p205 = scmp.ne.s32.totalorder %s200, %s202
      %p206 = scmp.eq.s32.totalorder %s19, 0
      %p207 = por %p205, %p206
      %p208 = scmp.ne.s32.totalorder %s200, %s202
      %p209 = scmp.eq.s32.totalorder %s24, 1
      %p210 = por %p208, %p209
      %p211 = scmp.ne.s32.totalorder %s202, %s203
      %p212 = scmp.eq.s32.totalorder %s24, 0
      %p213 = por %p211, %p212
      %p214 = scmp.ne.s32.totalorder %s202, %s203
      %p215 = scmp.eq.s32.totalorder %s25, 1
      %p216 = por %p214, %p215
      %p218 = scmp.ne.s32.totalorder %s203, %s217
      %p219 = scmp.eq.s32.totalorder %s25, 0
      %p220 = por %p218, %p219
      %s222 = sadd.s32 %s221, 1
      %p225 = scmp.eq.s32.totalorder %s19, 1
      %p226 = scmp.ne.s32.totalorder %s221, %s223
      %p227 = scmp.eq.s32.totalorder %s19, 0
      %p228 = por %p226, %p227
      %p229 = scmp.ne.s32.totalorder %s221, %s223
      %p230 = scmp.eq.s32.totalorder %s24, 1
      %p231 = por %p229, %p230
      %p232 = scmp.ne.s32.totalorder %s223, %s224
      %p233 = scmp.eq.s32.totalorder %s24, 0
      %p234 = por %p232, %p233
      %p235 = scmp.ne.s32.totalorder %s223, %s224
      %p236 = scmp.eq.s32.totalorder %s25, 1
      %p237 = por %p235, %p236
      %p239 = scmp.ne.s32.totalorder %s224, %s238
      %p240 = scmp.eq.s32.totalorder %s25, 0
      %p241 = por %p239, %p240
      %s242 = ssub.s32 %s19, %s26
      %p243 = scmp.eq.s32.totalorder %s242, 0
      %s245 = sadd.s32 %s244, 1
      %s246 = scalar_select %p243, %s244, %s245
      %p249 = pneg %p243
      %p250 = scmp.eq.s32.totalorder %s19, 1
      %p251 = por %p249, %p250
      %p252 = scmp.ne.s32.totalorder %s244, %s247
      %p253 = scmp.eq.s32.totalorder %s19, 0
      %p254 = por %p252, %p253
      %p255 = scmp.ne.s32.totalorder %s244, %s247
      %p256 = scmp.eq.s32.totalorder %s24, 1
      %p257 = por %p255, %p256
      %p258 = scmp.ne.s32.totalorder %s247, %s248
      %p259 = scmp.eq.s32.totalorder %s24, 0
      %p260 = por %p258, %p259
      %p261 = scmp.ne.s32.totalorder %s247, %s248
      %p262 = scmp.eq.s32.totalorder %s25, 1
      %p263 = por %p261, %p262
      %p265 = scmp.ne.s32.totalorder %s248, %s264
      %p266 = scmp.eq.s32.totalorder %s25, 0
      %p267 = por %p265, %p266
      %p268 = scmp.le.s32.totalorder 1, %s19
      %p269 = scmp.lt.s32.totalorder %s19, 3
      %p270 = pnand %p268, %p269
      %p271 = pneg %p270
      // Predicated region
      $region9: #{tpu_custom_call.1} parent=5 // pred_check
        _
      $region10: #{tpu_custom_call.1} parent=5 // pred_check_branch
        %273 = sbr.rel (%p270) target = $region12
      $region11: #{tpu_custom_call.1} parent=5 // pred_region
        %s274 = ssub.s32 %s19, 1
        // Predicated region
        $region13: #{tpu_custom_call.1} parent=11 // pred_check
          %p275 = pneg %p66
        $region14: #{tpu_custom_call.1} parent=11 // pred_check_branch
          %277 = sbr.rel (%p275) target = $region16
        $region15: #{tpu_custom_call.1} parent=11 // pred_region
          _
        $region16: #{tpu_custom_call.1} parent=11 // pred_fallthru
          _
        // Predicated region
        $region17: #{tpu_custom_call.1} parent=11 // pred_check
          %p278 = pneg %p87
        $region18: #{tpu_custom_call.1} parent=11 // pred_check_branch
          %280 = sbr.rel (%p278) target = $region20
        $region19: #{tpu_custom_call.1} parent=11 // pred_region
          _
        $region20: #{tpu_custom_call.1} parent=11 // pred_fallthru
          _
        // Predicated region
        $region21: #{tpu_custom_call.1} parent=11 // pred_check
          %p281 = pneg %p108
        $region22: #{tpu_custom_call.1} parent=11 // pred_check_branch
          %283 = sbr.rel (%p281) target = $region24
        $region23: #{tpu_custom_call.1} parent=11 // pred_region
          _
        $region24: #{tpu_custom_call.1} parent=11 // pred_fallthru
          _
        // Predicated region
        $region25: #{tpu_custom_call.1} parent=11 // pred_check
          %p284 = pneg %p129
        $region26: #{tpu_custom_call.1} parent=11 // pred_check_branch
          %286 = sbr.rel (%p284) target = $region28
        $region27: #{tpu_custom_call.1} parent=11 // pred_region
          _
        $region28: #{tpu_custom_call.1} parent=11 // pred_fallthru
          _
        // Predicated region
        $region29: #{tpu_custom_call.1} parent=11 // pred_check
          %p287 = pneg %p150
        $region30: #{tpu_custom_call.1} parent=11 // pred_check_branch
          %289 = sbr.rel (%p287) target = $region32
        $region31: #{tpu_custom_call.1} parent=11 // pred_region
          _
        $region32: #{tpu_custom_call.1} parent=11 // pred_fallthru
          _
        // Predicated region
        $region33: #{tpu_custom_call.1} parent=11 // pred_check
          %p290 = pneg %p171
        $region34: #{tpu_custom_call.1} parent=11 // pred_check_branch
          %292 = sbr.rel (%p290) target = $region36
        $region35: #{tpu_custom_call.1} parent=11 // pred_region
          _
        $region36: #{tpu_custom_call.1} parent=11 // pred_fallthru
          _
        // Predicated region
        $region37: #{tpu_custom_call.1} parent=11 // pred_check
          %p293 = pneg %p192
        $region38: #{tpu_custom_call.1} parent=11 // pred_check_branch
          %295 = sbr.rel (%p293) target = $region40
        $region39: #{tpu_custom_call.1} parent=11 // pred_region
          _
        $region40: #{tpu_custom_call.1} parent=11 // pred_fallthru
          _
        // Predicated region
        $region41: #{tpu_custom_call.1} parent=11 // pred_check
          %p296 = pneg %p213
        $region42: #{tpu_custom_call.1} parent=11 // pred_check_branch
          %298 = sbr.rel (%p296) target = $region44
        $region43: #{tpu_custom_call.1} parent=11 // pred_region
          _
        $region44: #{tpu_custom_call.1} parent=11 // pred_fallthru
          _
        // Predicated region
        $region45: #{tpu_custom_call.1} parent=11 // pred_check
          %p299 = pneg %p234
        $region46: #{tpu_custom_call.1} parent=11 // pred_check_branch
          %301 = sbr.rel (%p299) target = $region48
        $region47: #{tpu_custom_call.1} parent=11 // pred_region
          _
        $region48: #{tpu_custom_call.1} parent=11 // pred_fallthru
          _
      $region12: #{tpu_custom_call.1} parent=5 // pred_fallthru
        _
      %p302 = scmp.lt.s32.totalorder %s19, 2
      // Predicated region
      $region49: #{tpu_custom_call.1} parent=5 // pred_check
        %p303 = pneg %p302
      $region50: #{tpu_custom_call.1} parent=5 // pred_check_branch
        %305 = sbr.rel (%p303) target = $region52
      $region51: #{tpu_custom_call.1} parent=5 // pred_region
        // Predicated region
        $region53: #{tpu_custom_call.1} parent=51 // pred_check
          %p306 = pneg %p39
        $region54: #{tpu_custom_call.1} parent=51 // pred_check_branch
          %308 = sbr.rel (%p306) target = $region56
        $region55: #{tpu_custom_call.1} parent=51 // pred_region
          %p309 = scmp.lt.s32.totalorder %s19, 1
          %s310 = scalar_select %p309, %s19, 1
          %s311 = smul.addr %s310, 54
          %s312 = smul.addr %s311, 8
          %s313 = scalar_lea.vmem %s0, %s312
        $region56: #{tpu_custom_call.1} parent=51 // pred_fallthru
          _
      $region52: #{tpu_custom_call.1} parent=5 // pred_fallthru
        _
      %p314 = scmp.le.s32.totalorder 1, %s19
      %p315 = scmp.lt.s32.totalorder %s19, 3
      %p316 = pnand %p314, %p315
      %p317 = pneg %p316
      // Predicated region
      $region57: #{tpu_custom_call.1} parent=5 // pred_check
        _
      $region58: #{tpu_custom_call.1} parent=5 // pred_check_branch
        %319 = sbr.rel (%p316) target = $region60
      $region59: #{tpu_custom_call.1} parent=5 // pred_region
        %s320 = ssub.s32 %s19, 1
        %p321 = scmp.lt.s32.totalorder %s24, 1
        %s322 = scalar_select %p321, %s24, 1
        %s323 = smul.addr %s322, 54
        %s324 = smul.addr %s323, 8
        %s325 = scalar_lea.vmem %s0, %s324
        %p326 = pneg %p45
        %p327 = pneg %p42
        %p328 = pneg %p66
        %p329 = pneg %p63
        %p330 = pneg %p87
        %p331 = pneg %p84
        %p332 = pneg %p108
        %p333 = pneg %p105
        %p334 = pneg %p129
        %p335 = pneg %p126
        %p336 = pneg %p150
        %p337 = pneg %p147
        %p338 = pneg %p171
        %p339 = pneg %p168
        %p340 = pneg %p192
        %p341 = pneg %p189
        %p342 = pneg %p213
        %p343 = pneg %p210
        %p344 = pneg %p234
        %p345 = pneg %p231
        %p346 = pneg %p260
        %p347 = pneg %p257
        %s348 = sand.u32 %s247, 1
        %s349 = scalar_lea.sflag [#allocation6], %s348
        %s350 = sand.u32 %s247, 1
        %s351 = smul.addr %s350, 8
        %s352 = scalar_lea.vmem [#allocation5], %s351
        %p353 = scmp.lt.s32.totalorder %s24, 1
        %s354 = scalar_select %p353, %s24, 1
        %s355 = smul.addr %s354, 54
        %s356 = smul.addr %s355, 8
        %s357 = scalar_lea.vmem %s0, %s356
        %v359 = vld [vmem:[%s357] sm:$0xff]
        %v360 = vld [vmem:[%s357 + $0x8] sm:$0xff]
        %v361 = vld [vmem:[%s357 + $0x10] sm:$0x3]
        %v362 = vld [vmem:[%s357 + $0x18] sm:$0xff]
        %v363 = vld [vmem:[%s357 + $0x20] sm:$0xff]
        %v364 = vld [vmem:[%s357 + $0x28] sm:$0x3]
        %v365 = vld [vmem:[%s357 + $0x30] sm:$0xff]
        %v366 = vld [vmem:[%s357 + $0x38] sm:$0xff]
        %v367 = vld [vmem:[%s357 + $0x40] sm:$0x3]
        %v368 = vld [vmem:[%s357 + $0x48] sm:$0xff]
        %v369 = vld [vmem:[%s357 + $0x50] sm:$0xff]
        %v370 = vld [vmem:[%s357 + $0x58] sm:$0x3]
        %v371 = vld [vmem:[%s357 + $0x60] sm:$0xff]
        %v372 = vld [vmem:[%s357 + $0x68] sm:$0xff]
        %v373 = vld [vmem:[%s357 + $0x70] sm:$0x3]
        %v374 = vld [vmem:[%s357 + $0x78] sm:$0xff]
        %v375 = vld [vmem:[%s357 + $0x80] sm:$0xff]
        %v376 = vld [vmem:[%s357 + $0x88] sm:$0x3]
        %v377 = vld [vmem:[%s357 + $0x90] sm:$0xff]
        %v378 = vld [vmem:[%s357 + $0x98] sm:$0xff]
        %v379 = vld [vmem:[%s357 + $0xa0] sm:$0x3]
        %v380 = vld [vmem:[%s357 + $0xa8] sm:$0xff]
        %v381 = vld [vmem:[%s357 + $0xb0] sm:$0xff]
        %v382 = vld [vmem:[%s357 + $0xb8] sm:$0x3]
        %v383 = vld [vmem:[%s357 + $0xc0] sm:$0xff]
        %v384 = vld [vmem:[%s357 + $0xc8] sm:$0xff]
        %v385 = vld [vmem:[%s357 + $0xd0] sm:$0x3]
        %v386 = vld [vmem:[%s357 + $0xd8] sm:$0xff]
        %v387 = vld [vmem:[%s357 + $0xe0] sm:$0xff]
        %v388 = vld [vmem:[%s357 + $0xe8] sm:$0x3]
        %v389 = vld [vmem:[%s357 + $0xf0] sm:$0xff]
        %v390 = vld [vmem:[%s357 + $0xf8] sm:$0xff]
        %v391 = vld [vmem:[%s357 + $0x100] sm:$0x3]
        %v392 = vld [vmem:[%s357 + $0x108] sm:$0xff]
        %v393 = vld [vmem:[%s357 + $0x110] sm:$0xff]
        %v394 = vld [vmem:[%s357 + $0x118] sm:$0x3]
        %v395 = vld [vmem:[%s357 + $0x120] sm:$0xff]
        %v396 = vld [vmem:[%s357 + $0x128] sm:$0xff]
        %v397 = vld [vmem:[%s357 + $0x130] sm:$0x3]
        %v398 = vld [vmem:[%s357 + $0x138] sm:$0xff]
        %v399 = vld [vmem:[%s357 + $0x140] sm:$0xff]
        %v400 = vld [vmem:[%s357 + $0x148] sm:$0x3]
        %v401 = vld [vmem:[%s357 + $0x150] sm:$0xff]
        %v402 = vld [vmem:[%s357 + $0x158] sm:$0xff]
        %v403 = vld [vmem:[%s357 + $0x160] sm:$0x3]
        %v404 = vld [vmem:[%s357 + $0x168] sm:$0xff]
        %v405 = vld [vmem:[%s357 + $0x170] sm:$0xff]
        %v406 = vld [vmem:[%s357 + $0x178] sm:$0x3]
        %v407 = vld [vmem:[%s357 + $0x180] sm:$0xff]
        %v408 = vld [vmem:[%s357 + $0x188] sm:$0xff]
        %v409 = vld [vmem:[%s357 + $0x190] sm:$0x3]
        %v410 = vpack.c.bf16 %v360, %v359
        %v411 = vpack.c.bf16 %v366, %v365
        %v412 = vpack.c.bf16 %v372, %v371
        %v413 = vpack.c.bf16 %v378, %v377
        %v414 = vpack.c.bf16 %v384, %v383
        %v415 = vpack.c.bf16 %v390, %v389
        %v416 = vpack.c.bf16 %v396, %v395
        %v417 = vpack.c.bf16 %v402, %v401
        %v418 = vld [vmem:[%s1] sm:$0xf]
        %v419 = vld [vmem:[%s1 + $0x4] sm:$0xf]
        %vm444 = vcmask 1046528
        %v445 = vrot.slane %v359, 1
        %v446 = vrot.slane %v360, 1
        %v447 = vsel %vm444, %v445, %v446
        %v448 = vrot.slane %v361, 1
        %v449 = vsel %vm444, %v446, %v448
        %v450 = vrot.slane %v365, 1
        %v451 = vrot.slane %v366, 1
        %v452 = vsel %vm444, %v450, %v451
        %v453 = vrot.slane %v367, 1
        %v454 = vsel %vm444, %v451, %v453
        %v455 = vrot.slane %v371, 1
        %v456 = vrot.slane %v372, 1
        %v457 = vsel %vm444, %v455, %v456
        %v458 = vrot.slane %v373, 1
        %v459 = vsel %vm444, %v456, %v458
        %v460 = vrot.slane %v377, 1
        %v461 = vrot.slane %v378, 1
        %v462 = vsel %vm444, %v460, %v461
        %v463 = vrot.slane %v379, 1
        %v464 = vsel %vm444, %v461, %v463
        %v465 = vrot.slane %v383, 1
        %v466 = vrot.slane %v384, 1
        %v467 = vsel %vm444, %v465, %v466
        %v468 = vrot.slane %v385, 1
        %v469 = vsel %vm444, %v466, %v468
        %v470 = vrot.slane %v389, 1
        %v471 = vrot.slane %v390, 1
        %v472 = vsel %vm444, %v470, %v471
        %v473 = vrot.slane %v391, 1
        %v474 = vsel %vm444, %v471, %v473
        %v475 = vrot.slane %v395, 1
        %v476 = vrot.slane %v396, 1
        %v477 = vsel %vm444, %v475, %v476
        %v478 = vrot.slane %v397, 1
        %v479 = vsel %vm444, %v476, %v478
        %v480 = vrot.slane %v401, 1
        %v481 = vrot.slane %v402, 1
        %v482 = vsel %vm444, %v480, %v481
        %v483 = vrot.slane %v403, 1
        %v484 = vsel %vm444, %v481, %v483
        %v501 = vpack.c.bf16 %v449, %v447
        %v502 = vpack.c.bf16 %v454, %v452
        %v503 = vpack.c.bf16 %v459, %v457
        %v504 = vpack.c.bf16 %v464, %v462
        %v505 = vpack.c.bf16 %v469, %v467
        %v506 = vpack.c.bf16 %v474, %v472
        %v507 = vpack.c.bf16 %v479, %v477
        %v508 = vpack.c.bf16 %v484, %v482
        %s509 = scalar_lea.vmem %s1, 8
        %v510 = vld [vmem:[%s509] sm:$0xf]
        %v511 = vld [vmem:[%s509 + $0x4] sm:$0xf]
        %v514 = vunpack.c.l.b16 %v510
        %v515 = vunpack.c.l.b16 %v511
        %v516 = vpack.c.b16 %v515, %v514
        %vm518 = vcmask 130048
        %v520 = vsel %vm518, %v501, 0
        %v523 = vsel %vm518, %v502, 0
        %v526 = vsel %vm518, %v503, 0
        %v529 = vsel %vm518, %v504, 0
        %v532 = vsel %vm518, %v505, 0
        %v535 = vsel %vm518, %v506, 0
        %v538 = vsel %vm518, %v507, 0
        %v541 = vsel %vm518, %v508, 0
        %543 = vmatprep.subr.bf16.mxu0 0
        %544 = vmatpush1.bf16.msra.mxu0 %v516
        %545 = vmatprep.subr.bf16.mxu0 0
        %546 = vmatpush1.bf16.msra.mxu0 0
        %547 = vmatprep.subr.bf16.mxu0 0
        %548 = vmatpush1.bf16.msra.mxu0 0
        %549 = vmatprep.subr.bf16.mxu0 0
        %550 = vmatpush1.bf16.msra.mxu0 0
        %551 = vmatprep.subr.bf16.mxu0 0
        %552 = vmatpush1.bf16.msra.mxu0 0
        %553 = vmatprep.subr.bf16.mxu0 0
        %554 = vmatpush1.bf16.msra.mxu0 0
        %555 = vmatprep.subr.bf16.mxu0 0
        %556 = vmatpush1.bf16.msra.mxu0 0
        %557 = vmatprep.subr.bf16.mxu0 0
        %558 = vmatpush1.bf16.msra.mxu0 0
        %559 = vmatprep.subr.bf16.mxu0 0
        %560 = vmatpush1.bf16.msra.mxu0 0
        %561 = vmatprep.subr.bf16.mxu0 0
        %562 = vmatpush1.bf16.msra.mxu0 0
        %563 = vmatprep.subr.bf16.mxu0 0
        %564 = vmatpush1.bf16.msra.mxu0 0
        %565 = vmatprep.subr.bf16.mxu0 0
        %566 = vmatpush1.bf16.msra.mxu0 0
        %567 = vmatprep.subr.bf16.mxu0 0
        %568 = vmatpush1.bf16.msra.mxu0 0
        %569 = vmatprep.subr.bf16.mxu0 0
        %570 = vmatpush1.bf16.msra.mxu0 0
        %571 = vmatprep.subr.bf16.mxu0 0
        %572 = vmatpush1.bf16.msra.mxu0 0
        %573 = vmatprep.subr.bf16.mxu0 0
        %574 = vmatpush1.bf16.msra.mxu0 0
        %575 = vmatprep.mubr.bf16.mxu0 0
        %576 = vmatmul.mubr.bf16.gmra.mrb[0].mxu0 %v520
        %v577 = vpop.f32.mrb[0].mxu0
        %v578 = vadd.f32 0.0, %v577
        %v579 = vpop.f32.mrb[0].mxu0
        %v580 = vpop.f32.mrb[0].mxu0
        %v581 = vadd.f32 0.0, %v580
        %v582 = vpop.f32.mrb[0].mxu0
        %583 = vmatprep.mubr.bf16.mxu0 0
        %584 = vmatmul.mubr.bf16.gmra.mrb[0].mxu0 %v523
        %v585 = vpop.f32.mrb[0].mxu0
        %v586 = vadd.f32 0.0, %v585
        %v587 = vpop.f32.mrb[0].mxu0
        %v588 = vpop.f32.mrb[0].mxu0
        %v589 = vadd.f32 0.0, %v588
        %v590 = vpop.f32.mrb[0].mxu0
        %591 = vmatprep.mubr.bf16.mxu0 0
        %592 = vmatmul.mubr.bf16.gmra.mrb[0].mxu0 %v526
        %v593 = vpop.f32.mrb[0].mxu0
        %v594 = vadd.f32 0.0, %v593
        %v595 = vpop.f32.mrb[0].mxu0
        %v596 = vpop.f32.mrb[0].mxu0
        %v597 = vadd.f32 0.0, %v596
        %v598 = vpop.f32.mrb[0].mxu0
        %599 = vmatprep.mubr.bf16.mxu0 0
        %600 = vmatmul.mubr.bf16.gmra.mrb[0].mxu0 %v529
        %v601 = vpop.f32.mrb[0].mxu0
        %v602 = vadd.f32 0.0, %v601
        %v603 = vpop.f32.mrb[0].mxu0
        %v604 = vpop.f32.mrb[0].mxu0
        %v605 = vadd.f32 0.0, %v604
        %v606 = vpop.f32.mrb[0].mxu0
        %607 = vmatprep.mubr.bf16.mxu0 0
        %608 = vmatmul.mubr.bf16.gmra.mrb[0].mxu0 %v532
        %v609 = vpop.f32.mrb[0].mxu0
        %v610 = vadd.f32 0.0, %v609
        %v611 = vpop.f32.mrb[0].mxu0
        %v612 = vpop.f32.mrb[0].mxu0
        %v613 = vadd.f32 0.0, %v612
        %v614 = vpop.f32.mrb[0].mxu0
        %615 = vmatprep.mubr.bf16.mxu0 0
        %616 = vmatmul.mubr.bf16.gmra.mrb[0].mxu0 %v535
        %v617 = vpop.f32.mrb[0].mxu0
        %v618 = vadd.f32 0.0, %v617
        %v619 = vpop.f32.mrb[0].mxu0
        %v620 = vpop.f32.mrb[0].mxu0
        %v621 = vadd.f32 0.0, %v620
        %v622 = vpop.f32.mrb[0].mxu0
        %623 = vmatprep.mubr.bf16.mxu0 0
        %624 = vmatmul.mubr.bf16.gmra.mrb[0].mxu0 %v538
        %v625 = vpop.f32.mrb[0].mxu0
        %v626 = vadd.f32 0.0, %v625
        %v627 = vpop.f32.mrb[0].mxu0
        %v628 = vpop.f32.mrb[0].mxu0
        %v629 = vadd.f32 0.0, %v628
        %v630 = vpop.f32.mrb[0].mxu0
        %631 = vmatprep.mubr.bf16.mxu0 0
        %632 = vmatmul.mubr.bf16.gmra.mrb[0].mxu0 %v541
        %v633 = vpop.f32.mrb[0].mxu0
        %v634 = vadd.f32 0.0, %v633
        %v635 = vpop.f32.mrb[0].mxu0
        %v636 = vpop.f32.mrb[0].mxu0
        %v637 = vadd.f32 0.0, %v636
        %v638 = vpop.f32.mrb[0].mxu0
        %639 = vdwg.mxu0
        %v642 = vunpack.c.l.b16 %v418
        %v643 = vunpack.c.l.b16 %v419
        %v644 = vpack.c.b16 %v643, %v642
        %v647 = vsel %vm518, %v410, 0
        %v650 = vsel %vm518, %v411, 0
        %v653 = vsel %vm518, %v412, 0
        %v656 = vsel %vm518, %v413, 0
        %v659 = vsel %vm518, %v414, 0
        %v662 = vsel %vm518, %v415, 0
        %v665 = vsel %vm518, %v416, 0
        %v668 = vsel %vm518, %v417, 0
        %670 = vmatprep.subr.bf16.mxu0 0
        %671 = vmatpush1.bf16.msra.mxu0 %v644
        %672 = vmatprep.subr.bf16.mxu0 0
        %673 = vmatpush1.bf16.msra.mxu0 0
        %674 = vmatprep.subr.bf16.mxu0 0
        %675 = vmatpush1.bf16.msra.mxu0 0
        %676 = vmatprep.subr.bf16.mxu0 0
        %677 = vmatpush1.bf16.msra.mxu0 0
        %678 = vmatprep.subr.bf16.mxu0 0
        %679 = vmatpush1.bf16.msra.mxu0 0
        %680 = vmatprep.subr.bf16.mxu0 0
        %681 = vmatpush1.bf16.msra.mxu0 0
        %682 = vmatprep.subr.bf16.mxu0 0
        %683 = vmatpush1.bf16.msra.mxu0 0
        %684 = vmatprep.subr.bf16.mxu0 0
        %685 = vmatpush1.bf16.msra.mxu0 0
        %686 = vmatprep.subr.bf16.mxu0 0
        %687 = vmatpush1.bf16.msra.mxu0 0
        %688 = vmatprep.subr.bf16.mxu0 0
        %689 = vmatpush1.bf16.msra.mxu0 0
        %690 = vmatprep.subr.bf16.mxu0 0
        %691 = vmatpush1.bf16.msra.mxu0 0
        %692 = vmatprep.subr.bf16.mxu0 0
        %693 = vmatpush1.bf16.msra.mxu0 0
        %694 = vmatprep.subr.bf16.mxu0 0
        %695 = vmatpush1.bf16.msra.mxu0 0
        %696 = vmatprep.subr.bf16.mxu0 0
        %697 = vmatpush1.bf16.msra.mxu0 0
        %698 = vmatprep.subr.bf16.mxu0 0
        %699 = vmatpush1.bf16.msra.mxu0 0
        %700 = vmatprep.subr.bf16.mxu0 0
        %701 = vmatpush1.bf16.msra.mxu0 0
        %702 = vmatprep.mubr.bf16.mxu0 0
        %703 = vmatmul.mubr.bf16.gmra.mrb[0].mxu0 %v647
        %v704 = vpop.f32.mrb[0].mxu0
        %v705 = vadd.f32 %v578, %v704
        %v706 = vpop.f32.mrb[0].mxu0
        %v707 = vpop.f32.mrb[0].mxu0
        %v708 = vadd.f32 %v581, %v707
        %v709 = vpop.f32.mrb[0].mxu0
        %710 = vmatprep.mubr.bf16.mxu0 0
        %711 = vmatmul.mubr.bf16.gmra.mrb[0].mxu0 %v650
        %v712 = vpop.f32.mrb[0].mxu0
        %v713 = vadd.f32 %v586, %v712
        %v714 = vpop.f32.mrb[0].mxu0
        %v715 = vpop.f32.mrb[0].mxu0
        %v716 = vadd.f32 %v589, %v715
        %v717 = vpop.f32.mrb[0].mxu0
        %718 = vmatprep.mubr.bf16.mxu0 0
        %719 = vmatmul.mubr.bf16.gmra.mrb[0].mxu0 %v653
        %v720 = vpop.f32.mrb[0].mxu0
        %v721 = vadd.f32 %v594, %v720
        %v722 = vpop.f32.mrb[0].mxu0
        %v723 = vpop.f32.mrb[0].mxu0
        %v724 = vadd.f32 %v597, %v723
        %v725 = vpop.f32.mrb[0].mxu0
        %726 = vmatprep.mubr.bf16.mxu0 0
        %727 = vmatmul.mubr.bf16.gmra.mrb[0].mxu0 %v656
        %v728 = vpop.f32.mrb[0].mxu0
        %v729 = vadd.f32 %v602, %v728
        %v730 = vpop.f32.mrb[0].mxu0
        %v731 = vpop.f32.mrb[0].mxu0
        %v732 = vadd.f32 %v605, %v731
        %v733 = vpop.f32.mrb[0].mxu0
        %734 = vmatprep.mubr.bf16.mxu0 0
        %735 = vmatmul.mubr.bf16.gmra.mrb[0].mxu0 %v659
        %v736 = vpop.f32.mrb[0].mxu0
        %v737 = vadd.f32 %v610, %v736
        %v738 = vpop.f32.mrb[0].mxu0
        %v739 = vpop.f32.mrb[0].mxu0
        %v740 = vadd.f32 %v613, %v739
        %v741 = vpop.f32.mrb[0].mxu0
        %742 = vmatprep.mubr.bf16.mxu0 0
        %743 = vmatmul.mubr.bf16.gmra.mrb[0].mxu0 %v662
        %v744 = vpop.f32.mrb[0].mxu0
        %v745 = vadd.f32 %v618, %v744
        %v746 = vpop.f32.mrb[0].mxu0
        %v747 = vpop.f32.mrb[0].mxu0
        %v748 = vadd.f32 %v621, %v747
        %v749 = vpop.f32.mrb[0].mxu0
        %750 = vmatprep.mubr.bf16.mxu0 0
        %751 = vmatmul.mubr.bf16.gmra.mrb[0].mxu0 %v665
        %v752 = vpop.f32.mrb[0].mxu0
        %v753 = vadd.f32 %v626, %v752
        %v754 = vpop.f32.mrb[0].mxu0
        %v755 = vpop.f32.mrb[0].mxu0
        %v756 = vadd.f32 %v629, %v755
        %v757 = vpop.f32.mrb[0].mxu0
        %758 = vmatprep.mubr.bf16.mxu0 0
        %759 = vmatmul.mubr.bf16.gmra.mrb[0].mxu0 %v668
        %v760 = vpop.f32.mrb[0].mxu0
        %v761 = vadd.f32 %v634, %v760
        %v762 = vpop.f32.mrb[0].mxu0
        %v763 = vpop.f32.mrb[0].mxu0
        %v764 = vadd.f32 %v637, %v763
        %v765 = vpop.f32.mrb[0].mxu0
        %766 = vdwg.mxu0
        %vm767 = vcmask 1045504
        %v768 = vrot.slane %v359, 2
        %v769 = vrot.slane %v360, 2
        %v770 = vsel %vm767, %v768, %v769
        %v771 = vrot.slane %v361, 2
        %v772 = vsel %vm767, %v769, %v771
        %v773 = vrot.slane %v365, 2
        %v774 = vrot.slane %v366, 2
        %v775 = vsel %vm767, %v773, %v774
        %v776 = vrot.slane %v367, 2
        %v777 = vsel %vm767, %v774, %v776
        %v778 = vrot.slane %v371, 2
        %v779 = vrot.slane %v372, 2
        %v780 = vsel %vm767, %v778, %v779
        %v781 = vrot.slane %v373, 2
        %v782 = vsel %vm767, %v779, %v781
        %v783 = vrot.slane %v377, 2
        %v784 = vrot.slane %v378, 2
        %v785 = vsel %vm767, %v783, %v784
        %v786 = vrot.slane %v379, 2
        %v787 = vsel %vm767, %v784, %v786
        %v788 = vrot.slane %v383, 2
        %v789 = vrot.slane %v384, 2
        %v790 = vsel %vm767, %v788, %v789
        %v791 = vrot.slane %v385, 2
        %v792 = vsel %vm767, %v789, %v791
        %v793 = vrot.slane %v389, 2
        %v794 = vrot.slane %v390, 2
        %v795 = vsel %vm767, %v793, %v794
        %v796 = vrot.slane %v391, 2
        %v797 = vsel %vm767, %v794, %v796
        %v798 = vrot.slane %v395, 2
        %v799 = vrot.slane %v396, 2
        %v800 = vsel %vm767, %v798, %v799
        %v801 = vrot.slane %v397, 2
        %v802 = vsel %vm767, %v799, %v801
        %v803 = vrot.slane %v401, 2
        %v804 = vrot.slane %v402, 2
        %v805 = vsel %vm767, %v803, %v804
        %v806 = vrot.slane %v403, 2
        %v807 = vsel %vm767, %v804, %v806
        %v824 = vpack.c.bf16 %v772, %v770
        %v825 = vpack.c.bf16 %v777, %v775
        %v826 = vpack.c.bf16 %v782, %v780
        %v827 = vpack.c.bf16 %v787, %v785
        %v828 = vpack.c.bf16 %v792, %v790
        %v829 = vpack.c.bf16 %v797, %v795
        %v830 = vpack.c.bf16 %v802, %v800
        %v831 = vpack.c.bf16 %v807, %v805
        %s832 = scalar_lea.vmem %s1, 16
        %v833 = vld [vmem:[%s832] sm:$0xf]
        %v834 = vld [vmem:[%s832 + $0x4] sm:$0xf]
        %v837 = vunpack.c.l.b16 %v833
        %v838 = vunpack.c.l.b16 %v834
        %v839 = vpack.c.b16 %v838, %v837
        %v842 = vsel %vm518, %v824, 0
        %v845 = vsel %vm518, %v825, 0
        %v848 = vsel %vm518, %v826, 0
        %v851 = vsel %vm518, %v827, 0
        %v854 = vsel %vm518, %v828, 0
        %v857 = vsel %vm518, %v829, 0
        %v860 = vsel %vm518, %v830, 0
        %v863 = vsel %vm518, %v831, 0
        %865 = vmatprep.subr.bf16.mxu0 0
        %866 = vmatpush1.bf16.msra.mxu0 %v839
        %867 = vmatprep.subr.bf16.mxu0 0
        %868 = vmatpush1.bf16.msra.mxu0 0
        %869 = vmatprep.subr.bf16.mxu0 0
        %870 = vmatpush1.bf16.msra.mxu0 0
        %871 = vmatprep.subr.bf16.mxu0 0
        %872 = vmatpush1.bf16.msra.mxu0 0
        %873 = vmatprep.subr.bf16.mxu0 0
        %874 = vmatpush1.bf16.msra.mxu0 0
        %875 = vmatprep.subr.bf16.mxu0 0
        %876 = vmatpush1.bf16.msra.mxu0 0
        %877 = vmatprep.subr.bf16.mxu0 0
        %878 = vmatpush1.bf16.msra.mxu0 0
        %879 = vmatprep.subr.bf16.mxu0 0
        %880 = vmatpush1.bf16.msra.mxu0 0
        %881 = vmatprep.subr.bf16.mxu0 0
        %882 = vmatpush1.bf16.msra.mxu0 0
        %883 = vmatprep.subr.bf16.mxu0 0
        %884 = vmatpush1.bf16.msra.mxu0 0
        %885 = vmatprep.subr.bf16.mxu0 0
        %886 = vmatpush1.bf16.msra.mxu0 0
        %887 = vmatprep.subr.bf16.mxu0 0
        %888 = vmatpush1.bf16.msra.mxu0 0
        %889 = vmatprep.subr.bf16.mxu0 0
        %890 = vmatpush1.bf16.msra.mxu0 0
        %891 = vmatprep.subr.bf16.mxu0 0
        %892 = vmatpush1.bf16.msra.mxu0 0
        %893 = vmatprep.subr.bf16.mxu0 0
        %894 = vmatpush1.bf16.msra.mxu0 0
        %895 = vmatprep.subr.bf16.mxu0 0
        %896 = vmatpush1.bf16.msra.mxu0 0
        %897 = vmatprep.mubr.bf16.mxu0 0
        %898 = vmatmul.mubr.bf16.gmra.mrb[0].mxu0 %v842
        %v899 = vpop.f32.mrb[0].mxu0
        %v900 = vadd.f32 0.0, %v899
        %v901 = vpop.f32.mrb[0].mxu0
        %v902 = vpop.f32.mrb[0].mxu0
        %v903 = vadd.f32 0.0, %v902
        %v904 = vpop.f32.mrb[0].mxu0
        %905 = vmatprep.mubr.bf16.mxu0 0
        %906 = vmatmul.mubr.bf16.gmra.mrb[0].mxu0 %v845
        %v907 = vpop.f32.mrb[0].mxu0
        %v908 = vadd.f32 0.0, %v907
        %v909 = vpop.f32.mrb[0].mxu0
        %v910 = vpop.f32.mrb[0].mxu0
        %v911 = vadd.f32 0.0, %v910
        %v912 = vpop.f32.mrb[0].mxu0
        %913 = vmatprep.mubr.bf16.mxu0 0
        %914 = vmatmul.mubr.bf16.gmra.mrb[0].mxu0 %v848
        %v915 = vpop.f32.mrb[0].mxu0
        %v916 = vadd.f32 0.0, %v915
        %v917 = vpop.f32.mrb[0].mxu0
        %v918 = vpop.f32.mrb[0].mxu0
        %v919 = vadd.f32 0.0, %v918
        %v920 = vpop.f32.mrb[0].mxu0
        %921 = vmatprep.mubr.bf16.mxu0 0
        %922 = vmatmul.mubr.bf16.gmra.mrb[0].mxu0 %v851
        %v923 = vpop.f32.mrb[0].mxu0
        %v924 = vadd.f32 0.0, %v923
        %v925 = vpop.f32.mrb[0].mxu0
        %v926 = vpop.f32.mrb[0].mxu0
        %v927 = vadd.f32 0.0, %v926
        %v928 = vpop.f32.mrb[0].mxu0
        %929 = vmatprep.mubr.bf16.mxu0 0
        %930 = vmatmul.mubr.bf16.gmra.mrb[0].mxu0 %v854
        %v931 = vpop.f32.mrb[0].mxu0
        %v932 = vadd.f32 0.0, %v931
        %v933 = vpop.f32.mrb[0].mxu0
        %v934 = vpop.f32.mrb[0].mxu0
        %v935 = vadd.f32 0.0, %v934
        %v936 = vpop.f32.mrb[0].mxu0
        %937 = vmatprep.mubr.bf16.mxu0 0
        %938 = vmatmul.mubr.bf16.gmra.mrb[0].mxu0 %v857
        %v939 = vpop.f32.mrb[0].mxu0
        %v940 = vadd.f32 0.0, %v939
        %v941 = vpop.f32.mrb[0].mxu0
        %v942 = vpop.f32.mrb[0].mxu0
        %v943 = vadd.f32 0.0, %v942
        %v944 = vpop.f32.mrb[0].mxu0
        %945 = vmatprep.mubr.bf16.mxu0 0
        %946 = vmatmul.mubr.bf16.gmra.mrb[0].mxu0 %v860
        %v947 = vpop.f32.mrb[0].mxu0
        %v948 = vadd.f32 0.0, %v947
        %v949 = vpop.f32.mrb[0].mxu0
        %v950 = vpop.f32.mrb[0].mxu0
        %v951 = vadd.f32 0.0, %v950
        %v952 = vpop.f32.mrb[0].mxu0
        %953 = vmatprep.mubr.bf16.mxu0 0
        %954 = vmatmul.mubr.bf16.gmra.mrb[0].mxu0 %v863
        %v955 = vpop.f32.mrb[0].mxu0
        %v956 = vadd.f32 0.0, %v955
        %v957 = vpop.f32.mrb[0].mxu0
        %v958 = vpop.f32.mrb[0].mxu0
        %v959 = vadd.f32 0.0, %v958
        %v960 = vpop.f32.mrb[0].mxu0
        %961 = vdwg.mxu0
        %v962 = vadd.f32 %v705, %v900
        %v963 = vadd.f32 %v708, %v903
        %v964 = vadd.f32 %v713, %v908
        %v965 = vadd.f32 %v716, %v911
        %v966 = vadd.f32 %v721, %v916
        %v967 = vadd.f32 %v724, %v919
        %v968 = vadd.f32 %v729, %v924
        %v969 = vadd.f32 %v732, %v927
        %v970 = vadd.f32 %v737, %v932
        %v971 = vadd.f32 %v740, %v935
        %v972 = vadd.f32 %v745, %v940
        %v973 = vadd.f32 %v748, %v943
        %v974 = vadd.f32 %v753, %v948
        %v975 = vadd.f32 %v756, %v951
        %v976 = vadd.f32 %v761, %v956
        %v977 = vadd.f32 %v764, %v959
        %v978 = vpack.c.bf16 %v363, %v362
        %v979 = vpack.c.bf16 %v369, %v368
        %v980 = vpack.c.bf16 %v375, %v374
        %v981 = vpack.c.bf16 %v381, %v380
        %v982 = vpack.c.bf16 %v387, %v386
        %v983 = vpack.c.bf16 %v393, %v392
        %v984 = vpack.c.bf16 %v399, %v398
        %v985 = vpack.c.bf16 %v405, %v404
        %s986 = scalar_lea.vmem %s1, 24
        %v987 = vld [vmem:[%s986] sm:$0xf]
        %v988 = vld [vmem:[%s986 + $0x4] sm:$0xf]
        %v991 = vunpack.c.l.b16 %v987
        %v992 = vunpack.c.l.b16 %v988
        %v993 = vpack.c.b16 %v992, %v991
        %v996 = vsel %vm518, %v978, 0
        %v999 = vsel %vm518, %v979, 0
        %v1002 = vsel %vm518, %v980, 0
        %v1005 = vsel %vm518, %v981, 0
        %v1008 = vsel %vm518, %v982, 0
        %v1011 = vsel %vm518, %v983, 0
        %v1014 = vsel %vm518, %v984, 0
        %v1017 = vsel %vm518, %v985, 0
        %1019 = vmatprep.subr.bf16.mxu0 0
        %1020 = vmatpush1.bf16.msra.mxu0 %v993
        %1021 = vmatprep.subr.bf16.mxu0 0
        %1022 = vmatpush1.bf16.msra.mxu0 0
        %1023 = vmatprep.subr.bf16.mxu0 0
        %1024 = vmatpush1.bf16.msra.mxu0 0
        %1025 = vmatprep.subr.bf16.mxu0 0
        %1026 = vmatpush1.bf16.msra.mxu0 0
        %1027 = vmatprep.subr.bf16.mxu0 0
        %1028 = vmatpush1.bf16.msra.mxu0 0
        %1029 = vmatprep.subr.bf16.mxu0 0
        %1030 = vmatpush1.bf16.msra.mxu0 0
        %1031 = vmatprep.subr.bf16.mxu0 0
        %1032 = vmatpush1.bf16.msra.mxu0 0
        %1033 = vmatprep.subr.bf16.mxu0 0
        %1034 = vmatpush1.bf16.msra.mxu0 0
        %1035 = vmatprep.subr.bf16.mxu0 0
        %1036 = vmatpush1.bf16.msra.mxu0 0
        %1037 = vmatprep.subr.bf16.mxu0 0
        %1038 = vmatpush1.bf16.msra.mxu0 0
        %1039 = vmatprep.subr.bf16.mxu0 0
        %1040 = vmatpush1.bf16.msra.mxu0 0
        %1041 = vmatprep.subr.bf16.mxu0 0
        %1042 = vmatpush1.bf16.msra.mxu0 0
        %1043 = vmatprep.subr.bf16.mxu0 0
        %1044 = vmatpush1.bf16.msra.mxu0 0
        %1045 = vmatprep.subr.bf16.mxu0 0
        %1046 = vmatpush1.bf16.msra.mxu0 0
        %1047 = vmatprep.subr.bf16.mxu0 0
        %1048 = vmatpush1.bf16.msra.mxu0 0
        %1049 = vmatprep.subr.bf16.mxu0 0
        %1050 = vmatpush1.bf16.msra.mxu0 0
        %1051 = vmatprep.mubr.bf16.mxu0 0
        %1052 = vmatmul.mubr.bf16.gmra.mrb[0].mxu0 %v996
        %v1053 = vpop.f32.mrb[0].mxu0
        %v1054 = vadd.f32 0.0, %v1053
        %v1055 = vpop.f32.mrb[0].mxu0
        %v1056 = vpop.f32.mrb[0].mxu0
        %v1057 = vadd.f32 0.0, %v1056
        %v1058 = vpop.f32.mrb[0].mxu0
        %1059 = vmatprep.mubr.bf16.mxu0 0
        %1060 = vmatmul.mubr.bf16.gmra.mrb[0].mxu0 %v999
        %v1061 = vpop.f32.mrb[0].mxu0
        %v1062 = vadd.f32 0.0, %v1061
        %v1063 = vpop.f32.mrb[0].mxu0
        %v1064 = vpop.f32.mrb[0].mxu0
        %v1065 = vadd.f32 0.0, %v1064
        %v1066 = vpop.f32.mrb[0].mxu0
        %1067 = vmatprep.mubr.bf16.mxu0 0
        %1068 = vmatmul.mubr.bf16.gmra.mrb[0].mxu0 %v1002
        %v1069 = vpop.f32.mrb[0].mxu0
        %v1070 = vadd.f32 0.0, %v1069
        %v1071 = vpop.f32.mrb[0].mxu0
        %v1072 = vpop.f32.mrb[0].mxu0
        %v1073 = vadd.f32 0.0, %v1072
        %v1074 = vpop.f32.mrb[0].mxu0
        %1075 = vmatprep.mubr.bf16.mxu0 0
        %1076 = vmatmul.mubr.bf16.gmra.mrb[0].mxu0 %v1005
        %v1077 = vpop.f32.mrb[0].mxu0
        %v1078 = vadd.f32 0.0, %v1077
        %v1079 = vpop.f32.mrb[0].mxu0
        %v1080 = vpop.f32.mrb[0].mxu0
        %v1081 = vadd.f32 0.0, %v1080
        %v1082 = vpop.f32.mrb[0].mxu0
        %1083 = vmatprep.mubr.bf16.mxu0 0
        %1084 = vmatmul.mubr.bf16.gmra.mrb[0].mxu0 %v1008
        %v1085 = vpop.f32.mrb[0].mxu0
        %v1086 = vadd.f32 0.0, %v1085
        %v1087 = vpop.f32.mrb[0].mxu0
        %v1088 = vpop.f32.mrb[0].mxu0
        %v1089 = vadd.f32 0.0, %v1088
        %v1090 = vpop.f32.mrb[0].mxu0
        %1091 = vmatprep.mubr.bf16.mxu0 0
        %1092 = vmatmul.mubr.bf16.gmra.mrb[0].mxu0 %v1011
        %v1093 = vpop.f32.mrb[0].mxu0
        %v1094 = vadd.f32 0.0, %v1093
        %v1095 = vpop.f32.mrb[0].mxu0
        %v1096 = vpop.f32.mrb[0].mxu0
        %v1097 = vadd.f32 0.0, %v1096
        %v1098 = vpop.f32.mrb[0].mxu0
        %1099 = vmatprep.mubr.bf16.mxu0 0
        %1100 = vmatmul.mubr.bf16.gmra.mrb[0].mxu0 %v1014
        %v1101 = vpop.f32.mrb[0].mxu0
        %v1102 = vadd.f32 0.0, %v1101
        %v1103 = vpop.f32.mrb[0].mxu0
        %v1104 = vpop.f32.mrb[0].mxu0
        %v1105 = vadd.f32 0.0, %v1104
        %v1106 = vpop.f32.mrb[0].mxu0
        %1107 = vmatprep.mubr.bf16.mxu0 0
        %1108 = vmatmul.mubr.bf16.gmra.mrb[0].mxu0 %v1017
        %v1109 = vpop.f32.mrb[0].mxu0
        %v1110 = vadd.f32 0.0, %v1109
        %v1111 = vpop.f32.mrb[0].mxu0
        %v1112 = vpop.f32.mrb[0].mxu0
        %v1113 = vadd.f32 0.0, %v1112
        %v1114 = vpop.f32.mrb[0].mxu0
        %1115 = vdwg.mxu0
        %v1116 = vadd.f32 %v962, %v1054
        %v1117 = vadd.f32 %v963, %v1057
        %v1118 = vadd.f32 %v964, %v1062
        %v1119 = vadd.f32 %v965, %v1065
        %v1120 = vadd.f32 %v966, %v1070
        %v1121 = vadd.f32 %v967, %v1073
        %v1122 = vadd.f32 %v968, %v1078
        %v1123 = vadd.f32 %v969, %v1081
        %v1124 = vadd.f32 %v970, %v1086
        %v1125 = vadd.f32 %v971, %v1089
        %v1126 = vadd.f32 %v972, %v1094
        %v1127 = vadd.f32 %v973, %v1097
        %v1128 = vadd.f32 %v974, %v1102
        %v1129 = vadd.f32 %v975, %v1105
        %v1130 = vadd.f32 %v976, %v1110
        %v1131 = vadd.f32 %v977, %v1113
        %v1156 = vrot.slane %v362, 1
        %v1157 = vrot.slane %v363, 1
        %v1158 = vsel %vm444, %v1156, %v1157
        %v1159 = vrot.slane %v364, 1
        %v1160 = vsel %vm444, %v1157, %v1159
        %v1161 = vrot.slane %v368, 1
        %v1162 = vrot.slane %v369, 1
        %v1163 = vsel %vm444, %v1161, %v1162
        %v1164 = vrot.slane %v370, 1
        %v1165 = vsel %vm444, %v1162, %v1164
        %v1166 = vrot.slane %v374, 1
        %v1167 = vrot.slane %v375, 1
        %v1168 = vsel %vm444, %v1166, %v1167
        %v1169 = vrot.slane %v376, 1
        %v1170 = vsel %vm444, %v1167, %v1169
        %v1171 = vrot.slane %v380, 1
        %v1172 = vrot.slane %v381, 1
        %v1173 = vsel %vm444, %v1171, %v1172
        %v1174 = vrot.slane %v382, 1
        %v1175 = vsel %vm444, %v1172, %v1174
        %v1176 = vrot.slane %v386, 1
        %v1177 = vrot.slane %v387, 1
        %v1178 = vsel %vm444, %v1176, %v1177
        %v1179 = vrot.slane %v388, 1
        %v1180 = vsel %vm444, %v1177, %v1179
        %v1181 = vrot.slane %v392, 1
        %v1182 = vrot.slane %v393, 1
        %v1183 = vsel %vm444, %v1181, %v1182
        %v1184 = vrot.slane %v394, 1
        %v1185 = vsel %vm444, %v1182, %v1184
        %v1186 = vrot.slane %v398, 1
        %v1187 = vrot.slane %v399, 1
        %v1188 = vsel %vm444, %v1186, %v1187
        %v1189 = vrot.slane %v400, 1
        %v1190 = vsel %vm444, %v1187, %v1189
        %v1191 = vrot.slane %v404, 1
        %v1192 = vrot.slane %v405, 1
        %v1193 = vsel %vm444, %v1191, %v1192
        %v1194 = vrot.slane %v406, 1
        %v1195 = vsel %vm444, %v1192, %v1194
        %v1212 = vpack.c.bf16 %v1160, %v1158
        %v1213 = vpack.c.bf16 %v1165, %v1163
        %v1214 = vpack.c.bf16 %v1170, %v1168
        %v1215 = vpack.c.bf16 %v1175, %v1173
        %v1216 = vpack.c.bf16 %v1180, %v1178
        %v1217 = vpack.c.bf16 %v1185, %v1183
        %v1218 = vpack.c.bf16 %v1190, %v1188
        %v1219 = vpack.c.bf16 %v1195, %v1193
        %s1220 = scalar_lea.vmem %s1, 32
        %v1221 = vld [vmem:[%s1220] sm:$0xf]
        %v1222 = vld [vmem:[%s1220 + $0x4] sm:$0xf]
        %v1225 = vunpack.c.l.b16 %v1221
        %v1226 = vunpack.c.l.b16 %v1222
        %v1227 = vpack.c.b16 %v1226, %v1225
        %v1230 = vsel %vm518, %v1212, 0
        %v1233 = vsel %vm518, %v1213, 0
        %v1236 = vsel %vm518, %v1214, 0
        %v1239 = vsel %vm518, %v1215, 0
        %v1242 = vsel %vm518, %v1216, 0
        %v1245 = vsel %vm518, %v1217, 0
        %v1248 = vsel %vm518, %v1218, 0
        %v1251 = vsel %vm518, %v1219, 0
        %1253 = vmatprep.subr.bf16.mxu0 0
        %1254 = vmatpush1.bf16.msra.mxu0 %v1227
        %1255 = vmatprep.subr.bf16.mxu0 0
        %1256 = vmatpush1.bf16.msra.mxu0 0
        %1257 = vmatprep.subr.bf16.mxu0 0
        %1258 = vmatpush1.bf16.msra.mxu0 0
        %1259 = vmatprep.subr.bf16.mxu0 0
        %1260 = vmatpush1.bf16.msra.mxu0 0
        %1261 = vmatprep.subr.bf16.mxu0 0
        %1262 = vmatpush1.bf16.msra.mxu0 0
        %1263 = vmatprep.subr.bf16.mxu0 0
        %1264 = vmatpush1.bf16.msra.mxu0 0
        %1265 = vmatprep.subr.bf16.mxu0 0
        %1266 = vmatpush1.bf16.msra.mxu0 0
        %1267 = vmatprep.subr.bf16.mxu0 0
        %1268 = vmatpush1.bf16.msra.mxu0 0
        %1269 = vmatprep.subr.bf16.mxu0 0
        %1270 = vmatpush1.bf16.msra.mxu0 0
        %1271 = vmatprep.subr.bf16.mxu0 0
        %1272 = vmatpush1.bf16.msra.mxu0 0
        %1273 = vmatprep.subr.bf16.mxu0 0
        %1274 = vmatpush1.bf16.msra.mxu0 0
        %1275 = vmatprep.subr.bf16.mxu0 0
        %1276 = vmatpush1.bf16.msra.mxu0 0
        %1277 = vmatprep.subr.bf16.mxu0 0
        %1278 = vmatpush1.bf16.msra.mxu0 0
        %1279 = vmatprep.subr.bf16.mxu0 0
        %1280 = vmatpush1.bf16.msra.mxu0 0
        %1281 = vmatprep.subr.bf16.mxu0 0
        %1282 = vmatpush1.bf16.msra.mxu0 0
        %1283 = vmatprep.subr.bf16.mxu0 0
        %1284 = vmatpush1.bf16.msra.mxu0 0
        %1285 = vmatprep.mubr.bf16.mxu0 0
        %1286 = vmatmul.mubr.bf16.gmra.mrb[0].mxu0 %v1230
        %v1287 = vpop.f32.mrb[0].mxu0
        %v1288 = vadd.f32 0.0, %v1287
        %v1289 = vpop.f32.mrb[0].mxu0
        %v1290 = vpop.f32.mrb[0].mxu0
        %v1291 = vadd.f32 0.0, %v1290
        %v1292 = vpop.f32.mrb[0].mxu0
        %1293 = vmatprep.mubr.bf16.mxu0 0
        %1294 = vmatmul.mubr.bf16.gmra.mrb[0].mxu0 %v1233
        %v1295 = vpop.f32.mrb[0].mxu0
        %v1296 = vadd.f32 0.0, %v1295
        %v1297 = vpop.f32.mrb[0].mxu0
        %v1298 = vpop.f32.mrb[0].mxu0
        %v1299 = vadd.f32 0.0, %v1298
        %v1300 = vpop.f32.mrb[0].mxu0
        %1301 = vmatprep.mubr.bf16.mxu0 0
        %1302 = vmatmul.mubr.bf16.gmra.mrb[0].mxu0 %v1236
        %v1303 = vpop.f32.mrb[0].mxu0
        %v1304 = vadd.f32 0.0, %v1303
        %v1305 = vpop.f32.mrb[0].mxu0
        %v1306 = vpop.f32.mrb[0].mxu0
        %v1307 = vadd.f32 0.0, %v1306
        %v1308 = vpop.f32.mrb[0].mxu0
        %1309 = vmatprep.mubr.bf16.mxu0 0
        %1310 = vmatmul.mubr.bf16.gmra.mrb[0].mxu0 %v1239
        %v1311 = vpop.f32.mrb[0].mxu0
        %v1312 = vadd.f32 0.0, %v1311
        %v1313 = vpop.f32.mrb[0].mxu0
        %v1314 = vpop.f32.mrb[0].mxu0
        %v1315 = vadd.f32 0.0, %v1314
        %v1316 = vpop.f32.mrb[0].mxu0
        %1317 = vmatprep.mubr.bf16.mxu0 0
        %1318 = vmatmul.mubr.bf16.gmra.mrb[0].mxu0 %v1242
        %v1319 = vpop.f32.mrb[0].mxu0
        %v1320 = vadd.f32 0.0, %v1319
        %v1321 = vpop.f32.mrb[0].mxu0
        %v1322 = vpop.f32.mrb[0].mxu0
        %v1323 = vadd.f32 0.0, %v1322
        %v1324 = vpop.f32.mrb[0].mxu0
        %1325 = vmatprep.mubr.bf16.mxu0 0
        %1326 = vmatmul.mubr.bf16.gmra.mrb[0].mxu0 %v1245
        %v1327 = vpop.f32.mrb[0].mxu0
        %v1328 = vadd.f32 0.0, %v1327
        %v1329 = vpop.f32.mrb[0].mxu0
        %v1330 = vpop.f32.mrb[0].mxu0
        %v1331 = vadd.f32 0.0, %v1330
        %v1332 = vpop.f32.mrb[0].mxu0
        %1333 = vmatprep.mubr.bf16.mxu0 0
        %1334 = vmatmul.mubr.bf16.gmra.mrb[0].mxu0 %v1248
        %v1335 = vpop.f32.mrb[0].mxu0
        %v1336 = vadd.f32 0.0, %v1335
        %v1337 = vpop.f32.mrb[0].mxu0
        %v1338 = vpop.f32.mrb[0].mxu0
        %v1339 = vadd.f32 0.0, %v1338
        %v1340 = vpop.f32.mrb[0].mxu0
        %1341 = vmatprep.mubr.bf16.mxu0 0
        %1342 = vmatmul.mubr.bf16.gmra.mrb[0].mxu0 %v1251
        %v1343 = vpop.f32.mrb[0].mxu0
        %v1344 = vadd.f32 0.0, %v1343
        %v1345 = vpop.f32.mrb[0].mxu0
        %v1346 = vpop.f32.mrb[0].mxu0
        %v1347 = vadd.f32 0.0, %v1346
        %v1348 = vpop.f32.mrb[0].mxu0
        %1349 = vdwg.mxu0
        %v1350 = vadd.f32 %v1116, %v1288
        %v1351 = vadd.f32 %v1117, %v1291
        %v1352 = vadd.f32 %v1118, %v1296
        %v1353 = vadd.f32 %v1119, %v1299
        %v1354 = vadd.f32 %v1120, %v1304
        %v1355 = vadd.f32 %v1121, %v1307
        %v1356 = vadd.f32 %v1122, %v1312
        %v1357 = vadd.f32 %v1123, %v1315
        %v1358 = vadd.f32 %v1124, %v1320
        %v1359 = vadd.f32 %v1125, %v1323
        %v1360 = vadd.f32 %v1126, %v1328
        %v1361 = vadd.f32 %v1127, %v1331
        %v1362 = vadd.f32 %v1128, %v1336
        %v1363 = vadd.f32 %v1129, %v1339
        %v1364 = vadd.f32 %v1130, %v1344
        %v1365 = vadd.f32 %v1131, %v1347
        %v1366 = vrot.slane %v362, 2
        %v1367 = vrot.slane %v363, 2
        %v1368 = vsel %vm767, %v1366, %v1367
        %v1369 = vrot.slane %v364, 2
        %v1370 = vsel %vm767, %v1367, %v1369
        %v1371 = vrot.slane %v368, 2
        %v1372 = vrot.slane %v369, 2
        %v1373 = vsel %vm767, %v1371, %v1372
        %v1374 = vrot.slane %v370, 2
        %v1375 = vsel %vm767, %v1372, %v1374
        %v1376 = vrot.slane %v374, 2
        %v1377 = vrot.slane %v375, 2
        %v1378 = vsel %vm767, %v1376, %v1377
        %v1379 = vrot.slane %v376, 2
        %v1380 = vsel %vm767, %v1377, %v1379
        %v1381 = vrot.slane %v380, 2
        %v1382 = vrot.slane %v381, 2
        %v1383 = vsel %vm767, %v1381, %v1382
        %v1384 = vrot.slane %v382, 2
        %v1385 = vsel %vm767, %v1382, %v1384
        %v1386 = vrot.slane %v386, 2
        %v1387 = vrot.slane %v387, 2
        %v1388 = vsel %vm767, %v1386, %v1387
        %v1389 = vrot.slane %v388, 2
        %v1390 = vsel %vm767, %v1387, %v1389
        %v1391 = vrot.slane %v392, 2
        %v1392 = vrot.slane %v393, 2
        %v1393 = vsel %vm767, %v1391, %v1392
        %v1394 = vrot.slane %v394, 2
        %v1395 = vsel %vm767, %v1392, %v1394
        %v1396 = vrot.slane %v398, 2
        %v1397 = vrot.slane %v399, 2
        %v1398 = vsel %vm767, %v1396, %v1397
        %v1399 = vrot.slane %v400, 2
        %v1400 = vsel %vm767, %v1397, %v1399
        %v1401 = vrot.slane %v404, 2
        %v1402 = vrot.slane %v405, 2
        %v1403 = vsel %vm767, %v1401, %v1402
        %v1404 = vrot.slane %v406, 2
        %v1405 = vsel %vm767, %v1402, %v1404
        %v1422 = vpack.c.bf16 %v1370, %v1368
        %v1423 = vpack.c.bf16 %v1375, %v1373
        %v1424 = vpack.c.bf16 %v1380, %v1378
        %v1425 = vpack.c.bf16 %v1385, %v1383
        %v1426 = vpack.c.bf16 %v1390, %v1388
        %v1427 = vpack.c.bf16 %v1395, %v1393
        %v1428 = vpack.c.bf16 %v1400, %v1398
        %v1429 = vpack.c.bf16 %v1405, %v1403
        %s1430 = scalar_lea.vmem %s1, 40
        %v1431 = vld [vmem:[%s1430] sm:$0xf]
        %v1432 = vld [vmem:[%s1430 + $0x4] sm:$0xf]
        %v1435 = vunpack.c.l.b16 %v1431
        %v1436 = vunpack.c.l.b16 %v1432
        %v1437 = vpack.c.b16 %v1436, %v1435
        %v1440 = vsel %vm518, %v1422, 0
        %v1443 = vsel %vm518, %v1423, 0
        %v1446 = vsel %vm518, %v1424, 0
        %v1449 = vsel %vm518, %v1425, 0
        %v1452 = vsel %vm518, %v1426, 0
        %v1455 = vsel %vm518, %v1427, 0
        %v1458 = vsel %vm518, %v1428, 0
        %v1461 = vsel %vm518, %v1429, 0
        %1463 = vmatprep.subr.bf16.mxu0 0
        %1464 = vmatpush1.bf16.msra.mxu0 %v1437
        %1465 = vmatprep.subr.bf16.mxu0 0
        %1466 = vmatpush1.bf16.msra.mxu0 0
        %1467 = vmatprep.subr.bf16.mxu0 0
        %1468 = vmatpush1.bf16.msra.mxu0 0
        %1469 = vmatprep.subr.bf16.mxu0 0
        %1470 = vmatpush1.bf16.msra.mxu0 0
        %1471 = vmatprep.subr.bf16.mxu0 0
        %1472 = vmatpush1.bf16.msra.mxu0 0
        %1473 = vmatprep.subr.bf16.mxu0 0
        %1474 = vmatpush1.bf16.msra.mxu0 0
        %1475 = vmatprep.subr.bf16.mxu0 0
        %1476 = vmatpush1.bf16.msra.mxu0 0
        %1477 = vmatprep.subr.bf16.mxu0 0
        %1478 = vmatpush1.bf16.msra.mxu0 0
        %1479 = vmatprep.subr.bf16.mxu0 0
        %1480 = vmatpush1.bf16.msra.mxu0 0
        %1481 = vmatprep.subr.bf16.mxu0 0
        %1482 = vmatpush1.bf16.msra.mxu0 0
        %1483 = vmatprep.subr.bf16.mxu0 0
        %1484 = vmatpush1.bf16.msra.mxu0 0
        %1485 = vmatprep.subr.bf16.mxu0 0
        %1486 = vmatpush1.bf16.msra.mxu0 0
        %1487 = vmatprep.subr.bf16.mxu0 0
        %1488 = vmatpush1.bf16.msra.mxu0 0
        %1489 = vmatprep.subr.bf16.mxu0 0
        %1490 = vmatpush1.bf16.msra.mxu0 0
        %1491 = vmatprep.subr.bf16.mxu0 0
        %1492 = vmatpush1.bf16.msra.mxu0 0
        %1493 = vmatprep.subr.bf16.mxu0 0
        %1494 = vmatpush1.bf16.msra.mxu0 0
        %1495 = vmatprep.mubr.bf16.mxu0 0
        %1496 = vmatmul.mubr.bf16.gmra.mrb[0].mxu0 %v1440
        %v1497 = vpop.f32.mrb[0].mxu0
        %v1498 = vadd.f32 0.0, %v1497
        %v1499 = vpop.f32.mrb[0].mxu0
        %v1500 = vpop.f32.mrb[0].mxu0
        %v1501 = vadd.f32 0.0, %v1500
        %v1502 = vpop.f32.mrb[0].mxu0
        %1503 = vmatprep.mubr.bf16.mxu0 0
        %1504 = vmatmul.mubr.bf16.gmra.mrb[0].mxu0 %v1443
        %v1505 = vpop.f32.mrb[0].mxu0
        %v1506 = vadd.f32 0.0, %v1505
        %v1507 = vpop.f32.mrb[0].mxu0
        %v1508 = vpop.f32.mrb[0].mxu0
        %v1509 = vadd.f32 0.0, %v1508
        %v1510 = vpop.f32.mrb[0].mxu0
        %1511 = vmatprep.mubr.bf16.mxu0 0
        %1512 = vmatmul.mubr.bf16.gmra.mrb[0].mxu0 %v1446
        %v1513 = vpop.f32.mrb[0].mxu0
        %v1514 = vadd.f32 0.0, %v1513
        %v1515 = vpop.f32.mrb[0].mxu0
        %v1516 = vpop.f32.mrb[0].mxu0
        %v1517 = vadd.f32 0.0, %v1516
        %v1518 = vpop.f32.mrb[0].mxu0
        %1519 = vmatprep.mubr.bf16.mxu0 0
        %1520 = vmatmul.mubr.bf16.gmra.mrb[0].mxu0 %v1449
        %v1521 = vpop.f32.mrb[0].mxu0
        %v1522 = vadd.f32 0.0, %v1521
        %v1523 = vpop.f32.mrb[0].mxu0
        %v1524 = vpop.f32.mrb[0].mxu0
        %v1525 = vadd.f32 0.0, %v1524
        %v1526 = vpop.f32.mrb[0].mxu0
        %1527 = vmatprep.mubr.bf16.mxu0 0
        %1528 = vmatmul.mubr.bf16.gmra.mrb[0].mxu0 %v1452
        %v1529 = vpop.f32.mrb[0].mxu0
        %v1530 = vadd.f32 0.0, %v1529
        %v1531 = vpop.f32.mrb[0].mxu0
        %v1532 = vpop.f32.mrb[0].mxu0
        %v1533 = vadd.f32 0.0, %v1532
        %v1534 = vpop.f32.mrb[0].mxu0
        %1535 = vmatprep.mubr.bf16.mxu0 0
        %1536 = vmatmul.mubr.bf16.gmra.mrb[0].mxu0 %v1455
        %v1537 = vpop.f32.mrb[0].mxu0
        %v1538 = vadd.f32 0.0, %v1537
        %v1539 = vpop.f32.mrb[0].mxu0
        %v1540 = vpop.f32.mrb[0].mxu0
        %v1541 = vadd.f32 0.0, %v1540
        %v1542 = vpop.f32.mrb[0].mxu0
        %1543 = vmatprep.mubr.bf16.mxu0 0
        %1544 = vmatmul.mubr.bf16.gmra.mrb[0].mxu0 %v1458
        %v1545 = vpop.f32.mrb[0].mxu0
        %v1546 = vadd.f32 0.0, %v1545
        %v1547 = vpop.f32.mrb[0].mxu0
        %v1548 = vpop.f32.mrb[0].mxu0
        %v1549 = vadd.f32 0.0, %v1548
        %v1550 = vpop.f32.mrb[0].mxu0
        %1551 = vmatprep.mubr.bf16.mxu0 0
        %1552 = vmatmul.mubr.bf16.gmra.mrb[0].mxu0 %v1461
        %v1553 = vpop.f32.mrb[0].mxu0
        %v1554 = vadd.f32 0.0, %v1553
        %v1555 = vpop.f32.mrb[0].mxu0
        %v1556 = vpop.f32.mrb[0].mxu0
        %v1557 = vadd.f32 0.0, %v1556
        %v1558 = vpop.f32.mrb[0].mxu0
        %1559 = vdwg.mxu0
        %v1560 = vadd.f32 %v1350, %v1498
        %v1561 = vadd.f32 %v1351, %v1501
        %v1562 = vadd.f32 %v1352, %v1506
        %v1563 = vadd.f32 %v1353, %v1509
        %v1564 = vadd.f32 %v1354, %v1514
        %v1565 = vadd.f32 %v1355, %v1517
        %v1566 = vadd.f32 %v1356, %v1522
        %v1567 = vadd.f32 %v1357, %v1525
        %v1568 = vadd.f32 %v1358, %v1530
        %v1569 = vadd.f32 %v1359, %v1533
        %v1570 = vadd.f32 %v1360, %v1538
        %v1571 = vadd.f32 %v1361, %v1541
        %v1572 = vadd.f32 %v1362, %v1546
        %v1573 = vadd.f32 %v1363, %v1549
        %v1574 = vadd.f32 %v1364, %v1554
        %v1575 = vadd.f32 %v1365, %v1557
        %v1576 = vpack.c.bf16 %v408, %v407
        %s1577 = scalar_lea.vmem %s1, 48
        %v1578 = vld [vmem:[%s1577] sm:$0xf]
        %v1579 = vld [vmem:[%s1577 + $0x4] sm:$0xf]
        %v1582 = vunpack.c.l.b16 %v1578
        %v1583 = vunpack.c.l.b16 %v1579
        %v1584 = vpack.c.b16 %v1583, %v1582
        %v1587 = vsel %vm518, %v1576, 0
        %1589 = vmatprep.subr.bf16.mxu0 0
        %1590 = vmatpush1.bf16.msra.mxu0 %v1584
        %1591 = vmatprep.subr.bf16.mxu0 0
        %1592 = vmatpush1.bf16.msra.mxu0 0
        %1593 = vmatprep.subr.bf16.mxu0 0
        %1594 = vmatpush1.bf16.msra.mxu0 0
        %1595 = vmatprep.subr.bf16.mxu0 0
        %1596 = vmatpush1.bf16.msra.mxu0 0
        %1597 = vmatprep.subr.bf16.mxu0 0
        %1598 = vmatpush1.bf16.msra.mxu0 0
        %1599 = vmatprep.subr.bf16.mxu0 0
        %1600 = vmatpush1.bf16.msra.mxu0 0
        %1601 = vmatprep.subr.bf16.mxu0 0
        %1602 = vmatpush1.bf16.msra.mxu0 0
        %1603 = vmatprep.subr.bf16.mxu0 0
        %1604 = vmatpush1.bf16.msra.mxu0 0
        %1605 = vmatprep.subr.bf16.mxu0 0
        %1606 = vmatpush1.bf16.msra.mxu0 0
        %1607 = vmatprep.subr.bf16.mxu0 0
        %1608 = vmatpush1.bf16.msra.mxu0 0
        %1609 = vmatprep.subr.bf16.mxu0 0
        %1610 = vmatpush1.bf16.msra.mxu0 0
        %1611 = vmatprep.subr.bf16.mxu0 0
        %1612 = vmatpush1.bf16.msra.mxu0 0
        %1613 = vmatprep.subr.bf16.mxu0 0
        %1614 = vmatpush1.bf16.msra.mxu0 0
        %1615 = vmatprep.subr.bf16.mxu0 0
        %1616 = vmatpush1.bf16.msra.mxu0 0
        %1617 = vmatprep.subr.bf16.mxu0 0
        %1618 = vmatpush1.bf16.msra.mxu0 0
        %1619 = vmatprep.subr.bf16.mxu0 0
        %1620 = vmatpush1.bf16.msra.mxu0 0
        %1621 = vmatprep.mubr.bf16.mxu0 0
        %1622 = vmatmul.mubr.bf16.gmra.mrb[0].mxu0 %v650
        %v1623 = vpop.f32.mrb[0].mxu0
        %v1624 = vadd.f32 0.0, %v1623
        %v1625 = vpop.f32.mrb[0].mxu0
        %v1626 = vpop.f32.mrb[0].mxu0
        %v1627 = vadd.f32 0.0, %v1626
        %v1628 = vpop.f32.mrb[0].mxu0
        %1629 = vmatprep.mubr.bf16.mxu0 0
        %1630 = vmatmul.mubr.bf16.gmra.mrb[0].mxu0 %v653
        %v1631 = vpop.f32.mrb[0].mxu0
        %v1632 = vadd.f32 0.0, %v1631
        %v1633 = vpop.f32.mrb[0].mxu0
        %v1634 = vpop.f32.mrb[0].mxu0
        %v1635 = vadd.f32 0.0, %v1634
        %v1636 = vpop.f32.mrb[0].mxu0
        %1637 = vmatprep.mubr.bf16.mxu0 0
        %1638 = vmatmul.mubr.bf16.gmra.mrb[0].mxu0 %v656
        %v1639 = vpop.f32.mrb[0].mxu0
        %v1640 = vadd.f32 0.0, %v1639
        %v1641 = vpop.f32.mrb[0].mxu0
        %v1642 = vpop.f32.mrb[0].mxu0
        %v1643 = vadd.f32 0.0, %v1642
        %v1644 = vpop.f32.mrb[0].mxu0
        %1645 = vmatprep.mubr.bf16.mxu0 0
        %1646 = vmatmul.mubr.bf16.gmra.mrb[0].mxu0 %v659
        %v1647 = vpop.f32.mrb[0].mxu0
        %v1648 = vadd.f32 0.0, %v1647
        %v1649 = vpop.f32.mrb[0].mxu0
        %v1650 = vpop.f32.mrb[0].mxu0
        %v1651 = vadd.f32 0.0, %v1650
        %v1652 = vpop.f32.mrb[0].mxu0
        %1653 = vmatprep.mubr.bf16.mxu0 0
        %1654 = vmatmul.mubr.bf16.gmra.mrb[0].mxu0 %v662
        %v1655 = vpop.f32.mrb[0].mxu0
        %v1656 = vadd.f32 0.0, %v1655
        %v1657 = vpop.f32.mrb[0].mxu0
        %v1658 = vpop.f32.mrb[0].mxu0
        %v1659 = vadd.f32 0.0, %v1658
        %v1660 = vpop.f32.mrb[0].mxu0
        %1661 = vmatprep.mubr.bf16.mxu0 0
        %1662 = vmatmul.mubr.bf16.gmra.mrb[0].mxu0 %v665
        %v1663 = vpop.f32.mrb[0].mxu0
        %v1664 = vadd.f32 0.0, %v1663
        %v1665 = vpop.f32.mrb[0].mxu0
        %v1666 = vpop.f32.mrb[0].mxu0
        %v1667 = vadd.f32 0.0, %v1666
        %v1668 = vpop.f32.mrb[0].mxu0
        %1669 = vmatprep.mubr.bf16.mxu0 0
        %1670 = vmatmul.mubr.bf16.gmra.mrb[0].mxu0 %v668
        %v1671 = vpop.f32.mrb[0].mxu0
        %v1672 = vadd.f32 0.0, %v1671
        %v1673 = vpop.f32.mrb[0].mxu0
        %v1674 = vpop.f32.mrb[0].mxu0
        %v1675 = vadd.f32 0.0, %v1674
        %v1676 = vpop.f32.mrb[0].mxu0
        %1677 = vmatprep.mubr.bf16.mxu0 0
        %1678 = vmatmul.mubr.bf16.gmra.mrb[0].mxu0 %v1587
        %v1679 = vpop.f32.mrb[0].mxu0
        %v1680 = vadd.f32 0.0, %v1679
        %v1681 = vpop.f32.mrb[0].mxu0
        %v1682 = vpop.f32.mrb[0].mxu0
        %v1683 = vadd.f32 0.0, %v1682
        %v1684 = vpop.f32.mrb[0].mxu0
        %1685 = vdwg.mxu0
        %v1686 = vadd.f32 %v1560, %v1624
        %v1687 = vadd.f32 %v1561, %v1627
        %v1688 = vadd.f32 %v1562, %v1632
        %v1689 = vadd.f32 %v1563, %v1635
        %v1690 = vadd.f32 %v1564, %v1640
        %v1691 = vadd.f32 %v1565, %v1643
        %v1692 = vadd.f32 %v1566, %v1648
        %v1693 = vadd.f32 %v1567, %v1651
        %v1694 = vadd.f32 %v1568, %v1656
        %v1695 = vadd.f32 %v1569, %v1659
        %v1696 = vadd.f32 %v1570, %v1664
        %v1697 = vadd.f32 %v1571, %v1667
        %v1698 = vadd.f32 %v1572, %v1672
        %v1699 = vadd.f32 %v1573, %v1675
        %v1700 = vadd.f32 %v1574, %v1680
        %v1701 = vadd.f32 %v1575, %v1683
        %v1705 = vrot.slane %v407, 1
        %v1706 = vrot.slane %v408, 1
        %v1707 = vsel %vm444, %v1705, %v1706
        %v1708 = vrot.slane %v409, 1
        %v1709 = vsel %vm444, %v1706, %v1708
        %v1712 = vpack.c.bf16 %v1709, %v1707
        %s1713 = scalar_lea.vmem %s1, 56
        %v1714 = vld [vmem:[%s1713] sm:$0xf]
        %v1715 = vld [vmem:[%s1713 + $0x4] sm:$0xf]
        %v1718 = vunpack.c.l.b16 %v1714
        %v1719 = vunpack.c.l.b16 %v1715
        %v1720 = vpack.c.b16 %v1719, %v1718
        %v1723 = vsel %vm518, %v1712, 0
        %1725 = vmatprep.subr.bf16.mxu0 0
        %1726 = vmatpush1.bf16.msra.mxu0 %v1720
        %1727 = vmatprep.subr.bf16.mxu0 0
        %1728 = vmatpush1.bf16.msra.mxu0 0
        %1729 = vmatprep.subr.bf16.mxu0 0
        %1730 = vmatpush1.bf16.msra.mxu0 0
        %1731 = vmatprep.subr.bf16.mxu0 0
        %1732 = vmatpush1.bf16.msra.mxu0 0
        %1733 = vmatprep.subr.bf16.mxu0 0
        %1734 = vmatpush1.bf16.msra.mxu0 0
        %1735 = vmatprep.subr.bf16.mxu0 0
        %1736 = vmatpush1.bf16.msra.mxu0 0
        %1737 = vmatprep.subr.bf16.mxu0 0
        %1738 = vmatpush1.bf16.msra.mxu0 0
        %1739 = vmatprep.subr.bf16.mxu0 0
        %1740 = vmatpush1.bf16.msra.mxu0 0
        %1741 = vmatprep.subr.bf16.mxu0 0
        %1742 = vmatpush1.bf16.msra.mxu0 0
        %1743 = vmatprep.subr.bf16.mxu0 0
        %1744 = vmatpush1.bf16.msra.mxu0 0
        %1745 = vmatprep.subr.bf16.mxu0 0
        %1746 = vmatpush1.bf16.msra.mxu0 0
        %1747 = vmatprep.subr.bf16.mxu0 0
        %1748 = vmatpush1.bf16.msra.mxu0 0
        %1749 = vmatprep.subr.bf16.mxu0 0
        %1750 = vmatpush1.bf16.msra.mxu0 0
        %1751 = vmatprep.subr.bf16.mxu0 0
        %1752 = vmatpush1.bf16.msra.mxu0 0
        %1753 = vmatprep.subr.bf16.mxu0 0
        %1754 = vmatpush1.bf16.msra.mxu0 0
        %1755 = vmatprep.subr.bf16.mxu0 0
        %1756 = vmatpush1.bf16.msra.mxu0 0
        %1757 = vmatprep.mubr.bf16.mxu0 0
        %1758 = vmatmul.mubr.bf16.gmra.mrb[0].mxu0 %v523
        %v1759 = vpop.f32.mrb[0].mxu0
        %v1760 = vadd.f32 0.0, %v1759
        %v1761 = vpop.f32.mrb[0].mxu0
        %v1762 = vpop.f32.mrb[0].mxu0
        %v1763 = vadd.f32 0.0, %v1762
        %v1764 = vpop.f32.mrb[0].mxu0
        %1765 = vmatprep.mubr.bf16.mxu0 0
        %1766 = vmatmul.mubr.bf16.gmra.mrb[0].mxu0 %v526
        %v1767 = vpop.f32.mrb[0].mxu0
        %v1768 = vadd.f32 0.0, %v1767
        %v1769 = vpop.f32.mrb[0].mxu0
        %v1770 = vpop.f32.mrb[0].mxu0
        %v1771 = vadd.f32 0.0, %v1770
        %v1772 = vpop.f32.mrb[0].mxu0
        %1773 = vmatprep.mubr.bf16.mxu0 0
        %1774 = vmatmul.mubr.bf16.gmra.mrb[0].mxu0 %v529
        %v1775 = vpop.f32.mrb[0].mxu0
        %v1776 = vadd.f32 0.0, %v1775
        %v1777 = vpop.f32.mrb[0].mxu0
        %v1778 = vpop.f32.mrb[0].mxu0
        %v1779 = vadd.f32 0.0, %v1778
        %v1780 = vpop.f32.mrb[0].mxu0
        %1781 = vmatprep.mubr.bf16.mxu0 0
        %1782 = vmatmul.mubr.bf16.gmra.mrb[0].mxu0 %v532
        %v1783 = vpop.f32.mrb[0].mxu0
        %v1784 = vadd.f32 0.0, %v1783
        %v1785 = vpop.f32.mrb[0].mxu0
        %v1786 = vpop.f32.mrb[0].mxu0
        %v1787 = vadd.f32 0.0, %v1786
        %v1788 = vpop.f32.mrb[0].mxu0
        %1789 = vmatprep.mubr.bf16.mxu0 0
        %1790 = vmatmul.mubr.bf16.gmra.mrb[0].mxu0 %v535
        %v1791 = vpop.f32.mrb[0].mxu0
        %v1792 = vadd.f32 0.0, %v1791
        %v1793 = vpop.f32.mrb[0].mxu0
        %v1794 = vpop.f32.mrb[0].mxu0
        %v1795 = vadd.f32 0.0, %v1794
        %v1796 = vpop.f32.mrb[0].mxu0
        %1797 = vmatprep.mubr.bf16.mxu0 0
        %1798 = vmatmul.mubr.bf16.gmra.mrb[0].mxu0 %v538
        %v1799 = vpop.f32.mrb[0].mxu0
        %v1800 = vadd.f32 0.0, %v1799
        %v1801 = vpop.f32.mrb[0].mxu0
        %v1802 = vpop.f32.mrb[0].mxu0
        %v1803 = vadd.f32 0.0, %v1802
        %v1804 = vpop.f32.mrb[0].mxu0
        %1805 = vmatprep.mubr.bf16.mxu0 0
        %1806 = vmatmul.mubr.bf16.gmra.mrb[0].mxu0 %v541
        %v1807 = vpop.f32.mrb[0].mxu0
        %v1808 = vadd.f32 0.0, %v1807
        %v1809 = vpop.f32.mrb[0].mxu0
        %v1810 = vpop.f32.mrb[0].mxu0
        %v1811 = vadd.f32 0.0, %v1810
        %v1812 = vpop.f32.mrb[0].mxu0
        %1813 = vmatprep.mubr.bf16.mxu0 0
        %1814 = vmatmul.mubr.bf16.gmra.mrb[0].mxu0 %v1723
        %v1815 = vpop.f32.mrb[0].mxu0
        %v1816 = vadd.f32 0.0, %v1815
        %v1817 = vpop.f32.mrb[0].mxu0
        %v1818 = vpop.f32.mrb[0].mxu0
        %v1819 = vadd.f32 0.0, %v1818
        %v1820 = vpop.f32.mrb[0].mxu0
        %1821 = vdwg.mxu0
        %v1822 = vadd.f32 %v1686, %v1760
        %v1823 = vadd.f32 %v1687, %v1763
        %v1824 = vadd.f32 %v1688, %v1768
        %v1825 = vadd.f32 %v1689, %v1771
        %v1826 = vadd.f32 %v1690, %v1776
        %v1827 = vadd.f32 %v1691, %v1779
        %v1828 = vadd.f32 %v1692, %v1784
        %v1829 = vadd.f32 %v1693, %v1787
        %v1830 = vadd.f32 %v1694, %v1792
        %v1831 = vadd.f32 %v1695, %v1795
        %v1832 = vadd.f32 %v1696, %v1800
        %v1833 = vadd.f32 %v1697, %v1803
        %v1834 = vadd.f32 %v1698, %v1808
        %v1835 = vadd.f32 %v1699, %v1811
        %v1836 = vadd.f32 %v1700, %v1816
        %v1837 = vadd.f32 %v1701, %v1819
        %v1838 = vrot.slane %v407, 2
        %v1839 = vrot.slane %v408, 2
        %v1840 = vsel %vm767, %v1838, %v1839
        %v1841 = vrot.slane %v409, 2
        %v1842 = vsel %vm767, %v1839, %v1841
        %v1845 = vpack.c.bf16 %v1842, %v1840
        %s1846 = scalar_lea.vmem %s1, 64
        %v1847 = vld [vmem:[%s1846] sm:$0xf]
        %v1848 = vld [vmem:[%s1846 + $0x4] sm:$0xf]
        %v1851 = vunpack.c.l.b16 %v1847
        %v1852 = vunpack.c.l.b16 %v1848
        %v1853 = vpack.c.b16 %v1852, %v1851
        %v1856 = vsel %vm518, %v1845, 0
        %1858 = vmatprep.subr.bf16.mxu0 0
        %1859 = vmatpush1.bf16.msra.mxu0 %v1853
        %1860 = vmatprep.subr.bf16.mxu0 0
        %1861 = vmatpush1.bf16.msra.mxu0 0
        %1862 = vmatprep.subr.bf16.mxu0 0
        %1863 = vmatpush1.bf16.msra.mxu0 0
        %1864 = vmatprep.subr.bf16.mxu0 0
        %1865 = vmatpush1.bf16.msra.mxu0 0
        %1866 = vmatprep.subr.bf16.mxu0 0
        %1867 = vmatpush1.bf16.msra.mxu0 0
        %1868 = vmatprep.subr.bf16.mxu0 0
        %1869 = vmatpush1.bf16.msra.mxu0 0
        %1870 = vmatprep.subr.bf16.mxu0 0
        %1871 = vmatpush1.bf16.msra.mxu0 0
        %1872 = vmatprep.subr.bf16.mxu0 0
        %1873 = vmatpush1.bf16.msra.mxu0 0
        %1874 = vmatprep.subr.bf16.mxu0 0
        %1875 = vmatpush1.bf16.msra.mxu0 0
        %1876 = vmatprep.subr.bf16.mxu0 0
        %1877 = vmatpush1.bf16.msra.mxu0 0
        %1878 = vmatprep.subr.bf16.mxu0 0
        %1879 = vmatpush1.bf16.msra.mxu0 0
        %1880 = vmatprep.subr.bf16.mxu0 0
        %1881 = vmatpush1.bf16.msra.mxu0 0
        %1882 = vmatprep.subr.bf16.mxu0 0
        %1883 = vmatpush1.bf16.msra.mxu0 0
        %1884 = vmatprep.subr.bf16.mxu0 0
        %1885 = vmatpush1.bf16.msra.mxu0 0
        %1886 = vmatprep.subr.bf16.mxu0 0
        %1887 = vmatpush1.bf16.msra.mxu0 0
        %1888 = vmatprep.subr.bf16.mxu0 0
        %1889 = vmatpush1.bf16.msra.mxu0 0
        %1890 = vmatprep.mubr.bf16.mxu0 0
        %1891 = vmatmul.mubr.bf16.gmra.mrb[0].mxu0 %v845
        %v1892 = vpop.f32.mrb[0].mxu0
        %v1893 = vadd.f32 0.0, %v1892
        %v1894 = vpop.f32.mrb[0].mxu0
        %v1895 = vpop.f32.mrb[0].mxu0
        %v1896 = vadd.f32 0.0, %v1895
        %v1897 = vpop.f32.mrb[0].mxu0
        %1898 = vmatprep.mubr.bf16.mxu0 0
        %1899 = vmatmul.mubr.bf16.gmra.mrb[0].mxu0 %v848
        %v1900 = vpop.f32.mrb[0].mxu0
        %v1901 = vadd.f32 0.0, %v1900
        %v1902 = vpop.f32.mrb[0].mxu0
        %v1903 = vpop.f32.mrb[0].mxu0
        %v1904 = vadd.f32 0.0, %v1903
        %v1905 = vpop.f32.mrb[0].mxu0
        %1906 = vmatprep.mubr.bf16.mxu0 0
        %1907 = vmatmul.mubr.bf16.gmra.mrb[0].mxu0 %v851
        %v1908 = vpop.f32.mrb[0].mxu0
        %v1909 = vadd.f32 0.0, %v1908
        %v1910 = vpop.f32.mrb[0].mxu0
        %v1911 = vpop.f32.mrb[0].mxu0
        %v1912 = vadd.f32 0.0, %v1911
        %v1913 = vpop.f32.mrb[0].mxu0
        %1914 = vmatprep.mubr.bf16.mxu0 0
        %1915 = vmatmul.mubr.bf16.gmra.mrb[0].mxu0 %v854
        %v1916 = vpop.f32.mrb[0].mxu0
        %v1917 = vadd.f32 0.0, %v1916
        %v1918 = vpop.f32.mrb[0].mxu0
        %v1919 = vpop.f32.mrb[0].mxu0
        %v1920 = vadd.f32 0.0, %v1919
        %v1921 = vpop.f32.mrb[0].mxu0
        %1922 = vmatprep.mubr.bf16.mxu0 0
        %1923 = vmatmul.mubr.bf16.gmra.mrb[0].mxu0 %v857
        %v1924 = vpop.f32.mrb[0].mxu0
        %v1925 = vadd.f32 0.0, %v1924
        %v1926 = vpop.f32.mrb[0].mxu0
        %v1927 = vpop.f32.mrb[0].mxu0
        %v1928 = vadd.f32 0.0, %v1927
        %v1929 = vpop.f32.mrb[0].mxu0
        %1930 = vmatprep.mubr.bf16.mxu0 0
        %1931 = vmatmul.mubr.bf16.gmra.mrb[0].mxu0 %v860
        %v1932 = vpop.f32.mrb[0].mxu0
        %v1933 = vadd.f32 0.0, %v1932
        %v1934 = vpop.f32.mrb[0].mxu0
        %v1935 = vpop.f32.mrb[0].mxu0
        %v1936 = vadd.f32 0.0, %v1935
        %v1937 = vpop.f32.mrb[0].mxu0
        %1938 = vmatprep.mubr.bf16.mxu0 0
        %1939 = vmatmul.mubr.bf16.gmra.mrb[0].mxu0 %v863
        %v1940 = vpop.f32.mrb[0].mxu0
        %v1941 = vadd.f32 0.0, %v1940
        %v1942 = vpop.f32.mrb[0].mxu0
        %v1943 = vpop.f32.mrb[0].mxu0
        %v1944 = vadd.f32 0.0, %v1943
        %v1945 = vpop.f32.mrb[0].mxu0
        %1946 = vmatprep.mubr.bf16.mxu0 0
        %1947 = vmatmul.mubr.bf16.gmra.mrb[0].mxu0 %v1856
        %v1948 = vpop.f32.mrb[0].mxu0
        %v1949 = vadd.f32 0.0, %v1948
        %v1950 = vpop.f32.mrb[0].mxu0
        %v1951 = vpop.f32.mrb[0].mxu0
        %v1952 = vadd.f32 0.0, %v1951
        %v1953 = vpop.f32.mrb[0].mxu0
        %1954 = vdwg.mxu0
        %v1955 = vadd.f32 %v1822, %v1893
        %v1956 = vadd.f32 %v1823, %v1896
        %v1957 = vadd.f32 %v1824, %v1901
        %v1958 = vadd.f32 %v1825, %v1904
        %v1959 = vadd.f32 %v1826, %v1909
        %v1960 = vadd.f32 %v1827, %v1912
        %v1961 = vadd.f32 %v1828, %v1917
        %v1962 = vadd.f32 %v1829, %v1920
        %v1963 = vadd.f32 %v1830, %v1925
        %v1964 = vadd.f32 %v1831, %v1928
        %v1965 = vadd.f32 %v1832, %v1933
        %v1966 = vadd.f32 %v1833, %v1936
        %v1967 = vadd.f32 %v1834, %v1941
        %v1968 = vadd.f32 %v1835, %v1944
        %v1969 = vadd.f32 %v1836, %v1949
        %v1970 = vadd.f32 %v1837, %v1952
        %v1971 = vld [vmem:[%s2] sm:$0x1]
        %v1973 = vlaneseq
        %v1974 = vshrl.u32 %v1973, 7
        %v1975 = vsub.s32 0, %v1974
        %v1976 = vrot.slane %v1971, %v1975
        %v1978 = vadd.f32 %v1955, %v1976
        %v1979 = vadd.f32 %v1956, %v1976
        %v1980 = vadd.f32 %v1957, %v1976
        %v1981 = vadd.f32 %v1958, %v1976
        %v1982 = vadd.f32 %v1959, %v1976
        %v1983 = vadd.f32 %v1960, %v1976
        %v1984 = vadd.f32 %v1961, %v1976
        %v1985 = vadd.f32 %v1962, %v1976
        %v1986 = vadd.f32 %v1963, %v1976
        %v1987 = vadd.f32 %v1964, %v1976
        %v1988 = vadd.f32 %v1965, %v1976
        %v1989 = vadd.f32 %v1966, %v1976
        %v1990 = vadd.f32 %v1967, %v1976
        %v1991 = vadd.f32 %v1968, %v1976
        %v1992 = vadd.f32 %v1969, %v1976
        %v1993 = vadd.f32 %v1970, %v1976
        %v1994 = vmax.f32 %v1978, 0.0
        %v1995 = vmax.f32 %v1979, 0.0
        %v1996 = vmax.f32 %v1980, 0.0
        %v1997 = vmax.f32 %v1981, 0.0
        %v1998 = vmax.f32 %v1982, 0.0
        %v1999 = vmax.f32 %v1983, 0.0
        %v2000 = vmax.f32 %v1984, 0.0
        %v2001 = vmax.f32 %v1985, 0.0
        %v2002 = vmax.f32 %v1986, 0.0
        %v2003 = vmax.f32 %v1987, 0.0
        %v2004 = vmax.f32 %v1988, 0.0
        %v2005 = vmax.f32 %v1989, 0.0
        %v2006 = vmax.f32 %v1990, 0.0
        %v2007 = vmax.f32 %v1991, 0.0
        %v2008 = vmax.f32 %v1992, 0.0
        %v2009 = vmax.f32 %v1993, 0.0
        %vm2010 = vcmask 64512
        %2011 = vst.msk [vmem:[#allocation2] sm:$0xff] %vm2010, 0.0
        %2012 = vst.msk [vmem:[#allocation2 + $0x8] sm:$0xff] %vm2010, 0.0
        %vm2013 = vcmask 58368
        %2014 = vst.msk [vmem:[#allocation2 + $0x10] sm:$0x3] %vm2013, 0.0
        %s2015 = scalar_lea.vmem [#allocation2], 216
        %2016 = vst.msk [vmem:[%s2015] sm:$0xff] %vm2010, 0.0
        %2017 = vst.msk [vmem:[%s2015 + $0x8] sm:$0xff] %vm2010, 0.0
        %2018 = vst.msk [vmem:[%s2015 + $0x10] sm:$0x3] %vm2013, 0.0
        %vm2019 = vcmask 57344
        %2020 = vst.msk [vmem:[#allocation2] sm:$0x1] %vm2019, 0.0
        %2021 = vst.msk [vmem:[#allocation2 + $0x18] sm:$0x1] %vm2019, 0.0
        %2022 = vst.msk [vmem:[#allocation2 + $0x30] sm:$0x1] %vm2019, 0.0
        %2023 = vst.msk [vmem:[#allocation2 + $0x48] sm:$0x1] %vm2019, 0.0
        %2024 = vst.msk [vmem:[#allocation2 + $0x60] sm:$0x1] %vm2019, 0.0
        %2025 = vst.msk [vmem:[#allocation2 + $0x78] sm:$0x1] %vm2019, 0.0
        %2026 = vst.msk [vmem:[#allocation2 + $0x90] sm:$0x1] %vm2019, 0.0
        %2027 = vst.msk [vmem:[#allocation2 + $0xa8] sm:$0x1] %vm2019, 0.0
        %2028 = vst.msk [vmem:[#allocation2 + $0xc0] sm:$0x1] %vm2019, 0.0
        %2029 = vst.msk [vmem:[#allocation2 + $0xd8] sm:$0x1] %vm2019, 0.0
        %2030 = vst.msk [vmem:[#allocation2 + $0x11] sm:$0x1] %vm2019, 0.0
        %2031 = vst.msk [vmem:[#allocation2 + $0x29] sm:$0x1] %vm2019, 0.0
        %2032 = vst.msk [vmem:[#allocation2 + $0x41] sm:$0x1] %vm2019, 0.0
        %2033 = vst.msk [vmem:[#allocation2 + $0x59] sm:$0x1] %vm2019, 0.0
        %2034 = vst.msk [vmem:[#allocation2 + $0x71] sm:$0x1] %vm2019, 0.0
        %2035 = vst.msk [vmem:[#allocation2 + $0x89] sm:$0x1] %vm2019, 0.0
        %2036 = vst.msk [vmem:[#allocation2 + $0xa1] sm:$0x1] %vm2019, 0.0
        %2037 = vst.msk [vmem:[#allocation2 + $0xb9] sm:$0x1] %vm2019, 0.0
        %2038 = vst.msk [vmem:[#allocation2 + $0xd1] sm:$0x1] %vm2019, 0.0
        %2039 = vst.msk [vmem:[#allocation2 + $0xe9] sm:$0x1] %vm2019, 0.0
        %s2040 = scalar_lea.vmem [#allocation2], 24
        %2041 = vst.msk [vmem:[%s2040 + $0x1] sm:$0xff] %vm2010, %v1994
        %2042 = vst.msk [vmem:[%s2040 + $0x9] sm:$0xff] %vm2010, %v1995
        %2043 = vst.msk [vmem:[%s2040 + $0x19] sm:$0xff] %vm2010, %v1996
        %2044 = vst.msk [vmem:[%s2040 + $0x21] sm:$0xff] %vm2010, %v1997
        %2045 = vst.msk [vmem:[%s2040 + $0x31] sm:$0xff] %vm2010, %v1998
        %2046 = vst.msk [vmem:[%s2040 + $0x39] sm:$0xff] %vm2010, %v1999
        %2047 = vst.msk [vmem:[%s2040 + $0x49] sm:$0xff] %vm2010, %v2000
        %2048 = vst.msk [vmem:[%s2040 + $0x51] sm:$0xff] %vm2010, %v2001
        %2049 = vst.msk [vmem:[%s2040 + $0x61] sm:$0xff] %vm2010, %v2002
        %2050 = vst.msk [vmem:[%s2040 + $0x69] sm:$0xff] %vm2010, %v2003
        %2051 = vst.msk [vmem:[%s2040 + $0x79] sm:$0xff] %vm2010, %v2004
        %2052 = vst.msk [vmem:[%s2040 + $0x81] sm:$0xff] %vm2010, %v2005
        %2053 = vst.msk [vmem:[%s2040 + $0x91] sm:$0xff] %vm2010, %v2006
        %2054 = vst.msk [vmem:[%s2040 + $0x99] sm:$0xff] %vm2010, %v2007
        %2055 = vst.msk [vmem:[%s2040 + $0xa9] sm:$0xff] %vm2010, %v2008
        %2056 = vst.msk [vmem:[%s2040 + $0xb1] sm:$0xff] %vm2010, %v2009
        %v2057 = vld [vmem:[#allocation2] sm:$0xff]
        %v2058 = vld [vmem:[#allocation2 + $0x8] sm:$0xff]
        %v2059 = vld [vmem:[#allocation2 + $0x10] sm:$0x3]
        %v2060 = vld [vmem:[#allocation2 + $0x18] sm:$0xff]
        %v2061 = vld [vmem:[#allocation2 + $0x20] sm:$0xff]
        %v2062 = vld [vmem:[#allocation2 + $0x28] sm:$0x3]
        %v2063 = vld [vmem:[#allocation2 + $0x30] sm:$0xff]
        %v2064 = vld [vmem:[#allocation2 + $0x38] sm:$0xff]
        %v2065 = vld [vmem:[#allocation2 + $0x40] sm:$0x3]
        %v2066 = vld [vmem:[#allocation2 + $0x48] sm:$0xff]
        %v2067 = vld [vmem:[#allocation2 + $0x50] sm:$0xff]
        %v2068 = vld [vmem:[#allocation2 + $0x58] sm:$0x3]
        %v2069 = vld [vmem:[#allocation2 + $0x60] sm:$0xff]
        %v2070 = vld [vmem:[#allocation2 + $0x68] sm:$0xff]
        %v2071 = vld [vmem:[#allocation2 + $0x70] sm:$0x3]
        %v2072 = vld [vmem:[#allocation2 + $0x78] sm:$0xff]
        %v2073 = vld [vmem:[#allocation2 + $0x80] sm:$0xff]
        %v2074 = vld [vmem:[#allocation2 + $0x88] sm:$0x3]
        %v2075 = vld [vmem:[#allocation2 + $0x90] sm:$0xff]
        %v2076 = vld [vmem:[#allocation2 + $0x98] sm:$0xff]
        %v2077 = vld [vmem:[#allocation2 + $0xa0] sm:$0x3]
        %v2078 = vld [vmem:[#allocation2 + $0xa8] sm:$0xff]
        %v2079 = vld [vmem:[#allocation2 + $0xb0] sm:$0xff]
        %v2080 = vld [vmem:[#allocation2 + $0xb8] sm:$0x3]
        %v2081 = vld [vmem:[#allocation2 + $0xc0] sm:$0xff]
        %v2082 = vld [vmem:[#allocation2 + $0xc8] sm:$0xff]
        %v2083 = vld [vmem:[#allocation2 + $0xd0] sm:$0x3]
        %v2084 = vpack.c.bf16 %v2058, %v2057
        %v2085 = vpack.c.bf16 %v2064, %v2063
        %v2086 = vpack.c.bf16 %v2070, %v2069
        %v2087 = vpack.c.bf16 %v2076, %v2075
        %v2088 = vld [vmem:[%s3] sm:$0xf]
        %v2101 = vrot.slane %v2057, 1
        %v2102 = vrot.slane %v2058, 1
        %v2103 = vsel %vm444, %v2101, %v2102
        %v2104 = vrot.slane %v2059, 1
        %v2105 = vsel %vm444, %v2102, %v2104
        %v2106 = vrot.slane %v2063, 1
        %v2107 = vrot.slane %v2064, 1
        %v2108 = vsel %vm444, %v2106, %v2107
        %v2109 = vrot.slane %v2065, 1
        %v2110 = vsel %vm444, %v2107, %v2109
        %v2111 = vrot.slane %v2069, 1
        %v2112 = vrot.slane %v2070, 1
        %v2113 = vsel %vm444, %v2111, %v2112
        %v2114 = vrot.slane %v2071, 1
        %v2115 = vsel %vm444, %v2112, %v2114
        %v2116 = vrot.slane %v2075, 1
        %v2117 = vrot.slane %v2076, 1
        %v2118 = vsel %vm444, %v2116, %v2117
        %v2119 = vrot.slane %v2077, 1
        %v2120 = vsel %vm444, %v2117, %v2119
        %v2129 = vpack.c.bf16 %v2105, %v2103
        %v2130 = vpack.c.bf16 %v2110, %v2108
        %v2131 = vpack.c.bf16 %v2115, %v2113
        %v2132 = vpack.c.bf16 %v2120, %v2118
        %s2133 = scalar_lea.vmem %s3, 4
        %v2134 = vld [vmem:[%s2133] sm:$0xf]
        %v2136 = vsel %vm2010, %v2129, 0
        %v2139 = vsel %vm2010, %v2130, 0
        %v2142 = vsel %vm2010, %v2131, 0
        %v2145 = vsel %vm2010, %v2132, 0
        %vm2147 = vcmask 1043456
        %v2149 = vsel %vm2147, %v2134, 0
        %2151 = vmatprep.subr.bf16.mxu0 0
        %2152 = vmatpush1.bf16.msra.mxu0 %v2149
        %2153 = vmatprep.subr.bf16.mxu0 0
        %2154 = vmatpush1.bf16.msra.mxu0 0
        %2155 = vmatprep.subr.bf16.mxu0 0
        %2156 = vmatpush1.bf16.msra.mxu0 0
        %2157 = vmatprep.subr.bf16.mxu0 0
        %2158 = vmatpush1.bf16.msra.mxu0 0
        %2159 = vmatprep.subr.bf16.mxu0 0
        %2160 = vmatpush1.bf16.msra.mxu0 0
        %2161 = vmatprep.subr.bf16.mxu0 0
        %2162 = vmatpush1.bf16.msra.mxu0 0
        %2163 = vmatprep.subr.bf16.mxu0 0
        %2164 = vmatpush1.bf16.msra.mxu0 0
        %2165 = vmatprep.subr.bf16.mxu0 0
        %2166 = vmatpush1.bf16.msra.mxu0 0
        %2167 = vmatprep.subr.bf16.mxu0 0
        %2168 = vmatpush1.bf16.msra.mxu0 0
        %2169 = vmatprep.subr.bf16.mxu0 0
        %2170 = vmatpush1.bf16.msra.mxu0 0
        %2171 = vmatprep.subr.bf16.mxu0 0
        %2172 = vmatpush1.bf16.msra.mxu0 0
        %2173 = vmatprep.subr.bf16.mxu0 0
        %2174 = vmatpush1.bf16.msra.mxu0 0
        %2175 = vmatprep.subr.bf16.mxu0 0
        %2176 = vmatpush1.bf16.msra.mxu0 0
        %2177 = vmatprep.subr.bf16.mxu0 0
        %2178 = vmatpush1.bf16.msra.mxu0 0
        %2179 = vmatprep.subr.bf16.mxu0 0
        %2180 = vmatpush1.bf16.msra.mxu0 0
        %2181 = vmatprep.subr.bf16.mxu0 0
        %2182 = vmatpush1.bf16.msra.mxu0 0
        %2183 = vmatprep.mubr.bf16.mxu0 0
        %2184 = vmatmul.mubr.bf16.gmra.mrb[0].mxu0 %v2136
        %v2185 = vpop.f32.mrb[0].mxu0
        %v2186 = vadd.f32 0.0, %v2185
        %v2187 = vpop.f32.mrb[0].mxu0
        %v2188 = vpop.f32.mrb[0].mxu0
        %v2189 = vadd.f32 0.0, %v2188
        %v2190 = vpop.f32.mrb[0].mxu0
        %2191 = vmatprep.mubr.bf16.mxu0 0
        %2192 = vmatmul.mubr.bf16.gmra.mrb[0].mxu0 %v2139
        %v2193 = vpop.f32.mrb[0].mxu0
        %v2194 = vadd.f32 0.0, %v2193
        %v2195 = vpop.f32.mrb[0].mxu0
        %v2196 = vpop.f32.mrb[0].mxu0
        %v2197 = vadd.f32 0.0, %v2196
        %v2198 = vpop.f32.mrb[0].mxu0
        %2199 = vmatprep.mubr.bf16.mxu0 0
        %2200 = vmatmul.mubr.bf16.gmra.mrb[0].mxu0 %v2142
        %v2201 = vpop.f32.mrb[0].mxu0
        %v2202 = vadd.f32 0.0, %v2201
        %v2203 = vpop.f32.mrb[0].mxu0
        %v2204 = vpop.f32.mrb[0].mxu0
        %v2205 = vadd.f32 0.0, %v2204
        %v2206 = vpop.f32.mrb[0].mxu0
        %2207 = vmatprep.mubr.bf16.mxu0 0
        %2208 = vmatmul.mubr.bf16.gmra.mrb[0].mxu0 %v2145
        %v2209 = vpop.f32.mrb[0].mxu0
        %v2210 = vadd.f32 0.0, %v2209
        %v2211 = vpop.f32.mrb[0].mxu0
        %v2212 = vpop.f32.mrb[0].mxu0
        %v2213 = vadd.f32 0.0, %v2212
        %v2214 = vpop.f32.mrb[0].mxu0
        %2215 = vdwg.mxu0
        %v2217 = vsel %vm2010, %v2084, 0
        %v2220 = vsel %vm2010, %v2085, 0
        %v2223 = vsel %vm2010, %v2086, 0
        %v2226 = vsel %vm2010, %v2087, 0
        %v2229 = vsel %vm2147, %v2088, 0
        %2231 = vmatprep.subr.bf16.mxu0 0
        %2232 = vmatpush1.bf16.msra.mxu0 %v2229
        %2233 = vmatprep.subr.bf16.mxu0 0
        %2234 = vmatpush1.bf16.msra.mxu0 0
        %2235 = vmatprep.subr.bf16.mxu0 0
        %2236 = vmatpush1.bf16.msra.mxu0 0
        %2237 = vmatprep.subr.bf16.mxu0 0
        %2238 = vmatpush1.bf16.msra.mxu0 0
        %2239 = vmatprep.subr.bf16.mxu0 0
        %2240 = vmatpush1.bf16.msra.mxu0 0
        %2241 = vmatprep.subr.bf16.mxu0 0
        %2242 = vmatpush1.bf16.msra.mxu0 0
        %2243 = vmatprep.subr.bf16.mxu0 0
        %2244 = vmatpush1.bf16.msra.mxu0 0
        %2245 = vmatprep.subr.bf16.mxu0 0
        %2246 = vmatpush1.bf16.msra.mxu0 0
        %2247 = vmatprep.subr.bf16.mxu0 0
        %2248 = vmatpush1.bf16.msra.mxu0 0
        %2249 = vmatprep.subr.bf16.mxu0 0
        %2250 = vmatpush1.bf16.msra.mxu0 0
        %2251 = vmatprep.subr.bf16.mxu0 0
        %2252 = vmatpush1.bf16.msra.mxu0 0
        %2253 = vmatprep.subr.bf16.mxu0 0
        %2254 = vmatpush1.bf16.msra.mxu0 0
        %2255 = vmatprep.subr.bf16.mxu0 0
        %2256 = vmatpush1.bf16.msra.mxu0 0
        %2257 = vmatprep.subr.bf16.mxu0 0
        %2258 = vmatpush1.bf16.msra.mxu0 0
        %2259 = vmatprep.subr.bf16.mxu0 0
        %2260 = vmatpush1.bf16.msra.mxu0 0
        %2261 = vmatprep.subr.bf16.mxu0 0
        %2262 = vmatpush1.bf16.msra.mxu0 0
        %2263 = vmatprep.mubr.bf16.mxu0 0
        %2264 = vmatmul.mubr.bf16.gmra.mrb[0].mxu0 %v2217
        %v2265 = vpop.f32.mrb[0].mxu0
        %v2266 = vadd.f32 %v2186, %v2265
        %v2267 = vpop.f32.mrb[0].mxu0
        %v2268 = vpop.f32.mrb[0].mxu0
        %v2269 = vadd.f32 %v2189, %v2268
        %v2270 = vpop.f32.mrb[0].mxu0
        %2271 = vmatprep.mubr.bf16.mxu0 0
        %2272 = vmatmul.mubr.bf16.gmra.mrb[0].mxu0 %v2220
        %v2273 = vpop.f32.mrb[0].mxu0
        %v2274 = vadd.f32 %v2194, %v2273
        %v2275 = vpop.f32.mrb[0].mxu0
        %v2276 = vpop.f32.mrb[0].mxu0
        %v2277 = vadd.f32 %v2197, %v2276
        %v2278 = vpop.f32.mrb[0].mxu0
        %2279 = vmatprep.mubr.bf16.mxu0 0
        %2280 = vmatmul.mubr.bf16.gmra.mrb[0].mxu0 %v2223
        %v2281 = vpop.f32.mrb[0].mxu0
        %v2282 = vadd.f32 %v2202, %v2281
        %v2283 = vpop.f32.mrb[0].mxu0
        %v2284 = vpop.f32.mrb[0].mxu0
        %v2285 = vadd.f32 %v2205, %v2284
        %v2286 = vpop.f32.mrb[0].mxu0
        %2287 = vmatprep.mubr.bf16.mxu0 0
        %2288 = vmatmul.mubr.bf16.gmra.mrb[0].mxu0 %v2226
        %v2289 = vpop.f32.mrb[0].mxu0
        %v2290 = vadd.f32 %v2210, %v2289
        %v2291 = vpop.f32.mrb[0].mxu0
        %v2292 = vpop.f32.mrb[0].mxu0
        %v2293 = vadd.f32 %v2213, %v2292
        %v2294 = vpop.f32.mrb[0].mxu0
        %2295 = vdwg.mxu0
        %v2296 = vrot.slane %v2057, 2
        %v2297 = vrot.slane %v2058, 2
        %v2298 = vsel %vm767, %v2296, %v2297
        %v2299 = vrot.slane %v2059, 2
        %v2300 = vsel %vm767, %v2297, %v2299
        %v2301 = vrot.slane %v2063, 2
        %v2302 = vrot.slane %v2064, 2
        %v2303 = vsel %vm767, %v2301, %v2302
        %v2304 = vrot.slane %v2065, 2
        %v2305 = vsel %vm767, %v2302, %v2304
        %v2306 = vrot.slane %v2069, 2
        %v2307 = vrot.slane %v2070, 2
        %v2308 = vsel %vm767, %v2306, %v2307
        %v2309 = vrot.slane %v2071, 2
        %v2310 = vsel %vm767, %v2307, %v2309
        %v2311 = vrot.slane %v2075, 2
        %v2312 = vrot.slane %v2076, 2
        %v2313 = vsel %vm767, %v2311, %v2312
        %v2314 = vrot.slane %v2077, 2
        %v2315 = vsel %vm767, %v2312, %v2314
        %v2324 = vpack.c.bf16 %v2300, %v2298
        %v2325 = vpack.c.bf16 %v2305, %v2303
        %v2326 = vpack.c.bf16 %v2310, %v2308
        %v2327 = vpack.c.bf16 %v2315, %v2313
        %s2328 = scalar_lea.vmem %s3, 8
        %v2329 = vld [vmem:[%s2328] sm:$0xf]
        %v2331 = vsel %vm2010, %v2324, 0
        %v2334 = vsel %vm2010, %v2325, 0
        %v2337 = vsel %vm2010, %v2326, 0
        %v2340 = vsel %vm2010, %v2327, 0
        %v2343 = vsel %vm2147, %v2329, 0
        %2345 = vmatprep.subr.bf16.mxu0 0
        %2346 = vmatpush1.bf16.msra.mxu0 %v2343
        %2347 = vmatprep.subr.bf16.mxu0 0
        %2348 = vmatpush1.bf16.msra.mxu0 0
        %2349 = vmatprep.subr.bf16.mxu0 0
        %2350 = vmatpush1.bf16.msra.mxu0 0
        %2351 = vmatprep.subr.bf16.mxu0 0
        %2352 = vmatpush1.bf16.msra.mxu0 0
        %2353 = vmatprep.subr.bf16.mxu0 0
        %2354 = vmatpush1.bf16.msra.mxu0 0
        %2355 = vmatprep.subr.bf16.mxu0 0
        %2356 = vmatpush1.bf16.msra.mxu0 0
        %2357 = vmatprep.subr.bf16.mxu0 0
        %2358 = vmatpush1.bf16.msra.mxu0 0
        %2359 = vmatprep.subr.bf16.mxu0 0
        %2360 = vmatpush1.bf16.msra.mxu0 0
        %2361 = vmatprep.subr.bf16.mxu0 0
        %2362 = vmatpush1.bf16.msra.mxu0 0
        %2363 = vmatprep.subr.bf16.mxu0 0
        %2364 = vmatpush1.bf16.msra.mxu0 0
        %2365 = vmatprep.subr.bf16.mxu0 0
        %2366 = vmatpush1.bf16.msra.mxu0 0
        %2367 = vmatprep.subr.bf16.mxu0 0
        %2368 = vmatpush1.bf16.msra.mxu0 0
        %2369 = vmatprep.subr.bf16.mxu0 0
        %2370 = vmatpush1.bf16.msra.mxu0 0
        %2371 = vmatprep.subr.bf16.mxu0 0
        %2372 = vmatpush1.bf16.msra.mxu0 0
        %2373 = vmatprep.subr.bf16.mxu0 0
        %2374 = vmatpush1.bf16.msra.mxu0 0
        %2375 = vmatprep.subr.bf16.mxu0 0
        %2376 = vmatpush1.bf16.msra.mxu0 0
        %2377 = vmatprep.mubr.bf16.mxu0 0
        %2378 = vmatmul.mubr.bf16.gmra.mrb[0].mxu0 %v2331
        %v2379 = vpop.f32.mrb[0].mxu0
        %v2380 = vadd.f32 0.0, %v2379
        %v2381 = vpop.f32.mrb[0].mxu0
        %v2382 = vpop.f32.mrb[0].mxu0
        %v2383 = vadd.f32 0.0, %v2382
        %v2384 = vpop.f32.mrb[0].mxu0
        %2385 = vmatprep.mubr.bf16.mxu0 0
        %2386 = vmatmul.mubr.bf16.gmra.mrb[0].mxu0 %v2334
        %v2387 = vpop.f32.mrb[0].mxu0
        %v2388 = vadd.f32 0.0, %v2387
        %v2389 = vpop.f32.mrb[0].mxu0
        %v2390 = vpop.f32.mrb[0].mxu0
        %v2391 = vadd.f32 0.0, %v2390
        %v2392 = vpop.f32.mrb[0].mxu0
        %2393 = vmatprep.mubr.bf16.mxu0 0
        %2394 = vmatmul.mubr.bf16.gmra.mrb[0].mxu0 %v2337
        %v2395 = vpop.f32.mrb[0].mxu0
        %v2396 = vadd.f32 0.0, %v2395
        %v2397 = vpop.f32.mrb[0].mxu0
        %v2398 = vpop.f32.mrb[0].mxu0
        %v2399 = vadd.f32 0.0, %v2398
        %v2400 = vpop.f32.mrb[0].mxu0
        %2401 = vmatprep.mubr.bf16.mxu0 0
        %2402 = vmatmul.mubr.bf16.gmra.mrb[0].mxu0 %v2340
        %v2403 = vpop.f32.mrb[0].mxu0
        %v2404 = vadd.f32 0.0, %v2403
        %v2405 = vpop.f32.mrb[0].mxu0
        %v2406 = vpop.f32.mrb[0].mxu0
        %v2407 = vadd.f32 0.0, %v2406
        %v2408 = vpop.f32.mrb[0].mxu0
        %2409 = vdwg.mxu0
        %v2410 = vadd.f32 %v2266, %v2380
        %v2411 = vadd.f32 %v2269, %v2383
        %v2412 = vadd.f32 %v2274, %v2388
        %v2413 = vadd.f32 %v2277, %v2391
        %v2414 = vadd.f32 %v2282, %v2396
        %v2415 = vadd.f32 %v2285, %v2399
        %v2416 = vadd.f32 %v2290, %v2404
        %v2417 = vadd.f32 %v2293, %v2407
        %v2418 = vpack.c.bf16 %v2061, %v2060
        %v2419 = vpack.c.bf16 %v2067, %v2066
        %v2420 = vpack.c.bf16 %v2073, %v2072
        %v2421 = vpack.c.bf16 %v2079, %v2078
        %s2422 = scalar_lea.vmem %s3, 12
        %v2423 = vld [vmem:[%s2422] sm:$0xf]
        %v2425 = vsel %vm2010, %v2418, 0
        %v2428 = vsel %vm2010, %v2419, 0
        %v2431 = vsel %vm2010, %v2420, 0
        %v2434 = vsel %vm2010, %v2421, 0
        %v2437 = vsel %vm2147, %v2423, 0
        %2439 = vmatprep.subr.bf16.mxu0 0
        %2440 = vmatpush1.bf16.msra.mxu0 %v2437
        %2441 = vmatprep.subr.bf16.mxu0 0
        %2442 = vmatpush1.bf16.msra.mxu0 0
        %2443 = vmatprep.subr.bf16.mxu0 0
        %2444 = vmatpush1.bf16.msra.mxu0 0
        %2445 = vmatprep.subr.bf16.mxu0 0
        %2446 = vmatpush1.bf16.msra.mxu0 0
        %2447 = vmatprep.subr.bf16.mxu0 0
        %2448 = vmatpush1.bf16.msra.mxu0 0
        %2449 = vmatprep.subr.bf16.mxu0 0
        %2450 = vmatpush1.bf16.msra.mxu0 0
        %2451 = vmatprep.subr.bf16.mxu0 0
        %2452 = vmatpush1.bf16.msra.mxu0 0
        %2453 = vmatprep.subr.bf16.mxu0 0
        %2454 = vmatpush1.bf16.msra.mxu0 0
        %2455 = vmatprep.subr.bf16.mxu0 0
        %2456 = vmatpush1.bf16.msra.mxu0 0
        %2457 = vmatprep.subr.bf16.mxu0 0
        %2458 = vmatpush1.bf16.msra.mxu0 0
        %2459 = vmatprep.subr.bf16.mxu0 0
        %2460 = vmatpush1.bf16.msra.mxu0 0
        %2461 = vmatprep.subr.bf16.mxu0 0
        %2462 = vmatpush1.bf16.msra.mxu0 0
        %2463 = vmatprep.subr.bf16.mxu0 0
        %2464 = vmatpush1.bf16.msra.mxu0 0
        %2465 = vmatprep.subr.bf16.mxu0 0
        %2466 = vmatpush1.bf16.msra.mxu0 0
        %2467 = vmatprep.subr.bf16.mxu0 0
        %2468 = vmatpush1.bf16.msra.mxu0 0
        %2469 = vmatprep.subr.bf16.mxu0 0
        %2470 = vmatpush1.bf16.msra.mxu0 0
        %2471 = vmatprep.mubr.bf16.mxu0 0
        %2472 = vmatmul.mubr.bf16.gmra.mrb[0].mxu0 %v2425
        %v2473 = vpop.f32.mrb[0].mxu0
        %v2474 = vadd.f32 0.0, %v2473
        %v2475 = vpop.f32.mrb[0].mxu0
        %v2476 = vpop.f32.mrb[0].mxu0
        %v2477 = vadd.f32 0.0, %v2476
        %v2478 = vpop.f32.mrb[0].mxu0
        %2479 = vmatprep.mubr.bf16.mxu0 0
        %2480 = vmatmul.mubr.bf16.gmra.mrb[0].mxu0 %v2428
        %v2481 = vpop.f32.mrb[0].mxu0
        %v2482 = vadd.f32 0.0, %v2481
        %v2483 = vpop.f32.mrb[0].mxu0
        %v2484 = vpop.f32.mrb[0].mxu0
        %v2485 = vadd.f32 0.0, %v2484
        %v2486 = vpop.f32.mrb[0].mxu0
        %2487 = vmatprep.mubr.bf16.mxu0 0
        %2488 = vmatmul.mubr.bf16.gmra.mrb[0].mxu0 %v2431
        %v2489 = vpop.f32.mrb[0].mxu0
        %v2490 = vadd.f32 0.0, %v2489
        %v2491 = vpop.f32.mrb[0].mxu0
        %v2492 = vpop.f32.mrb[0].mxu0
        %v2493 = vadd.f32 0.0, %v2492
        %v2494 = vpop.f32.mrb[0].mxu0
        %2495 = vmatprep.mubr.bf16.mxu0 0
        %2496 = vmatmul.mubr.bf16.gmra.mrb[0].mxu0 %v2434
        %v2497 = vpop.f32.mrb[0].mxu0
        %v2498 = vadd.f32 0.0, %v2497
        %v2499 = vpop.f32.mrb[0].mxu0
        %v2500 = vpop.f32.mrb[0].mxu0
        %v2501 = vadd.f32 0.0, %v2500
        %v2502 = vpop.f32.mrb[0].mxu0
        %2503 = vdwg.mxu0
        %v2504 = vadd.f32 %v2410, %v2474
        %v2505 = vadd.f32 %v2411, %v2477
        %v2506 = vadd.f32 %v2412, %v2482
        %v2507 = vadd.f32 %v2413, %v2485
        %v2508 = vadd.f32 %v2414, %v2490
        %v2509 = vadd.f32 %v2415, %v2493
        %v2510 = vadd.f32 %v2416, %v2498
        %v2511 = vadd.f32 %v2417, %v2501
        %v2524 = vrot.slane %v2060, 1
        %v2525 = vrot.slane %v2061, 1
        %v2526 = vsel %vm444, %v2524, %v2525
        %v2527 = vrot.slane %v2062, 1
        %v2528 = vsel %vm444, %v2525, %v2527
        %v2529 = vrot.slane %v2066, 1
        %v2530 = vrot.slane %v2067, 1
        %v2531 = vsel %vm444, %v2529, %v2530
        %v2532 = vrot.slane %v2068, 1
        %v2533 = vsel %vm444, %v2530, %v2532
        %v2534 = vrot.slane %v2072, 1
        %v2535 = vrot.slane %v2073, 1
        %v2536 = vsel %vm444, %v2534, %v2535
        %v2537 = vrot.slane %v2074, 1
        %v2538 = vsel %vm444, %v2535, %v2537
        %v2539 = vrot.slane %v2078, 1
        %v2540 = vrot.slane %v2079, 1
        %v2541 = vsel %vm444, %v2539, %v2540
        %v2542 = vrot.slane %v2080, 1
        %v2543 = vsel %vm444, %v2540, %v2542
        %v2552 = vpack.c.bf16 %v2528, %v2526
        %v2553 = vpack.c.bf16 %v2533, %v2531
        %v2554 = vpack.c.bf16 %v2538, %v2536
        %v2555 = vpack.c.bf16 %v2543, %v2541
        %s2556 = scalar_lea.vmem %s3, 16
        %v2557 = vld [vmem:[%s2556] sm:$0xf]
        %v2559 = vsel %vm2010, %v2552, 0
        %v2562 = vsel %vm2010, %v2553, 0
        %v2565 = vsel %vm2010, %v2554, 0
        %v2568 = vsel %vm2010, %v2555, 0
        %v2571 = vsel %vm2147, %v2557, 0
        %2573 = vmatprep.subr.bf16.mxu0 0
        %2574 = vmatpush1.bf16.msra.mxu0 %v2571
        %2575 = vmatprep.subr.bf16.mxu0 0
        %2576 = vmatpush1.bf16.msra.mxu0 0
        %2577 = vmatprep.subr.bf16.mxu0 0
        %2578 = vmatpush1.bf16.msra.mxu0 0
        %2579 = vmatprep.subr.bf16.mxu0 0
        %2580 = vmatpush1.bf16.msra.mxu0 0
        %2581 = vmatprep.subr.bf16.mxu0 0
        %2582 = vmatpush1.bf16.msra.mxu0 0
        %2583 = vmatprep.subr.bf16.mxu0 0
        %2584 = vmatpush1.bf16.msra.mxu0 0
        %2585 = vmatprep.subr.bf16.mxu0 0
        %2586 = vmatpush1.bf16.msra.mxu0 0
        %2587 = vmatprep.subr.bf16.mxu0 0
        %2588 = vmatpush1.bf16.msra.mxu0 0
        %2589 = vmatprep.subr.bf16.mxu0 0
        %2590 = vmatpush1.bf16.msra.mxu0 0
        %2591 = vmatprep.subr.bf16.mxu0 0
        %2592 = vmatpush1.bf16.msra.mxu0 0
        %2593 = vmatprep.subr.bf16.mxu0 0
        %2594 = vmatpush1.bf16.msra.mxu0 0
        %2595 = vmatprep.subr.bf16.mxu0 0
        %2596 = vmatpush1.bf16.msra.mxu0 0
        %2597 = vmatprep.subr.bf16.mxu0 0
        %2598 = vmatpush1.bf16.msra.mxu0 0
        %2599 = vmatprep.subr.bf16.mxu0 0
        %2600 = vmatpush1.bf16.msra.mxu0 0
        %2601 = vmatprep.subr.bf16.mxu0 0
        %2602 = vmatpush1.bf16.msra.mxu0 0
        %2603 = vmatprep.subr.bf16.mxu0 0
        %2604 = vmatpush1.bf16.msra.mxu0 0
        %2605 = vmatprep.mubr.bf16.mxu0 0
        %2606 = vmatmul.mubr.bf16.gmra.mrb[0].mxu0 %v2559
        %v2607 = vpop.f32.mrb[0].mxu0
        %v2608 = vadd.f32 0.0, %v2607
        %v2609 = vpop.f32.mrb[0].mxu0
        %v2610 = vpop.f32.mrb[0].mxu0
        %v2611 = vadd.f32 0.0, %v2610
        %v2612 = vpop.f32.mrb[0].mxu0
        %2613 = vmatprep.mubr.bf16.mxu0 0
        %2614 = vmatmul.mubr.bf16.gmra.mrb[0].mxu0 %v2562
        %v2615 = vpop.f32.mrb[0].mxu0
        %v2616 = vadd.f32 0.0, %v2615
        %v2617 = vpop.f32.mrb[0].mxu0
        %v2618 = vpop.f32.mrb[0].mxu0
        %v2619 = vadd.f32 0.0, %v2618
        %v2620 = vpop.f32.mrb[0].mxu0
        %2621 = vmatprep.mubr.bf16.mxu0 0
        %2622 = vmatmul.mubr.bf16.gmra.mrb[0].mxu0 %v2565
        %v2623 = vpop.f32.mrb[0].mxu0
        %v2624 = vadd.f32 0.0, %v2623
        %v2625 = vpop.f32.mrb[0].mxu0
        %v2626 = vpop.f32.mrb[0].mxu0
        %v2627 = vadd.f32 0.0, %v2626
        %v2628 = vpop.f32.mrb[0].mxu0
        %2629 = vmatprep.mubr.bf16.mxu0 0
        %2630 = vmatmul.mubr.bf16.gmra.mrb[0].mxu0 %v2568
        %v2631 = vpop.f32.mrb[0].mxu0
        %v2632 = vadd.f32 0.0, %v2631
        %v2633 = vpop.f32.mrb[0].mxu0
        %v2634 = vpop.f32.mrb[0].mxu0
        %v2635 = vadd.f32 0.0, %v2634
        %v2636 = vpop.f32.mrb[0].mxu0
        %2637 = vdwg.mxu0
        %v2638 = vadd.f32 %v2504, %v2608
        %v2639 = vadd.f32 %v2505, %v2611
        %v2640 = vadd.f32 %v2506, %v2616
        %v2641 = vadd.f32 %v2507, %v2619
        %v2642 = vadd.f32 %v2508, %v2624
        %v2643 = vadd.f32 %v2509, %v2627
        %v2644 = vadd.f32 %v2510, %v2632
        %v2645 = vadd.f32 %v2511, %v2635
        %v2646 = vrot.slane %v2060, 2
        %v2647 = vrot.slane %v2061, 2
        %v2648 = vsel %vm767, %v2646, %v2647
        %v2649 = vrot.slane %v2062, 2
        %v2650 = vsel %vm767, %v2647, %v2649
        %v2651 = vrot.slane %v2066, 2
        %v2652 = vrot.slane %v2067, 2
        %v2653 = vsel %vm767, %v2651, %v2652
        %v2654 = vrot.slane %v2068, 2
        %v2655 = vsel %vm767, %v2652, %v2654
        %v2656 = vrot.slane %v2072, 2
        %v2657 = vrot.slane %v2073, 2
        %v2658 = vsel %vm767, %v2656, %v2657
        %v2659 = vrot.slane %v2074, 2
        %v2660 = vsel %vm767, %v2657, %v2659
        %v2661 = vrot.slane %v2078, 2
        %v2662 = vrot.slane %v2079, 2
        %v2663 = vsel %vm767, %v2661, %v2662
        %v2664 = vrot.slane %v2080, 2
        %v2665 = vsel %vm767, %v2662, %v2664
        %v2674 = vpack.c.bf16 %v2650, %v2648
        %v2675 = vpack.c.bf16 %v2655, %v2653
        %v2676 = vpack.c.bf16 %v2660, %v2658
        %v2677 = vpack.c.bf16 %v2665, %v2663
        %s2678 = scalar_lea.vmem %s3, 20
        %v2679 = vld [vmem:[%s2678] sm:$0xf]
        %v2681 = vsel %vm2010, %v2674, 0
        %v2684 = vsel %vm2010, %v2675, 0
        %v2687 = vsel %vm2010, %v2676, 0
        %v2690 = vsel %vm2010, %v2677, 0
        %v2693 = vsel %vm2147, %v2679, 0
        %2695 = vmatprep.subr.bf16.mxu0 0
        %2696 = vmatpush1.bf16.msra.mxu0 %v2693
        %2697 = vmatprep.subr.bf16.mxu0 0
        %2698 = vmatpush1.bf16.msra.mxu0 0
        %2699 = vmatprep.subr.bf16.mxu0 0
        %2700 = vmatpush1.bf16.msra.mxu0 0
        %2701 = vmatprep.subr.bf16.mxu0 0
        %2702 = vmatpush1.bf16.msra.mxu0 0
        %2703 = vmatprep.subr.bf16.mxu0 0
        %2704 = vmatpush1.bf16.msra.mxu0 0
        %2705 = vmatprep.subr.bf16.mxu0 0
        %2706 = vmatpush1.bf16.msra.mxu0 0
        %2707 = vmatprep.subr.bf16.mxu0 0
        %2708 = vmatpush1.bf16.msra.mxu0 0
        %2709 = vmatprep.subr.bf16.mxu0 0
        %2710 = vmatpush1.bf16.msra.mxu0 0
        %2711 = vmatprep.subr.bf16.mxu0 0
        %2712 = vmatpush1.bf16.msra.mxu0 0
        %2713 = vmatprep.subr.bf16.mxu0 0
        %2714 = vmatpush1.bf16.msra.mxu0 0
        %2715 = vmatprep.subr.bf16.mxu0 0
        %2716 = vmatpush1.bf16.msra.mxu0 0
        %2717 = vmatprep.subr.bf16.mxu0 0
        %2718 = vmatpush1.bf16.msra.mxu0 0
        %2719 = vmatprep.subr.bf16.mxu0 0
        %2720 = vmatpush1.bf16.msra.mxu0 0
        %2721 = vmatprep.subr.bf16.mxu0 0
        %2722 = vmatpush1.bf16.msra.mxu0 0
        %2723 = vmatprep.subr.bf16.mxu0 0
        %2724 = vmatpush1.bf16.msra.mxu0 0
        %2725 = vmatprep.subr.bf16.mxu0 0
        %2726 = vmatpush1.bf16.msra.mxu0 0
        %2727 = vmatprep.mubr.bf16.mxu0 0
        %2728 = vmatmul.mubr.bf16.gmra.mrb[0].mxu0 %v2681
        %v2729 = vpop.f32.mrb[0].mxu0
        %v2730 = vadd.f32 0.0, %v2729
        %v2731 = vpop.f32.mrb[0].mxu0
        %v2732 = vpop.f32.mrb[0].mxu0
        %v2733 = vadd.f32 0.0, %v2732
        %v2734 = vpop.f32.mrb[0].mxu0
        %2735 = vmatprep.mubr.bf16.mxu0 0
        %2736 = vmatmul.mubr.bf16.gmra.mrb[0].mxu0 %v2684
        %v2737 = vpop.f32.mrb[0].mxu0
        %v2738 = vadd.f32 0.0, %v2737
        %v2739 = vpop.f32.mrb[0].mxu0
        %v2740 = vpop.f32.mrb[0].mxu0
        %v2741 = vadd.f32 0.0, %v2740
        %v2742 = vpop.f32.mrb[0].mxu0
        %2743 = vmatprep.mubr.bf16.mxu0 0
        %2744 = vmatmul.mubr.bf16.gmra.mrb[0].mxu0 %v2687
        %v2745 = vpop.f32.mrb[0].mxu0
        %v2746 = vadd.f32 0.0, %v2745
        %v2747 = vpop.f32.mrb[0].mxu0
        %v2748 = vpop.f32.mrb[0].mxu0
        %v2749 = vadd.f32 0.0, %v2748
        %v2750 = vpop.f32.mrb[0].mxu0
        %2751 = vmatprep.mubr.bf16.mxu0 0
        %2752 = vmatmul.mubr.bf16.gmra.mrb[0].mxu0 %v2690
        %v2753 = vpop.f32.mrb[0].mxu0
        %v2754 = vadd.f32 0.0, %v2753
        %v2755 = vpop.f32.mrb[0].mxu0
        %v2756 = vpop.f32.mrb[0].mxu0
        %v2757 = vadd.f32 0.0, %v2756
        %v2758 = vpop.f32.mrb[0].mxu0
        %2759 = vdwg.mxu0
        %v2760 = vadd.f32 %v2638, %v2730
        %v2761 = vadd.f32 %v2639, %v2733
        %v2762 = vadd.f32 %v2640, %v2738
        %v2763 = vadd.f32 %v2641, %v2741
        %v2764 = vadd.f32 %v2642, %v2746
        %v2765 = vadd.f32 %v2643, %v2749
        %v2766 = vadd.f32 %v2644, %v2754
        %v2767 = vadd.f32 %v2645, %v2757
        %v2768 = vpack.c.bf16 %v2082, %v2081
        %s2769 = scalar_lea.vmem %s3, 24
        %v2770 = vld [vmem:[%s2769] sm:$0xf]
        %v2772 = vsel %vm2010, %v2768, 0
        %v2775 = vsel %vm2147, %v2770, 0
        %2777 = vmatprep.subr.bf16.mxu0 0
        %2778 = vmatpush1.bf16.msra.mxu0 %v2775
        %2779 = vmatprep.subr.bf16.mxu0 0
        %2780 = vmatpush1.bf16.msra.mxu0 0
        %2781 = vmatprep.subr.bf16.mxu0 0
        %2782 = vmatpush1.bf16.msra.mxu0 0
        %2783 = vmatprep.subr.bf16.mxu0 0
        %2784 = vmatpush1.bf16.msra.mxu0 0
        %2785 = vmatprep.subr.bf16.mxu0 0
        %2786 = vmatpush1.bf16.msra.mxu0 0
        %2787 = vmatprep.subr.bf16.mxu0 0
        %2788 = vmatpush1.bf16.msra.mxu0 0
        %2789 = vmatprep.subr.bf16.mxu0 0
        %2790 = vmatpush1.bf16.msra.mxu0 0
        %2791 = vmatprep.subr.bf16.mxu0 0
        %2792 = vmatpush1.bf16.msra.mxu0 0
        %2793 = vmatprep.subr.bf16.mxu0 0
        %2794 = vmatpush1.bf16.msra.mxu0 0
        %2795 = vmatprep.subr.bf16.mxu0 0
        %2796 = vmatpush1.bf16.msra.mxu0 0
        %2797 = vmatprep.subr.bf16.mxu0 0
        %2798 = vmatpush1.bf16.msra.mxu0 0
        %2799 = vmatprep.subr.bf16.mxu0 0
        %2800 = vmatpush1.bf16.msra.mxu0 0
        %2801 = vmatprep.subr.bf16.mxu0 0
        %2802 = vmatpush1.bf16.msra.mxu0 0
        %2803 = vmatprep.subr.bf16.mxu0 0
        %2804 = vmatpush1.bf16.msra.mxu0 0
        %2805 = vmatprep.subr.bf16.mxu0 0
        %2806 = vmatpush1.bf16.msra.mxu0 0
        %2807 = vmatprep.subr.bf16.mxu0 0
        %2808 = vmatpush1.bf16.msra.mxu0 0
        %2809 = vmatprep.mubr.bf16.mxu0 0
        %2810 = vmatmul.mubr.bf16.gmra.mrb[0].mxu0 %v2220
        %v2811 = vpop.f32.mrb[0].mxu0
        %v2812 = vadd.f32 0.0, %v2811
        %v2813 = vpop.f32.mrb[0].mxu0
        %v2814 = vpop.f32.mrb[0].mxu0
        %v2815 = vadd.f32 0.0, %v2814
        %v2816 = vpop.f32.mrb[0].mxu0
        %2817 = vmatprep.mubr.bf16.mxu0 0
        %2818 = vmatmul.mubr.bf16.gmra.mrb[0].mxu0 %v2223
        %v2819 = vpop.f32.mrb[0].mxu0
        %v2820 = vadd.f32 0.0, %v2819
        %v2821 = vpop.f32.mrb[0].mxu0
        %v2822 = vpop.f32.mrb[0].mxu0
        %v2823 = vadd.f32 0.0, %v2822
        %v2824 = vpop.f32.mrb[0].mxu0
        %2825 = vmatprep.mubr.bf16.mxu0 0
        %2826 = vmatmul.mubr.bf16.gmra.mrb[0].mxu0 %v2226
        %v2827 = vpop.f32.mrb[0].mxu0
        %v2828 = vadd.f32 0.0, %v2827
        %v2829 = vpop.f32.mrb[0].mxu0
        %v2830 = vpop.f32.mrb[0].mxu0
        %v2831 = vadd.f32 0.0, %v2830
        %v2832 = vpop.f32.mrb[0].mxu0
        %2833 = vmatprep.mubr.bf16.mxu0 0
        %2834 = vmatmul.mubr.bf16.gmra.mrb[0].mxu0 %v2772
        %v2835 = vpop.f32.mrb[0].mxu0
        %v2836 = vadd.f32 0.0, %v2835
        %v2837 = vpop.f32.mrb[0].mxu0
        %v2838 = vpop.f32.mrb[0].mxu0
        %v2839 = vadd.f32 0.0, %v2838
        %v2840 = vpop.f32.mrb[0].mxu0
        %2841 = vdwg.mxu0
        %v2842 = vadd.f32 %v2760, %v2812
        %v2843 = vadd.f32 %v2761, %v2815
        %v2844 = vadd.f32 %v2762, %v2820
        %v2845 = vadd.f32 %v2763, %v2823
        %v2846 = vadd.f32 %v2764, %v2828
        %v2847 = vadd.f32 %v2765, %v2831
        %v2848 = vadd.f32 %v2766, %v2836
        %v2849 = vadd.f32 %v2767, %v2839
        %v2853 = vrot.slane %v2081, 1
        %v2854 = vrot.slane %v2082, 1
        %v2855 = vsel %vm444, %v2853, %v2854
        %v2856 = vrot.slane %v2083, 1
        %v2857 = vsel %vm444, %v2854, %v2856
        %v2860 = vpack.c.bf16 %v2857, %v2855
        %s2861 = scalar_lea.vmem %s3, 28
        %v2862 = vld [vmem:[%s2861] sm:$0xf]
        %v2864 = vsel %vm2010, %v2860, 0
        %v2867 = vsel %vm2147, %v2862, 0
        %2869 = vmatprep.subr.bf16.mxu0 0
        %2870 = vmatpush1.bf16.msra.mxu0 %v2867
        %2871 = vmatprep.subr.bf16.mxu0 0
        %2872 = vmatpush1.bf16.msra.mxu0 0
        %2873 = vmatprep.subr.bf16.mxu0 0
        %2874 = vmatpush1.bf16.msra.mxu0 0
        %2875 = vmatprep.subr.bf16.mxu0 0
        %2876 = vmatpush1.bf16.msra.mxu0 0
        %2877 = vmatprep.subr.bf16.mxu0 0
        %2878 = vmatpush1.bf16.msra.mxu0 0
        %2879 = vmatprep.subr.bf16.mxu0 0
        %2880 = vmatpush1.bf16.msra.mxu0 0
        %2881 = vmatprep.subr.bf16.mxu0 0
        %2882 = vmatpush1.bf16.msra.mxu0 0
        %2883 = vmatprep.subr.bf16.mxu0 0
        %2884 = vmatpush1.bf16.msra.mxu0 0
        %2885 = vmatprep.subr.bf16.mxu0 0
        %2886 = vmatpush1.bf16.msra.mxu0 0
        %2887 = vmatprep.subr.bf16.mxu0 0
        %2888 = vmatpush1.bf16.msra.mxu0 0
        %2889 = vmatprep.subr.bf16.mxu0 0
        %2890 = vmatpush1.bf16.msra.mxu0 0
        %2891 = vmatprep.subr.bf16.mxu0 0
        %2892 = vmatpush1.bf16.msra.mxu0 0
        %2893 = vmatprep.subr.bf16.mxu0 0
        %2894 = vmatpush1.bf16.msra.mxu0 0
        %2895 = vmatprep.subr.bf16.mxu0 0
        %2896 = vmatpush1.bf16.msra.mxu0 0
        %2897 = vmatprep.subr.bf16.mxu0 0
        %2898 = vmatpush1.bf16.msra.mxu0 0
        %2899 = vmatprep.subr.bf16.mxu0 0
        %2900 = vmatpush1.bf16.msra.mxu0 0
        %2901 = vmatprep.mubr.bf16.mxu0 0
        %2902 = vmatmul.mubr.bf16.gmra.mrb[0].mxu0 %v2139
        %v2903 = vpop.f32.mrb[0].mxu0
        %v2904 = vadd.f32 0.0, %v2903
        %v2905 = vpop.f32.mrb[0].mxu0
        %v2906 = vpop.f32.mrb[0].mxu0
        %v2907 = vadd.f32 0.0, %v2906
        %v2908 = vpop.f32.mrb[0].mxu0
        %2909 = vmatprep.mubr.bf16.mxu0 0
        %2910 = vmatmul.mubr.bf16.gmra.mrb[0].mxu0 %v2142
        %v2911 = vpop.f32.mrb[0].mxu0
        %v2912 = vadd.f32 0.0, %v2911
        %v2913 = vpop.f32.mrb[0].mxu0
        %v2914 = vpop.f32.mrb[0].mxu0
        %v2915 = vadd.f32 0.0, %v2914
        %v2916 = vpop.f32.mrb[0].mxu0
        %2917 = vmatprep.mubr.bf16.mxu0 0
        %2918 = vmatmul.mubr.bf16.gmra.mrb[0].mxu0 %v2145
        %v2919 = vpop.f32.mrb[0].mxu0
        %v2920 = vadd.f32 0.0, %v2919
        %v2921 = vpop.f32.mrb[0].mxu0
        %v2922 = vpop.f32.mrb[0].mxu0
        %v2923 = vadd.f32 0.0, %v2922
        %v2924 = vpop.f32.mrb[0].mxu0
        %2925 = vmatprep.mubr.bf16.mxu0 0
        %2926 = vmatmul.mubr.bf16.gmra.mrb[0].mxu0 %v2864
        %v2927 = vpop.f32.mrb[0].mxu0
        %v2928 = vadd.f32 0.0, %v2927
        %v2929 = vpop.f32.mrb[0].mxu0
        %v2930 = vpop.f32.mrb[0].mxu0
        %v2931 = vadd.f32 0.0, %v2930
        %v2932 = vpop.f32.mrb[0].mxu0
        %2933 = vdwg.mxu0
        %v2934 = vadd.f32 %v2842, %v2904
        %v2935 = vadd.f32 %v2843, %v2907
        %v2936 = vadd.f32 %v2844, %v2912
        %v2937 = vadd.f32 %v2845, %v2915
        %v2938 = vadd.f32 %v2846, %v2920
        %v2939 = vadd.f32 %v2847, %v2923
        %v2940 = vadd.f32 %v2848, %v2928
        %v2941 = vadd.f32 %v2849, %v2931
        %v2942 = vrot.slane %v2081, 2
        %v2943 = vrot.slane %v2082, 2
        %v2944 = vsel %vm767, %v2942, %v2943
        %v2945 = vrot.slane %v2083, 2
        %v2946 = vsel %vm767, %v2943, %v2945
        %v2949 = vpack.c.bf16 %v2946, %v2944
        %s2950 = scalar_lea.vmem %s3, 32
        %v2951 = vld [vmem:[%s2950] sm:$0xf]
        %v2953 = vsel %vm2010, %v2949, 0
        %v2956 = vsel %vm2147, %v2951, 0
        %2958 = vmatprep.subr.bf16.mxu0 0
        %2959 = vmatpush1.bf16.msra.mxu0 %v2956
        %2960 = vmatprep.subr.bf16.mxu0 0
        %2961 = vmatpush1.bf16.msra.mxu0 0
        %2962 = vmatprep.subr.bf16.mxu0 0
        %2963 = vmatpush1.bf16.msra.mxu0 0
        %2964 = vmatprep.subr.bf16.mxu0 0
        %2965 = vmatpush1.bf16.msra.mxu0 0
        %2966 = vmatprep.subr.bf16.mxu0 0
        %2967 = vmatpush1.bf16.msra.mxu0 0
        %2968 = vmatprep.subr.bf16.mxu0 0
        %2969 = vmatpush1.bf16.msra.mxu0 0
        %2970 = vmatprep.subr.bf16.mxu0 0
        %2971 = vmatpush1.bf16.msra.mxu0 0
        %2972 = vmatprep.subr.bf16.mxu0 0
        %2973 = vmatpush1.bf16.msra.mxu0 0
        %2974 = vmatprep.subr.bf16.mxu0 0
        %2975 = vmatpush1.bf16.msra.mxu0 0
        %2976 = vmatprep.subr.bf16.mxu0 0
        %2977 = vmatpush1.bf16.msra.mxu0 0
        %2978 = vmatprep.subr.bf16.mxu0 0
        %2979 = vmatpush1.bf16.msra.mxu0 0
        %2980 = vmatprep.subr.bf16.mxu0 0
        %2981 = vmatpush1.bf16.msra.mxu0 0
        %2982 = vmatprep.subr.bf16.mxu0 0
        %2983 = vmatpush1.bf16.msra.mxu0 0
        %2984 = vmatprep.subr.bf16.mxu0 0
        %2985 = vmatpush1.bf16.msra.mxu0 0
        %2986 = vmatprep.subr.bf16.mxu0 0
        %2987 = vmatpush1.bf16.msra.mxu0 0
        %2988 = vmatprep.subr.bf16.mxu0 0
        %2989 = vmatpush1.bf16.msra.mxu0 0
        %2990 = vmatprep.mubr.bf16.mxu0 0
        %2991 = vmatmul.mubr.bf16.gmra.mrb[0].mxu0 %v2334
        %v2992 = vpop.f32.mrb[0].mxu0
        %v2993 = vadd.f32 0.0, %v2992
        %v2994 = vpop.f32.mrb[0].mxu0
        %v2995 = vpop.f32.mrb[0].mxu0
        %v2996 = vadd.f32 0.0, %v2995
        %v2997 = vpop.f32.mrb[0].mxu0
        %2998 = vmatprep.mubr.bf16.mxu0 0
        %2999 = vmatmul.mubr.bf16.gmra.mrb[0].mxu0 %v2337
        %v3000 = vpop.f32.mrb[0].mxu0
        %v3001 = vadd.f32 0.0, %v3000
        %v3002 = vpop.f32.mrb[0].mxu0
        %v3003 = vpop.f32.mrb[0].mxu0
        %v3004 = vadd.f32 0.0, %v3003
        %v3005 = vpop.f32.mrb[0].mxu0
        %3006 = vmatprep.mubr.bf16.mxu0 0
        %3007 = vmatmul.mubr.bf16.gmra.mrb[0].mxu0 %v2340
        %v3008 = vpop.f32.mrb[0].mxu0
        %v3009 = vadd.f32 0.0, %v3008
        %v3010 = vpop.f32.mrb[0].mxu0
        %v3011 = vpop.f32.mrb[0].mxu0
        %v3012 = vadd.f32 0.0, %v3011
        %v3013 = vpop.f32.mrb[0].mxu0
        %3014 = vmatprep.mubr.bf16.mxu0 0
        %3015 = vmatmul.mubr.bf16.gmra.mrb[0].mxu0 %v2953
        %v3016 = vpop.f32.mrb[0].mxu0
        %v3017 = vadd.f32 0.0, %v3016
        %v3018 = vpop.f32.mrb[0].mxu0
        %v3019 = vpop.f32.mrb[0].mxu0
        %v3020 = vadd.f32 0.0, %v3019
        %v3021 = vpop.f32.mrb[0].mxu0
        %3022 = vdwg.mxu0
        %v3023 = vadd.f32 %v2934, %v2993
        %v3024 = vadd.f32 %v2935, %v2996
        %v3025 = vadd.f32 %v2936, %v3001
        %v3026 = vadd.f32 %v2937, %v3004
        %v3027 = vadd.f32 %v2938, %v3009
        %v3028 = vadd.f32 %v2939, %v3012
        %v3029 = vadd.f32 %v2940, %v3017
        %v3030 = vadd.f32 %v2941, %v3020
        %v3031 = vld [vmem:[%s4] sm:$0x1]
        %v3033 = vlaneseq
        %v3034 = vshrl.u32 %v3033, 7
        %v3035 = vsub.s32 0, %v3034
        %v3036 = vrot.slane %v3031, %v3035
        %v3038 = vadd.f32 %v3023, %v3036
        %v3039 = vadd.f32 %v3024, %v3036
        %v3040 = vadd.f32 %v3025, %v3036
        %v3041 = vadd.f32 %v3026, %v3036
        %v3042 = vadd.f32 %v3027, %v3036
        %v3043 = vadd.f32 %v3028, %v3036
        %v3044 = vadd.f32 %v3029, %v3036
        %v3045 = vadd.f32 %v3030, %v3036
        %v3046 = vmax.f32 %v3038, 0.0
        %v3047 = vmax.f32 %v3039, 0.0
        %v3048 = vmax.f32 %v3040, 0.0
        %v3049 = vmax.f32 %v3041, 0.0
        %v3050 = vmax.f32 %v3042, 0.0
        %v3051 = vmax.f32 %v3043, 0.0
        %v3052 = vmax.f32 %v3044, 0.0
        %v3053 = vmax.f32 %v3045, 0.0
        %3054 = vst.msk [vmem:[#allocation3] sm:$0xff] %vm2010, 0.0
        %3055 = vst.msk [vmem:[#allocation3 + $0x8] sm:$0xff] %vm2010, 0.0
        %3056 = vst.msk [vmem:[#allocation3 + $0x10] sm:$0x3] %vm2013, 0.0
        %s3057 = scalar_lea.vmem [#allocation3], 120
        %3058 = vst.msk [vmem:[%s3057] sm:$0xff] %vm2010, 0.0
        %3059 = vst.msk [vmem:[%s3057 + $0x8] sm:$0xff] %vm2010, 0.0
        %3060 = vst.msk [vmem:[%s3057 + $0x10] sm:$0x3] %vm2013, 0.0
        %3061 = vst.msk [vmem:[#allocation3] sm:$0x1] %vm2019, 0.0
        %3062 = vst.msk [vmem:[#allocation3 + $0x18] sm:$0x1] %vm2019, 0.0
        %3063 = vst.msk [vmem:[#allocation3 + $0x30] sm:$0x1] %vm2019, 0.0
        %3064 = vst.msk [vmem:[#allocation3 + $0x48] sm:$0x1] %vm2019, 0.0
        %3065 = vst.msk [vmem:[#allocation3 + $0x60] sm:$0x1] %vm2019, 0.0
        %3066 = vst.msk [vmem:[#allocation3 + $0x78] sm:$0x1] %vm2019, 0.0
        %3067 = vst.msk [vmem:[#allocation3 + $0x11] sm:$0x1] %vm2019, 0.0
        %3068 = vst.msk [vmem:[#allocation3 + $0x29] sm:$0x1] %vm2019, 0.0
        %3069 = vst.msk [vmem:[#allocation3 + $0x41] sm:$0x1] %vm2019, 0.0
        %3070 = vst.msk [vmem:[#allocation3 + $0x59] sm:$0x1] %vm2019, 0.0
        %3071 = vst.msk [vmem:[#allocation3 + $0x71] sm:$0x1] %vm2019, 0.0
        %3072 = vst.msk [vmem:[#allocation3 + $0x89] sm:$0x1] %vm2019, 0.0
        %s3073 = scalar_lea.vmem [#allocation3], 24
        %3074 = vst.msk [vmem:[%s3073 + $0x1] sm:$0xff] %vm2010, %v3046
        %3075 = vst.msk [vmem:[%s3073 + $0x9] sm:$0xff] %vm2010, %v3047
        %3076 = vst.msk [vmem:[%s3073 + $0x19] sm:$0xff] %vm2010, %v3048
        %3077 = vst.msk [vmem:[%s3073 + $0x21] sm:$0xff] %vm2010, %v3049
        %3078 = vst.msk [vmem:[%s3073 + $0x31] sm:$0xff] %vm2010, %v3050
        %3079 = vst.msk [vmem:[%s3073 + $0x39] sm:$0xff] %vm2010, %v3051
        %3080 = vst.msk [vmem:[%s3073 + $0x49] sm:$0xff] %vm2010, %v3052
        %3081 = vst.msk [vmem:[%s3073 + $0x51] sm:$0xff] %vm2010, %v3053
        %v3082 = vld [vmem:[#allocation3] sm:$0xff]
        %v3083 = vld [vmem:[#allocation3 + $0x8] sm:$0xff]
        %v3084 = vld [vmem:[#allocation3 + $0x10] sm:$0x3]
        %v3085 = vld [vmem:[#allocation3 + $0x18] sm:$0xff]
        %v3086 = vld [vmem:[#allocation3 + $0x20] sm:$0xff]
        %v3087 = vld [vmem:[#allocation3 + $0x28] sm:$0x3]
        %v3088 = vld [vmem:[#allocation3 + $0x30] sm:$0xff]
        %v3089 = vld [vmem:[#allocation3 + $0x38] sm:$0xff]
        %v3090 = vld [vmem:[#allocation3 + $0x40] sm:$0x3]
        %v3091 = vld [vmem:[#allocation3 + $0x48] sm:$0xff]
        %v3092 = vld [vmem:[#allocation3 + $0x50] sm:$0xff]
        %v3093 = vld [vmem:[#allocation3 + $0x58] sm:$0x3]
        %v3094 = vld [vmem:[#allocation3 + $0x60] sm:$0xff]
        %v3095 = vld [vmem:[#allocation3 + $0x68] sm:$0xff]
        %v3096 = vld [vmem:[#allocation3 + $0x70] sm:$0x3]
        %v3097 = vpack.c.bf16 %v3083, %v3082
        %v3098 = vpack.c.bf16 %v3089, %v3088
        %v3099 = vld [vmem:[%s5] sm:$0xf]
        %v3106 = vrot.slane %v3082, 1
        %v3107 = vrot.slane %v3083, 1
        %v3108 = vsel %vm444, %v3106, %v3107
        %v3109 = vrot.slane %v3084, 1
        %v3110 = vsel %vm444, %v3107, %v3109
        %v3111 = vrot.slane %v3088, 1
        %v3112 = vrot.slane %v3089, 1
        %v3113 = vsel %vm444, %v3111, %v3112
        %v3114 = vrot.slane %v3090, 1
        %v3115 = vsel %vm444, %v3112, %v3114
        %v3120 = vpack.c.bf16 %v3110, %v3108
        %v3121 = vpack.c.bf16 %v3115, %v3113
        %s3122 = scalar_lea.vmem %s5, 4
        %v3123 = vld [vmem:[%s3122] sm:$0xf]
        %v3125 = vsel %vm2010, %v3120, 0
        %v3128 = vsel %vm2010, %v3121, 0
        %v3131 = vsel %vm2147, %v3123, 0
        %3133 = vmatprep.subr.bf16.mxu0 0
        %3134 = vmatpush1.bf16.msra.mxu0 %v3131
        %3135 = vmatprep.subr.bf16.mxu0 0
        %3136 = vmatpush1.bf16.msra.mxu0 0
        %3137 = vmatprep.subr.bf16.mxu0 0
        %3138 = vmatpush1.bf16.msra.mxu0 0
        %3139 = vmatprep.subr.bf16.mxu0 0
        %3140 = vmatpush1.bf16.msra.mxu0 0
        %3141 = vmatprep.subr.bf16.mxu0 0
        %3142 = vmatpush1.bf16.msra.mxu0 0
        %3143 = vmatprep.subr.bf16.mxu0 0
        %3144 = vmatpush1.bf16.msra.mxu0 0
        %3145 = vmatprep.subr.bf16.mxu0 0
        %3146 = vmatpush1.bf16.msra.mxu0 0
        %3147 = vmatprep.subr.bf16.mxu0 0
        %3148 = vmatpush1.bf16.msra.mxu0 0
        %3149 = vmatprep.subr.bf16.mxu0 0
        %3150 = vmatpush1.bf16.msra.mxu0 0
        %3151 = vmatprep.subr.bf16.mxu0 0
        %3152 = vmatpush1.bf16.msra.mxu0 0
        %3153 = vmatprep.subr.bf16.mxu0 0
        %3154 = vmatpush1.bf16.msra.mxu0 0
        %3155 = vmatprep.subr.bf16.mxu0 0
        %3156 = vmatpush1.bf16.msra.mxu0 0
        %3157 = vmatprep.subr.bf16.mxu0 0
        %3158 = vmatpush1.bf16.msra.mxu0 0
        %3159 = vmatprep.subr.bf16.mxu0 0
        %3160 = vmatpush1.bf16.msra.mxu0 0
        %3161 = vmatprep.subr.bf16.mxu0 0
        %3162 = vmatpush1.bf16.msra.mxu0 0
        %3163 = vmatprep.subr.bf16.mxu0 0
        %3164 = vmatpush1.bf16.msra.mxu0 0
        %3165 = vmatprep.mubr.bf16.mxu0 0
        %3166 = vmatmul.mubr.bf16.gmra.mrb[0].mxu0 %v3125
        %v3167 = vpop.f32.mrb[0].mxu0
        %v3168 = vadd.f32 0.0, %v3167
        %v3169 = vpop.f32.mrb[0].mxu0
        %v3170 = vpop.f32.mrb[0].mxu0
        %v3171 = vadd.f32 0.0, %v3170
        %v3172 = vpop.f32.mrb[0].mxu0
        %3173 = vmatprep.mubr.bf16.mxu0 0
        %3174 = vmatmul.mubr.bf16.gmra.mrb[0].mxu0 %v3128
        %v3175 = vpop.f32.mrb[0].mxu0
        %v3176 = vadd.f32 0.0, %v3175
        %v3177 = vpop.f32.mrb[0].mxu0
        %v3178 = vpop.f32.mrb[0].mxu0
        %v3179 = vadd.f32 0.0, %v3178
        %v3180 = vpop.f32.mrb[0].mxu0
        %3181 = vdwg.mxu0
        %v3183 = vsel %vm2010, %v3097, 0
        %v3186 = vsel %vm2010, %v3098, 0
        %v3189 = vsel %vm2147, %v3099, 0
        %3191 = vmatprep.subr.bf16.mxu0 0
        %3192 = vmatpush1.bf16.msra.mxu0 %v3189
        %3193 = vmatprep.subr.bf16.mxu0 0
        %3194 = vmatpush1.bf16.msra.mxu0 0
        %3195 = vmatprep.subr.bf16.mxu0 0
        %3196 = vmatpush1.bf16.msra.mxu0 0
        %3197 = vmatprep.subr.bf16.mxu0 0
        %3198 = vmatpush1.bf16.msra.mxu0 0
        %3199 = vmatprep.subr.bf16.mxu0 0
        %3200 = vmatpush1.bf16.msra.mxu0 0
        %3201 = vmatprep.subr.bf16.mxu0 0
        %3202 = vmatpush1.bf16.msra.mxu0 0
        %3203 = vmatprep.subr.bf16.mxu0 0
        %3204 = vmatpush1.bf16.msra.mxu0 0
        %3205 = vmatprep.subr.bf16.mxu0 0
        %3206 = vmatpush1.bf16.msra.mxu0 0
        %3207 = vmatprep.subr.bf16.mxu0 0
        %3208 = vmatpush1.bf16.msra.mxu0 0
        %3209 = vmatprep.subr.bf16.mxu0 0
        %3210 = vmatpush1.bf16.msra.mxu0 0
        %3211 = vmatprep.subr.bf16.mxu0 0
        %3212 = vmatpush1.bf16.msra.mxu0 0
        %3213 = vmatprep.subr.bf16.mxu0 0
        %3214 = vmatpush1.bf16.msra.mxu0 0
        %3215 = vmatprep.subr.bf16.mxu0 0
        %3216 = vmatpush1.bf16.msra.mxu0 0
        %3217 = vmatprep.subr.bf16.mxu0 0
        %3218 = vmatpush1.bf16.msra.mxu0 0
        %3219 = vmatprep.subr.bf16.mxu0 0
        %3220 = vmatpush1.bf16.msra.mxu0 0
        %3221 = vmatprep.subr.bf16.mxu0 0
        %3222 = vmatpush1.bf16.msra.mxu0 0
        %3223 = vmatprep.mubr.bf16.mxu0 0
        %3224 = vmatmul.mubr.bf16.gmra.mrb[0].mxu0 %v3183
        %v3225 = vpop.f32.mrb[0].mxu0
        %v3226 = vadd.f32 %v3168, %v3225
        %v3227 = vpop.f32.mrb[0].mxu0
        %v3228 = vpop.f32.mrb[0].mxu0
        %v3229 = vadd.f32 %v3171, %v3228
        %v3230 = vpop.f32.mrb[0].mxu0
        %3231 = vmatprep.mubr.bf16.mxu0 0
        %3232 = vmatmul.mubr.bf16.gmra.mrb[0].mxu0 %v3186
        %v3233 = vpop.f32.mrb[0].mxu0
        %v3234 = vadd.f32 %v3176, %v3233
        %v3235 = vpop.f32.mrb[0].mxu0
        %v3236 = vpop.f32.mrb[0].mxu0
        %v3237 = vadd.f32 %v3179, %v3236
        %v3238 = vpop.f32.mrb[0].mxu0
        %3239 = vdwg.mxu0
        %v3240 = vrot.slane %v3082, 2
        %v3241 = vrot.slane %v3083, 2
        %v3242 = vsel %vm767, %v3240, %v3241
        %v3243 = vrot.slane %v3084, 2
        %v3244 = vsel %vm767, %v3241, %v3243
        %v3245 = vrot.slane %v3088, 2
        %v3246 = vrot.slane %v3089, 2
        %v3247 = vsel %vm767, %v3245, %v3246
        %v3248 = vrot.slane %v3090, 2
        %v3249 = vsel %vm767, %v3246, %v3248
        %v3254 = vpack.c.bf16 %v3244, %v3242
        %v3255 = vpack.c.bf16 %v3249, %v3247
        %s3256 = scalar_lea.vmem %s5, 8
        %v3257 = vld [vmem:[%s3256] sm:$0xf]
        %v3259 = vsel %vm2010, %v3254, 0
        %v3262 = vsel %vm2010, %v3255, 0
        %v3265 = vsel %vm2147, %v3257, 0
        %3267 = vmatprep.subr.bf16.mxu0 0
        %3268 = vmatpush1.bf16.msra.mxu0 %v3265
        %3269 = vmatprep.subr.bf16.mxu0 0
        %3270 = vmatpush1.bf16.msra.mxu0 0
        %3271 = vmatprep.subr.bf16.mxu0 0
        %3272 = vmatpush1.bf16.msra.mxu0 0
        %3273 = vmatprep.subr.bf16.mxu0 0
        %3274 = vmatpush1.bf16.msra.mxu0 0
        %3275 = vmatprep.subr.bf16.mxu0 0
        %3276 = vmatpush1.bf16.msra.mxu0 0
        %3277 = vmatprep.subr.bf16.mxu0 0
        %3278 = vmatpush1.bf16.msra.mxu0 0
        %3279 = vmatprep.subr.bf16.mxu0 0
        %3280 = vmatpush1.bf16.msra.mxu0 0
        %3281 = vmatprep.subr.bf16.mxu0 0
        %3282 = vmatpush1.bf16.msra.mxu0 0
        %3283 = vmatprep.subr.bf16.mxu0 0
        %3284 = vmatpush1.bf16.msra.mxu0 0
        %3285 = vmatprep.subr.bf16.mxu0 0
        %3286 = vmatpush1.bf16.msra.mxu0 0
        %3287 = vmatprep.subr.bf16.mxu0 0
        %3288 = vmatpush1.bf16.msra.mxu0 0
        %3289 = vmatprep.subr.bf16.mxu0 0
        %3290 = vmatpush1.bf16.msra.mxu0 0
        %3291 = vmatprep.subr.bf16.mxu0 0
        %3292 = vmatpush1.bf16.msra.mxu0 0
        %3293 = vmatprep.subr.bf16.mxu0 0
        %3294 = vmatpush1.bf16.msra.mxu0 0
        %3295 = vmatprep.subr.bf16.mxu0 0
        %3296 = vmatpush1.bf16.msra.mxu0 0
        %3297 = vmatprep.subr.bf16.mxu0 0
        %3298 = vmatpush1.bf16.msra.mxu0 0
        %3299 = vmatprep.mubr.bf16.mxu0 0
        %3300 = vmatmul.mubr.bf16.gmra.mrb[0].mxu0 %v3259
        %v3301 = vpop.f32.mrb[0].mxu0
        %v3302 = vadd.f32 0.0, %v3301
        %v3303 = vpop.f32.mrb[0].mxu0
        %v3304 = vpop.f32.mrb[0].mxu0
        %v3305 = vadd.f32 0.0, %v3304
        %v3306 = vpop.f32.mrb[0].mxu0
        %3307 = vmatprep.mubr.bf16.mxu0 0
        %3308 = vmatmul.mubr.bf16.gmra.mrb[0].mxu0 %v3262
        %v3309 = vpop.f32.mrb[0].mxu0
        %v3310 = vadd.f32 0.0, %v3309
        %v3311 = vpop.f32.mrb[0].mxu0
        %v3312 = vpop.f32.mrb[0].mxu0
        %v3313 = vadd.f32 0.0, %v3312
        %v3314 = vpop.f32.mrb[0].mxu0
        %3315 = vdwg.mxu0
        %v3316 = vadd.f32 %v3226, %v3302
        %v3317 = vadd.f32 %v3229, %v3305
        %v3318 = vadd.f32 %v3234, %v3310
        %v3319 = vadd.f32 %v3237, %v3313
        %v3320 = vpack.c.bf16 %v3086, %v3085
        %v3321 = vpack.c.bf16 %v3092, %v3091
        %s3322 = scalar_lea.vmem %s5, 12
        %v3323 = vld [vmem:[%s3322] sm:$0xf]
        %v3325 = vsel %vm2010, %v3320, 0
        %v3328 = vsel %vm2010, %v3321, 0
        %v3331 = vsel %vm2147, %v3323, 0
        %3333 = vmatprep.subr.bf16.mxu0 0
        %3334 = vmatpush1.bf16.msra.mxu0 %v3331
        %3335 = vmatprep.subr.bf16.mxu0 0
        %3336 = vmatpush1.bf16.msra.mxu0 0
        %3337 = vmatprep.subr.bf16.mxu0 0
        %3338 = vmatpush1.bf16.msra.mxu0 0
        %3339 = vmatprep.subr.bf16.mxu0 0
        %3340 = vmatpush1.bf16.msra.mxu0 0
        %3341 = vmatprep.subr.bf16.mxu0 0
        %3342 = vmatpush1.bf16.msra.mxu0 0
        %3343 = vmatprep.subr.bf16.mxu0 0
        %3344 = vmatpush1.bf16.msra.mxu0 0
        %3345 = vmatprep.subr.bf16.mxu0 0
        %3346 = vmatpush1.bf16.msra.mxu0 0
        %3347 = vmatprep.subr.bf16.mxu0 0
        %3348 = vmatpush1.bf16.msra.mxu0 0
        %3349 = vmatprep.subr.bf16.mxu0 0
        %3350 = vmatpush1.bf16.msra.mxu0 0
        %3351 = vmatprep.subr.bf16.mxu0 0
        %3352 = vmatpush1.bf16.msra.mxu0 0
        %3353 = vmatprep.subr.bf16.mxu0 0
        %3354 = vmatpush1.bf16.msra.mxu0 0
        %3355 = vmatprep.subr.bf16.mxu0 0
        %3356 = vmatpush1.bf16.msra.mxu0 0
        %3357 = vmatprep.subr.bf16.mxu0 0
        %3358 = vmatpush1.bf16.msra.mxu0 0
        %3359 = vmatprep.subr.bf16.mxu0 0
        %3360 = vmatpush1.bf16.msra.mxu0 0
        %3361 = vmatprep.subr.bf16.mxu0 0
        %3362 = vmatpush1.bf16.msra.mxu0 0
        %3363 = vmatprep.subr.bf16.mxu0 0
        %3364 = vmatpush1.bf16.msra.mxu0 0
        %3365 = vmatprep.mubr.bf16.mxu0 0
        %3366 = vmatmul.mubr.bf16.gmra.mrb[0].mxu0 %v3325
        %v3367 = vpop.f32.mrb[0].mxu0
        %v3368 = vadd.f32 0.0, %v3367
        %v3369 = vpop.f32.mrb[0].mxu0
        %v3370 = vpop.f32.mrb[0].mxu0
        %v3371 = vadd.f32 0.0, %v3370
        %v3372 = vpop.f32.mrb[0].mxu0
        %3373 = vmatprep.mubr.bf16.mxu0 0
        %3374 = vmatmul.mubr.bf16.gmra.mrb[0].mxu0 %v3328
        %v3375 = vpop.f32.mrb[0].mxu0
        %v3376 = vadd.f32 0.0, %v3375
        %v3377 = vpop.f32.mrb[0].mxu0
        %v3378 = vpop.f32.mrb[0].mxu0
        %v3379 = vadd.f32 0.0, %v3378
        %v3380 = vpop.f32.mrb[0].mxu0
        %3381 = vdwg.mxu0
        %v3382 = vadd.f32 %v3316, %v3368
        %v3383 = vadd.f32 %v3317, %v3371
        %v3384 = vadd.f32 %v3318, %v3376
        %v3385 = vadd.f32 %v3319, %v3379
        %v3392 = vrot.slane %v3085, 1
        %v3393 = vrot.slane %v3086, 1
        %v3394 = vsel %vm444, %v3392, %v3393
        %v3395 = vrot.slane %v3087, 1
        %v3396 = vsel %vm444, %v3393, %v3395
        %v3397 = vrot.slane %v3091, 1
        %v3398 = vrot.slane %v3092, 1
        %v3399 = vsel %vm444, %v3397, %v3398
        %v3400 = vrot.slane %v3093, 1
        %v3401 = vsel %vm444, %v3398, %v3400
        %v3406 = vpack.c.bf16 %v3396, %v3394
        %v3407 = vpack.c.bf16 %v3401, %v3399
        %s3408 = scalar_lea.vmem %s5, 16
        %v3409 = vld [vmem:[%s3408] sm:$0xf]
        %v3411 = vsel %vm2010, %v3406, 0
        %v3414 = vsel %vm2010, %v3407, 0
        %v3417 = vsel %vm2147, %v3409, 0
        %3419 = vmatprep.subr.bf16.mxu0 0
        %3420 = vmatpush1.bf16.msra.mxu0 %v3417
        %3421 = vmatprep.subr.bf16.mxu0 0
        %3422 = vmatpush1.bf16.msra.mxu0 0
        %3423 = vmatprep.subr.bf16.mxu0 0
        %3424 = vmatpush1.bf16.msra.mxu0 0
        %3425 = vmatprep.subr.bf16.mxu0 0
        %3426 = vmatpush1.bf16.msra.mxu0 0
        %3427 = vmatprep.subr.bf16.mxu0 0
        %3428 = vmatpush1.bf16.msra.mxu0 0
        %3429 = vmatprep.subr.bf16.mxu0 0
        %3430 = vmatpush1.bf16.msra.mxu0 0
        %3431 = vmatprep.subr.bf16.mxu0 0
        %3432 = vmatpush1.bf16.msra.mxu0 0
        %3433 = vmatprep.subr.bf16.mxu0 0
        %3434 = vmatpush1.bf16.msra.mxu0 0
        %3435 = vmatprep.subr.bf16.mxu0 0
        %3436 = vmatpush1.bf16.msra.mxu0 0
        %3437 = vmatprep.subr.bf16.mxu0 0
        %3438 = vmatpush1.bf16.msra.mxu0 0
        %3439 = vmatprep.subr.bf16.mxu0 0
        %3440 = vmatpush1.bf16.msra.mxu0 0
        %3441 = vmatprep.subr.bf16.mxu0 0
        %3442 = vmatpush1.bf16.msra.mxu0 0
        %3443 = vmatprep.subr.bf16.mxu0 0
        %3444 = vmatpush1.bf16.msra.mxu0 0
        %3445 = vmatprep.subr.bf16.mxu0 0
        %3446 = vmatpush1.bf16.msra.mxu0 0
        %3447 = vmatprep.subr.bf16.mxu0 0
        %3448 = vmatpush1.bf16.msra.mxu0 0
        %3449 = vmatprep.subr.bf16.mxu0 0
        %3450 = vmatpush1.bf16.msra.mxu0 0
        %3451 = vmatprep.mubr.bf16.mxu0 0
        %3452 = vmatmul.mubr.bf16.gmra.mrb[0].mxu0 %v3411
        %v3453 = vpop.f32.mrb[0].mxu0
        %v3454 = vadd.f32 0.0, %v3453
        %v3455 = vpop.f32.mrb[0].mxu0
        %v3456 = vpop.f32.mrb[0].mxu0
        %v3457 = vadd.f32 0.0, %v3456
        %v3458 = vpop.f32.mrb[0].mxu0
        %3459 = vmatprep.mubr.bf16.mxu0 0
        %3460 = vmatmul.mubr.bf16.gmra.mrb[0].mxu0 %v3414
        %v3461 = vpop.f32.mrb[0].mxu0
        %v3462 = vadd.f32 0.0, %v3461
        %v3463 = vpop.f32.mrb[0].mxu0
        %v3464 = vpop.f32.mrb[0].mxu0
        %v3465 = vadd.f32 0.0, %v3464
        %v3466 = vpop.f32.mrb[0].mxu0
        %3467 = vdwg.mxu0
        %v3468 = vadd.f32 %v3382, %v3454
        %v3469 = vadd.f32 %v3383, %v3457
        %v3470 = vadd.f32 %v3384, %v3462
        %v3471 = vadd.f32 %v3385, %v3465
        %v3472 = vrot.slane %v3085, 2
        %v3473 = vrot.slane %v3086, 2
        %v3474 = vsel %vm767, %v3472, %v3473
        %v3475 = vrot.slane %v3087, 2
        %v3476 = vsel %vm767, %v3473, %v3475
        %v3477 = vrot.slane %v3091, 2
        %v3478 = vrot.slane %v3092, 2
        %v3479 = vsel %vm767, %v3477, %v3478
        %v3480 = vrot.slane %v3093, 2
        %v3481 = vsel %vm767, %v3478, %v3480
        %v3486 = vpack.c.bf16 %v3476, %v3474
        %v3487 = vpack.c.bf16 %v3481, %v3479
        %s3488 = scalar_lea.vmem %s5, 20
        %v3489 = vld [vmem:[%s3488] sm:$0xf]
        %v3491 = vsel %vm2010, %v3486, 0
        %v3494 = vsel %vm2010, %v3487, 0
        %v3497 = vsel %vm2147, %v3489, 0
        %3499 = vmatprep.subr.bf16.mxu0 0
        %3500 = vmatpush1.bf16.msra.mxu0 %v3497
        %3501 = vmatprep.subr.bf16.mxu0 0
        %3502 = vmatpush1.bf16.msra.mxu0 0
        %3503 = vmatprep.subr.bf16.mxu0 0
        %3504 = vmatpush1.bf16.msra.mxu0 0
        %3505 = vmatprep.subr.bf16.mxu0 0
        %3506 = vmatpush1.bf16.msra.mxu0 0
        %3507 = vmatprep.subr.bf16.mxu0 0
        %3508 = vmatpush1.bf16.msra.mxu0 0
        %3509 = vmatprep.subr.bf16.mxu0 0
        %3510 = vmatpush1.bf16.msra.mxu0 0
        %3511 = vmatprep.subr.bf16.mxu0 0
        %3512 = vmatpush1.bf16.msra.mxu0 0
        %3513 = vmatprep.subr.bf16.mxu0 0
        %3514 = vmatpush1.bf16.msra.mxu0 0
        %3515 = vmatprep.subr.bf16.mxu0 0
        %3516 = vmatpush1.bf16.msra.mxu0 0
        %3517 = vmatprep.subr.bf16.mxu0 0
        %3518 = vmatpush1.bf16.msra.mxu0 0
        %3519 = vmatprep.subr.bf16.mxu0 0
        %3520 = vmatpush1.bf16.msra.mxu0 0
        %3521 = vmatprep.subr.bf16.mxu0 0
        %3522 = vmatpush1.bf16.msra.mxu0 0
        %3523 = vmatprep.subr.bf16.mxu0 0
        %3524 = vmatpush1.bf16.msra.mxu0 0
        %3525 = vmatprep.subr.bf16.mxu0 0
        %3526 = vmatpush1.bf16.msra.mxu0 0
        %3527 = vmatprep.subr.bf16.mxu0 0
        %3528 = vmatpush1.bf16.msra.mxu0 0
        %3529 = vmatprep.subr.bf16.mxu0 0
        %3530 = vmatpush1.bf16.msra.mxu0 0
        %3531 = vmatprep.mubr.bf16.mxu0 0
        %3532 = vmatmul.mubr.bf16.gmra.mrb[0].mxu0 %v3491
        %v3533 = vpop.f32.mrb[0].mxu0
        %v3534 = vadd.f32 0.0, %v3533
        %v3535 = vpop.f32.mrb[0].mxu0
        %v3536 = vpop.f32.mrb[0].mxu0
        %v3537 = vadd.f32 0.0, %v3536
        %v3538 = vpop.f32.mrb[0].mxu0
        %3539 = vmatprep.mubr.bf16.mxu0 0
        %3540 = vmatmul.mubr.bf16.gmra.mrb[0].mxu0 %v3494
        %v3541 = vpop.f32.mrb[0].mxu0
        %v3542 = vadd.f32 0.0, %v3541
        %v3543 = vpop.f32.mrb[0].mxu0
        %v3544 = vpop.f32.mrb[0].mxu0
        %v3545 = vadd.f32 0.0, %v3544
        %v3546 = vpop.f32.mrb[0].mxu0
        %3547 = vdwg.mxu0
        %v3548 = vadd.f32 %v3468, %v3534
        %v3549 = vadd.f32 %v3469, %v3537
        %v3550 = vadd.f32 %v3470, %v3542
        %v3551 = vadd.f32 %v3471, %v3545
        %v3552 = vpack.c.bf16 %v3095, %v3094
        %s3553 = scalar_lea.vmem %s5, 24
        %v3554 = vld [vmem:[%s3553] sm:$0xf]
        %v3556 = vsel %vm2010, %v3552, 0
        %v3559 = vsel %vm2147, %v3554, 0
        %3561 = vmatprep.subr.bf16.mxu0 0
        %3562 = vmatpush1.bf16.msra.mxu0 %v3559
        %3563 = vmatprep.subr.bf16.mxu0 0
        %3564 = vmatpush1.bf16.msra.mxu0 0
        %3565 = vmatprep.subr.bf16.mxu0 0
        %3566 = vmatpush1.bf16.msra.mxu0 0
        %3567 = vmatprep.subr.bf16.mxu0 0
        %3568 = vmatpush1.bf16.msra.mxu0 0
        %3569 = vmatprep.subr.bf16.mxu0 0
        %3570 = vmatpush1.bf16.msra.mxu0 0
        %3571 = vmatprep.subr.bf16.mxu0 0
        %3572 = vmatpush1.bf16.msra.mxu0 0
        %3573 = vmatprep.subr.bf16.mxu0 0
        %3574 = vmatpush1.bf16.msra.mxu0 0
        %3575 = vmatprep.subr.bf16.mxu0 0
        %3576 = vmatpush1.bf16.msra.mxu0 0
        %3577 = vmatprep.subr.bf16.mxu0 0
        %3578 = vmatpush1.bf16.msra.mxu0 0
        %3579 = vmatprep.subr.bf16.mxu0 0
        %3580 = vmatpush1.bf16.msra.mxu0 0
        %3581 = vmatprep.subr.bf16.mxu0 0
        %3582 = vmatpush1.bf16.msra.mxu0 0
        %3583 = vmatprep.subr.bf16.mxu0 0
        %3584 = vmatpush1.bf16.msra.mxu0 0
        %3585 = vmatprep.subr.bf16.mxu0 0
        %3586 = vmatpush1.bf16.msra.mxu0 0
        %3587 = vmatprep.subr.bf16.mxu0 0
        %3588 = vmatpush1.bf16.msra.mxu0 0
        %3589 = vmatprep.subr.bf16.mxu0 0
        %3590 = vmatpush1.bf16.msra.mxu0 0
        %3591 = vmatprep.subr.bf16.mxu0 0
        %3592 = vmatpush1.bf16.msra.mxu0 0
        %3593 = vmatprep.mubr.bf16.mxu0 0
        %3594 = vmatmul.mubr.bf16.gmra.mrb[0].mxu0 %v3186
        %v3595 = vpop.f32.mrb[0].mxu0
        %v3596 = vadd.f32 0.0, %v3595
        %v3597 = vpop.f32.mrb[0].mxu0
        %v3598 = vpop.f32.mrb[0].mxu0
        %v3599 = vadd.f32 0.0, %v3598
        %v3600 = vpop.f32.mrb[0].mxu0
        %3601 = vmatprep.mubr.bf16.mxu0 0
        %3602 = vmatmul.mubr.bf16.gmra.mrb[0].mxu0 %v3556
        %v3603 = vpop.f32.mrb[0].mxu0
        %v3604 = vadd.f32 0.0, %v3603
        %v3605 = vpop.f32.mrb[0].mxu0
        %v3606 = vpop.f32.mrb[0].mxu0
        %v3607 = vadd.f32 0.0, %v3606
        %v3608 = vpop.f32.mrb[0].mxu0
        %3609 = vdwg.mxu0
        %v3610 = vadd.f32 %v3548, %v3596
        %v3611 = vadd.f32 %v3549, %v3599
        %v3612 = vadd.f32 %v3550, %v3604
        %v3613 = vadd.f32 %v3551, %v3607
        %v3617 = vrot.slane %v3094, 1
        %v3618 = vrot.slane %v3095, 1
        %v3619 = vsel %vm444, %v3617, %v3618
        %v3620 = vrot.slane %v3096, 1
        %v3621 = vsel %vm444, %v3618, %v3620
        %v3624 = vpack.c.bf16 %v3621, %v3619
        %s3625 = scalar_lea.vmem %s5, 28
        %v3626 = vld [vmem:[%s3625] sm:$0xf]
        %v3628 = vsel %vm2010, %v3624, 0
        %v3631 = vsel %vm2147, %v3626, 0
        %3633 = vmatprep.subr.bf16.mxu0 0
        %3634 = vmatpush1.bf16.msra.mxu0 %v3631
        %3635 = vmatprep.subr.bf16.mxu0 0
        %3636 = vmatpush1.bf16.msra.mxu0 0
        %3637 = vmatprep.subr.bf16.mxu0 0
        %3638 = vmatpush1.bf16.msra.mxu0 0
        %3639 = vmatprep.subr.bf16.mxu0 0
        %3640 = vmatpush1.bf16.msra.mxu0 0
        %3641 = vmatprep.subr.bf16.mxu0 0
        %3642 = vmatpush1.bf16.msra.mxu0 0
        %3643 = vmatprep.subr.bf16.mxu0 0
        %3644 = vmatpush1.bf16.msra.mxu0 0
        %3645 = vmatprep.subr.bf16.mxu0 0
        %3646 = vmatpush1.bf16.msra.mxu0 0
        %3647 = vmatprep.subr.bf16.mxu0 0
        %3648 = vmatpush1.bf16.msra.mxu0 0
        %3649 = vmatprep.subr.bf16.mxu0 0
        %3650 = vmatpush1.bf16.msra.mxu0 0
        %3651 = vmatprep.subr.bf16.mxu0 0
        %3652 = vmatpush1.bf16.msra.mxu0 0
        %3653 = vmatprep.subr.bf16.mxu0 0
        %3654 = vmatpush1.bf16.msra.mxu0 0
        %3655 = vmatprep.subr.bf16.mxu0 0
        %3656 = vmatpush1.bf16.msra.mxu0 0
        %3657 = vmatprep.subr.bf16.mxu0 0
        %3658 = vmatpush1.bf16.msra.mxu0 0
        %3659 = vmatprep.subr.bf16.mxu0 0
        %3660 = vmatpush1.bf16.msra.mxu0 0
        %3661 = vmatprep.subr.bf16.mxu0 0
        %3662 = vmatpush1.bf16.msra.mxu0 0
        %3663 = vmatprep.subr.bf16.mxu0 0
        %3664 = vmatpush1.bf16.msra.mxu0 0
        %3665 = vmatprep.mubr.bf16.mxu0 0
        %3666 = vmatmul.mubr.bf16.gmra.mrb[0].mxu0 %v3128
        %v3667 = vpop.f32.mrb[0].mxu0
        %v3668 = vadd.f32 0.0, %v3667
        %v3669 = vpop.f32.mrb[0].mxu0
        %v3670 = vpop.f32.mrb[0].mxu0
        %v3671 = vadd.f32 0.0, %v3670
        %v3672 = vpop.f32.mrb[0].mxu0
        %3673 = vmatprep.mubr.bf16.mxu0 0
        %3674 = vmatmul.mubr.bf16.gmra.mrb[0].mxu0 %v3628
        %v3675 = vpop.f32.mrb[0].mxu0
        %v3676 = vadd.f32 0.0, %v3675
        %v3677 = vpop.f32.mrb[0].mxu0
        %v3678 = vpop.f32.mrb[0].mxu0
        %v3679 = vadd.f32 0.0, %v3678
        %v3680 = vpop.f32.mrb[0].mxu0
        %3681 = vdwg.mxu0
        %v3682 = vadd.f32 %v3610, %v3668
        %v3683 = vadd.f32 %v3611, %v3671
        %v3684 = vadd.f32 %v3612, %v3676
        %v3685 = vadd.f32 %v3613, %v3679
        %v3686 = vrot.slane %v3094, 2
        %v3687 = vrot.slane %v3095, 2
        %v3688 = vsel %vm767, %v3686, %v3687
        %v3689 = vrot.slane %v3096, 2
        %v3690 = vsel %vm767, %v3687, %v3689
        %v3693 = vpack.c.bf16 %v3690, %v3688
        %s3694 = scalar_lea.vmem %s5, 32
        %v3695 = vld [vmem:[%s3694] sm:$0xf]
        %v3697 = vsel %vm2010, %v3693, 0
        %v3700 = vsel %vm2147, %v3695, 0
        %3702 = vmatprep.subr.bf16.mxu0 0
        %3703 = vmatpush1.bf16.msra.mxu0 %v3700
        %3704 = vmatprep.subr.bf16.mxu0 0
        %3705 = vmatpush1.bf16.msra.mxu0 0
        %3706 = vmatprep.subr.bf16.mxu0 0
        %3707 = vmatpush1.bf16.msra.mxu0 0
        %3708 = vmatprep.subr.bf16.mxu0 0
        %3709 = vmatpush1.bf16.msra.mxu0 0
        %3710 = vmatprep.subr.bf16.mxu0 0
        %3711 = vmatpush1.bf16.msra.mxu0 0
        %3712 = vmatprep.subr.bf16.mxu0 0
        %3713 = vmatpush1.bf16.msra.mxu0 0
        %3714 = vmatprep.subr.bf16.mxu0 0
        %3715 = vmatpush1.bf16.msra.mxu0 0
        %3716 = vmatprep.subr.bf16.mxu0 0
        %3717 = vmatpush1.bf16.msra.mxu0 0
        %3718 = vmatprep.subr.bf16.mxu0 0
        %3719 = vmatpush1.bf16.msra.mxu0 0
        %3720 = vmatprep.subr.bf16.mxu0 0
        %3721 = vmatpush1.bf16.msra.mxu0 0
        %3722 = vmatprep.subr.bf16.mxu0 0
        %3723 = vmatpush1.bf16.msra.mxu0 0
        %3724 = vmatprep.subr.bf16.mxu0 0
        %3725 = vmatpush1.bf16.msra.mxu0 0
        %3726 = vmatprep.subr.bf16.mxu0 0
        %3727 = vmatpush1.bf16.msra.mxu0 0
        %3728 = vmatprep.subr.bf16.mxu0 0
        %3729 = vmatpush1.bf16.msra.mxu0 0
        %3730 = vmatprep.subr.bf16.mxu0 0
        %3731 = vmatpush1.bf16.msra.mxu0 0
        %3732 = vmatprep.subr.bf16.mxu0 0
        %3733 = vmatpush1.bf16.msra.mxu0 0
        %3734 = vmatprep.mubr.bf16.mxu0 0
        %3735 = vmatmul.mubr.bf16.gmra.mrb[0].mxu0 %v3262
        %v3736 = vpop.f32.mrb[0].mxu0
        %v3737 = vadd.f32 0.0, %v3736
        %v3738 = vpop.f32.mrb[0].mxu0
        %v3739 = vpop.f32.mrb[0].mxu0
        %v3740 = vadd.f32 0.0, %v3739
        %v3741 = vpop.f32.mrb[0].mxu0
        %3742 = vmatprep.mubr.bf16.mxu0 0
        %3743 = vmatmul.mubr.bf16.gmra.mrb[0].mxu0 %v3697
        %v3744 = vpop.f32.mrb[0].mxu0
        %v3745 = vadd.f32 0.0, %v3744
        %v3746 = vpop.f32.mrb[0].mxu0
        %v3747 = vpop.f32.mrb[0].mxu0
        %v3748 = vadd.f32 0.0, %v3747
        %v3749 = vpop.f32.mrb[0].mxu0
        %3750 = vdwg.mxu0
        %v3751 = vadd.f32 %v3682, %v3737
        %v3752 = vadd.f32 %v3683, %v3740
        %v3753 = vadd.f32 %v3684, %v3745
        %v3754 = vadd.f32 %v3685, %v3748
        %v3755 = vld [vmem:[%s6] sm:$0x1]
        %v3757 = vlaneseq
        %v3758 = vshrl.u32 %v3757, 7
        %v3759 = vsub.s32 0, %v3758
        %v3760 = vrot.slane %v3755, %v3759
        %v3762 = vadd.f32 %v3751, %v3760
        %v3763 = vadd.f32 %v3752, %v3760
        %v3764 = vadd.f32 %v3753, %v3760
        %v3765 = vadd.f32 %v3754, %v3760
        %v3766 = vmax.f32 %v3762, 0.0
        %v3767 = vmax.f32 %v3763, 0.0
        %v3768 = vmax.f32 %v3764, 0.0
        %v3769 = vmax.f32 %v3765, 0.0
        %vm3770 = vcmask 31744
        %3771 = vst.msk [vmem:[#allocation4] sm:$0xff] %vm3770, 0.0
        %3772 = vst.msk [vmem:[#allocation4 + $0x8] sm:$0xff] %vm3770, 0.0
        %vm3773 = vcmask 25600
        %3774 = vst.msk [vmem:[#allocation4 + $0x10] sm:$0x3] %vm3773, 0.0
        %s3775 = scalar_lea.vmem [#allocation4], 72
        %3776 = vst.msk [vmem:[%s3775] sm:$0xff] %vm3770, 0.0
        %3777 = vst.msk [vmem:[%s3775 + $0x8] sm:$0xff] %vm3770, 0.0
        %3778 = vst.msk [vmem:[%s3775 + $0x10] sm:$0x3] %vm3773, 0.0
        %vm3779 = vcmask 24576
        %3780 = vst.msk [vmem:[#allocation4] sm:$0x1] %vm3779, 0.0
        %3781 = vst.msk [vmem:[#allocation4 + $0x18] sm:$0x1] %vm3779, 0.0
        %3782 = vst.msk [vmem:[#allocation4 + $0x30] sm:$0x1] %vm3779, 0.0
        %3783 = vst.msk [vmem:[#allocation4 + $0x48] sm:$0x1] %vm3779, 0.0
        %3784 = vst.msk [vmem:[#allocation4 + $0x11] sm:$0x1] %vm3779, 0.0
        %3785 = vst.msk [vmem:[#allocation4 + $0x29] sm:$0x1] %vm3779, 0.0
        %3786 = vst.msk [vmem:[#allocation4 + $0x41] sm:$0x1] %vm3779, 0.0
        %3787 = vst.msk [vmem:[#allocation4 + $0x59] sm:$0x1] %vm3779, 0.0
        %s3788 = scalar_lea.vmem [#allocation4], 24
        %3789 = vst.msk [vmem:[%s3788 + $0x1] sm:$0xff] %vm3770, %v3766
        %3790 = vst.msk [vmem:[%s3788 + $0x9] sm:$0xff] %vm3770, %v3767
        %3791 = vst.msk [vmem:[%s3788 + $0x19] sm:$0xff] %vm3770, %v3768
        %3792 = vst.msk [vmem:[%s3788 + $0x21] sm:$0xff] %vm3770, %v3769
        %v3793 = vld [vmem:[#allocation4] sm:$0xff]
        %v3794 = vld [vmem:[#allocation4 + $0x8] sm:$0xff]
        %v3795 = vld [vmem:[#allocation4 + $0x10] sm:$0x3]
        %v3796 = vld [vmem:[#allocation4 + $0x18] sm:$0xff]
        %v3797 = vld [vmem:[#allocation4 + $0x20] sm:$0xff]
        %v3798 = vld [vmem:[#allocation4 + $0x28] sm:$0x3]
        %v3799 = vld [vmem:[#allocation4 + $0x30] sm:$0xff]
        %v3800 = vld [vmem:[#allocation4 + $0x38] sm:$0xff]
        %v3801 = vld [vmem:[#allocation4 + $0x40] sm:$0x3]
        %v3802 = vpack.c.bf16 %v3794, %v3793
        %v3803 = vld [vmem:[%s7] sm:$0x3]
        %v3804 = vpack.c.bf16 %v3795, %v3795
        %s3805 = scalar_lea.vmem %s7, 2
        %v3806 = vld [vmem:[%s3805] sm:$0x3]
        %vm3807 = vsmask.f32 7424
        %v3809 = vshrl.u32 %v3802, 16
        %v3811 = vshll.u32 %v3802, 16
        %v3813 = vrot.slane %v3811, 1
        %v3814 = vor.u32 %v3809, %v3813
        %v3816 = vshll.u32 %v3804, 16
        %v3818 = vrot.slane %v3816, 1
        %v3819 = vsel %vm3807, %v3814, %v3818
        %v3821 = vsel %vm3770, %v3819, 0
        %vm3823 = vcmask 1041408
        %v3825 = vsel %vm3823, %v3806, 0
        %3827 = vmatprep.subr.bf16.mxu0 0
        %3828 = vmatpush1.bf16.msra.mxu0 %v3825
        %3829 = vmatprep.subr.bf16.mxu0 0
        %3830 = vmatpush1.bf16.msra.mxu0 0
        %3831 = vmatprep.subr.bf16.mxu0 0
        %3832 = vmatpush1.bf16.msra.mxu0 0
        %3833 = vmatprep.subr.bf16.mxu0 0
        %3834 = vmatpush1.bf16.msra.mxu0 0
        %3835 = vmatprep.subr.bf16.mxu0 0
        %3836 = vmatpush1.bf16.msra.mxu0 0
        %3837 = vmatprep.subr.bf16.mxu0 0
        %3838 = vmatpush1.bf16.msra.mxu0 0
        %3839 = vmatprep.subr.bf16.mxu0 0
        %3840 = vmatpush1.bf16.msra.mxu0 0
        %3841 = vmatprep.subr.bf16.mxu0 0
        %3842 = vmatpush1.bf16.msra.mxu0 0
        %3843 = vmatprep.subr.bf16.mxu0 0
        %3844 = vmatpush1.bf16.msra.mxu0 0
        %3845 = vmatprep.subr.bf16.mxu0 0
        %3846 = vmatpush1.bf16.msra.mxu0 0
        %3847 = vmatprep.subr.bf16.mxu0 0
        %3848 = vmatpush1.bf16.msra.mxu0 0
        %3849 = vmatprep.subr.bf16.mxu0 0
        %3850 = vmatpush1.bf16.msra.mxu0 0
        %3851 = vmatprep.subr.bf16.mxu0 0
        %3852 = vmatpush1.bf16.msra.mxu0 0
        %3853 = vmatprep.subr.bf16.mxu0 0
        %3854 = vmatpush1.bf16.msra.mxu0 0
        %3855 = vmatprep.subr.bf16.mxu0 0
        %3856 = vmatpush1.bf16.msra.mxu0 0
        %3857 = vmatprep.subr.bf16.mxu0 0
        %3858 = vmatpush1.bf16.msra.mxu0 0
        %3859 = vmatprep.mubr.bf16.mxu0 0
        %3860 = vmatmul.mubr.bf16.gmra.mrb[0].mxu0 %v3821
        %v3861 = vpop.f32.mrb[0].mxu0
        %v3862 = vadd.f32 0.0, %v3861
        %v3863 = vpop.f32.mrb[0].mxu0
        %v3864 = vpop.f32.mrb[0].mxu0
        %v3865 = vadd.f32 0.0, %v3864
        %v3866 = vpop.f32.mrb[0].mxu0
        %3867 = vdwg.mxu0
        %v3868 = vsel %vm3770, %v3802, 0
        %v3871 = vsel %vm3823, %v3803, 0
        %3873 = vmatprep.subr.bf16.mxu0 0
        %3874 = vmatpush1.bf16.msra.mxu0 %v3871
        %3875 = vmatprep.subr.bf16.mxu0 0
        %3876 = vmatpush1.bf16.msra.mxu0 0
        %3877 = vmatprep.subr.bf16.mxu0 0
        %3878 = vmatpush1.bf16.msra.mxu0 0
        %3879 = vmatprep.subr.bf16.mxu0 0
        %3880 = vmatpush1.bf16.msra.mxu0 0
        %3881 = vmatprep.subr.bf16.mxu0 0
        %3882 = vmatpush1.bf16.msra.mxu0 0
        %3883 = vmatprep.subr.bf16.mxu0 0
        %3884 = vmatpush1.bf16.msra.mxu0 0
        %3885 = vmatprep.subr.bf16.mxu0 0
        %3886 = vmatpush1.bf16.msra.mxu0 0
        %3887 = vmatprep.subr.bf16.mxu0 0
        %3888 = vmatpush1.bf16.msra.mxu0 0
        %3889 = vmatprep.subr.bf16.mxu0 0
        %3890 = vmatpush1.bf16.msra.mxu0 0
        %3891 = vmatprep.subr.bf16.mxu0 0
        %3892 = vmatpush1.bf16.msra.mxu0 0
        %3893 = vmatprep.subr.bf16.mxu0 0
        %3894 = vmatpush1.bf16.msra.mxu0 0
        %3895 = vmatprep.subr.bf16.mxu0 0
        %3896 = vmatpush1.bf16.msra.mxu0 0
        %3897 = vmatprep.subr.bf16.mxu0 0
        %3898 = vmatpush1.bf16.msra.mxu0 0
        %3899 = vmatprep.subr.bf16.mxu0 0
        %3900 = vmatpush1.bf16.msra.mxu0 0
        %3901 = vmatprep.subr.bf16.mxu0 0
        %3902 = vmatpush1.bf16.msra.mxu0 0
        %3903 = vmatprep.subr.bf16.mxu0 0
        %3904 = vmatpush1.bf16.msra.mxu0 0
        %3905 = vmatprep.mubr.bf16.mxu0 0
        %3906 = vmatmul.mubr.bf16.gmra.mrb[0].mxu0 %v3868
        %v3907 = vpop.f32.mrb[0].mxu0
        %v3908 = vadd.f32 %v3862, %v3907
        %v3909 = vpop.f32.mrb[0].mxu0
        %v3910 = vpop.f32.mrb[0].mxu0
        %v3911 = vadd.f32 %v3865, %v3910
        %v3912 = vpop.f32.mrb[0].mxu0
        %3913 = vdwg.mxu0
        %s3914 = scalar_lea.vmem %s7, 4
        %v3915 = vld [vmem:[%s3914] sm:$0x3]
        %vm3918 = vcmask 1046528
        %v3919 = vrot.slane %v3802, 1
        %v3920 = vrot.slane %v3804, 1
        %v3921 = vsel %vm3918, %v3919, %v3920
        %v3923 = vsel %vm3770, %v3921, 0
        %v3926 = vsel %vm3823, %v3915, 0
        %3928 = vmatprep.subr.bf16.mxu0 0
        %3929 = vmatpush1.bf16.msra.mxu0 %v3926
        %3930 = vmatprep.subr.bf16.mxu0 0
        %3931 = vmatpush1.bf16.msra.mxu0 0
        %3932 = vmatprep.subr.bf16.mxu0 0
        %3933 = vmatpush1.bf16.msra.mxu0 0
        %3934 = vmatprep.subr.bf16.mxu0 0
        %3935 = vmatpush1.bf16.msra.mxu0 0
        %3936 = vmatprep.subr.bf16.mxu0 0
        %3937 = vmatpush1.bf16.msra.mxu0 0
        %3938 = vmatprep.subr.bf16.mxu0 0
        %3939 = vmatpush1.bf16.msra.mxu0 0
        %3940 = vmatprep.subr.bf16.mxu0 0
        %3941 = vmatpush1.bf16.msra.mxu0 0
        %3942 = vmatprep.subr.bf16.mxu0 0
        %3943 = vmatpush1.bf16.msra.mxu0 0
        %3944 = vmatprep.subr.bf16.mxu0 0
        %3945 = vmatpush1.bf16.msra.mxu0 0
        %3946 = vmatprep.subr.bf16.mxu0 0
        %3947 = vmatpush1.bf16.msra.mxu0 0
        %3948 = vmatprep.subr.bf16.mxu0 0
        %3949 = vmatpush1.bf16.msra.mxu0 0
        %3950 = vmatprep.subr.bf16.mxu0 0
        %3951 = vmatpush1.bf16.msra.mxu0 0
        %3952 = vmatprep.subr.bf16.mxu0 0
        %3953 = vmatpush1.bf16.msra.mxu0 0
        %3954 = vmatprep.subr.bf16.mxu0 0
        %3955 = vmatpush1.bf16.msra.mxu0 0
        %3956 = vmatprep.subr.bf16.mxu0 0
        %3957 = vmatpush1.bf16.msra.mxu0 0
        %3958 = vmatprep.subr.bf16.mxu0 0
        %3959 = vmatpush1.bf16.msra.mxu0 0
        %3960 = vmatprep.mubr.bf16.mxu0 0
        %3961 = vmatmul.mubr.bf16.gmra.mrb[0].mxu0 %v3923
        %v3962 = vpop.f32.mrb[0].mxu0
        %v3963 = vadd.f32 0.0, %v3962
        %v3964 = vpop.f32.mrb[0].mxu0
        %v3965 = vpop.f32.mrb[0].mxu0
        %v3966 = vadd.f32 0.0, %v3965
        %v3967 = vpop.f32.mrb[0].mxu0
        %3968 = vdwg.mxu0
        %v3969 = vadd.f32 %v3908, %v3963
        %v3970 = vadd.f32 %v3911, %v3966
        %v3971 = vpack.c.bf16 %v3797, %v3796
        %s3972 = scalar_lea.vmem %s7, 6
        %v3973 = vld [vmem:[%s3972] sm:$0x3]
        %v3975 = vsel %vm3770, %v3971, 0
        %v3978 = vsel %vm3823, %v3973, 0
        %3980 = vmatprep.subr.bf16.mxu0 0
        %3981 = vmatpush1.bf16.msra.mxu0 %v3978
        %3982 = vmatprep.subr.bf16.mxu0 0
        %3983 = vmatpush1.bf16.msra.mxu0 0
        %3984 = vmatprep.subr.bf16.mxu0 0
        %3985 = vmatpush1.bf16.msra.mxu0 0
        %3986 = vmatprep.subr.bf16.mxu0 0
        %3987 = vmatpush1.bf16.msra.mxu0 0
        %3988 = vmatprep.subr.bf16.mxu0 0
        %3989 = vmatpush1.bf16.msra.mxu0 0
        %3990 = vmatprep.subr.bf16.mxu0 0
        %3991 = vmatpush1.bf16.msra.mxu0 0
        %3992 = vmatprep.subr.bf16.mxu0 0
        %3993 = vmatpush1.bf16.msra.mxu0 0
        %3994 = vmatprep.subr.bf16.mxu0 0
        %3995 = vmatpush1.bf16.msra.mxu0 0
        %3996 = vmatprep.subr.bf16.mxu0 0
        %3997 = vmatpush1.bf16.msra.mxu0 0
        %3998 = vmatprep.subr.bf16.mxu0 0
        %3999 = vmatpush1.bf16.msra.mxu0 0
        %4000 = vmatprep.subr.bf16.mxu0 0
        %4001 = vmatpush1.bf16.msra.mxu0 0
        %4002 = vmatprep.subr.bf16.mxu0 0
        %4003 = vmatpush1.bf16.msra.mxu0 0
        %4004 = vmatprep.subr.bf16.mxu0 0
        %4005 = vmatpush1.bf16.msra.mxu0 0
        %4006 = vmatprep.subr.bf16.mxu0 0
        %4007 = vmatpush1.bf16.msra.mxu0 0
        %4008 = vmatprep.subr.bf16.mxu0 0
        %4009 = vmatpush1.bf16.msra.mxu0 0
        %4010 = vmatprep.subr.bf16.mxu0 0
        %4011 = vmatpush1.bf16.msra.mxu0 0
        %4012 = vmatprep.mubr.bf16.mxu0 0
        %4013 = vmatmul.mubr.bf16.gmra.mrb[0].mxu0 %v3975
        %v4014 = vpop.f32.mrb[0].mxu0
        %v4015 = vadd.f32 0.0, %v4014
        %v4016 = vpop.f32.mrb[0].mxu0
        %v4017 = vpop.f32.mrb[0].mxu0
        %v4018 = vadd.f32 0.0, %v4017
        %v4019 = vpop.f32.mrb[0].mxu0
        %4020 = vdwg.mxu0
        %v4021 = vadd.f32 %v3969, %v4015
        %v4022 = vadd.f32 %v3970, %v4018
        %v4023 = vpack.c.bf16 %v3798, %v3798
        %s4024 = scalar_lea.vmem %s7, 8
        %v4025 = vld [vmem:[%s4024] sm:$0x3]
        %v4026 = vshrl.u32 %v3971, 16
        %v4028 = vshll.u32 %v3971, 16
        %v4030 = vrot.slane %v4028, 1
        %v4031 = vor.u32 %v4026, %v4030
        %v4033 = vshll.u32 %v4023, 16
        %v4035 = vrot.slane %v4033, 1
        %v4036 = vsel %vm3807, %v4031, %v4035
        %v4038 = vsel %vm3770, %v4036, 0
        %v4041 = vsel %vm3823, %v4025, 0
        %4043 = vmatprep.subr.bf16.mxu0 0
        %4044 = vmatpush1.bf16.msra.mxu0 %v4041
        %4045 = vmatprep.subr.bf16.mxu0 0
        %4046 = vmatpush1.bf16.msra.mxu0 0
        %4047 = vmatprep.subr.bf16.mxu0 0
        %4048 = vmatpush1.bf16.msra.mxu0 0
        %4049 = vmatprep.subr.bf16.mxu0 0
        %4050 = vmatpush1.bf16.msra.mxu0 0
        %4051 = vmatprep.subr.bf16.mxu0 0
        %4052 = vmatpush1.bf16.msra.mxu0 0
        %4053 = vmatprep.subr.bf16.mxu0 0
        %4054 = vmatpush1.bf16.msra.mxu0 0
        %4055 = vmatprep.subr.bf16.mxu0 0
        %4056 = vmatpush1.bf16.msra.mxu0 0
        %4057 = vmatprep.subr.bf16.mxu0 0
        %4058 = vmatpush1.bf16.msra.mxu0 0
        %4059 = vmatprep.subr.bf16.mxu0 0
        %4060 = vmatpush1.bf16.msra.mxu0 0
        %4061 = vmatprep.subr.bf16.mxu0 0
        %4062 = vmatpush1.bf16.msra.mxu0 0
        %4063 = vmatprep.subr.bf16.mxu0 0
        %4064 = vmatpush1.bf16.msra.mxu0 0
        %4065 = vmatprep.subr.bf16.mxu0 0
        %4066 = vmatpush1.bf16.msra.mxu0 0
        %4067 = vmatprep.subr.bf16.mxu0 0
        %4068 = vmatpush1.bf16.msra.mxu0 0
        %4069 = vmatprep.subr.bf16.mxu0 0
        %4070 = vmatpush1.bf16.msra.mxu0 0
        %4071 = vmatprep.subr.bf16.mxu0 0
        %4072 = vmatpush1.bf16.msra.mxu0 0
        %4073 = vmatprep.subr.bf16.mxu0 0
        %4074 = vmatpush1.bf16.msra.mxu0 0
        %4075 = vmatprep.mubr.bf16.mxu0 0
        %4076 = vmatmul.mubr.bf16.gmra.mrb[0].mxu0 %v4038
        %v4077 = vpop.f32.mrb[0].mxu0
        %v4078 = vadd.f32 0.0, %v4077
        %v4079 = vpop.f32.mrb[0].mxu0
        %v4080 = vpop.f32.mrb[0].mxu0
        %v4081 = vadd.f32 0.0, %v4080
        %v4082 = vpop.f32.mrb[0].mxu0
        %4083 = vdwg.mxu0
        %v4084 = vadd.f32 %v4021, %v4078
        %v4085 = vadd.f32 %v4022, %v4081
        %s4086 = scalar_lea.vmem %s7, 10
        %v4087 = vld [vmem:[%s4086] sm:$0x3]
        %v4090 = vrot.slane %v3971, 1
        %v4091 = vrot.slane %v4023, 1
        %v4092 = vsel %vm3918, %v4090, %v4091
        %v4094 = vsel %vm3770, %v4092, 0
        %v4097 = vsel %vm3823, %v4087, 0
        %4099 = vmatprep.subr.bf16.mxu0 0
        %4100 = vmatpush1.bf16.msra.mxu0 %v4097
        %4101 = vmatprep.subr.bf16.mxu0 0
        %4102 = vmatpush1.bf16.msra.mxu0 0
        %4103 = vmatprep.subr.bf16.mxu0 0
        %4104 = vmatpush1.bf16.msra.mxu0 0
        %4105 = vmatprep.subr.bf16.mxu0 0
        %4106 = vmatpush1.bf16.msra.mxu0 0
        %4107 = vmatprep.subr.bf16.mxu0 0
        %4108 = vmatpush1.bf16.msra.mxu0 0
        %4109 = vmatprep.subr.bf16.mxu0 0
        %4110 = vmatpush1.bf16.msra.mxu0 0
        %4111 = vmatprep.subr.bf16.mxu0 0
        %4112 = vmatpush1.bf16.msra.mxu0 0
        %4113 = vmatprep.subr.bf16.mxu0 0
        %4114 = vmatpush1.bf16.msra.mxu0 0
        %4115 = vmatprep.subr.bf16.mxu0 0
        %4116 = vmatpush1.bf16.msra.mxu0 0
        %4117 = vmatprep.subr.bf16.mxu0 0
        %4118 = vmatpush1.bf16.msra.mxu0 0
        %4119 = vmatprep.subr.bf16.mxu0 0
        %4120 = vmatpush1.bf16.msra.mxu0 0
        %4121 = vmatprep.subr.bf16.mxu0 0
        %4122 = vmatpush1.bf16.msra.mxu0 0
        %4123 = vmatprep.subr.bf16.mxu0 0
        %4124 = vmatpush1.bf16.msra.mxu0 0
        %4125 = vmatprep.subr.bf16.mxu0 0
        %4126 = vmatpush1.bf16.msra.mxu0 0
        %4127 = vmatprep.subr.bf16.mxu0 0
        %4128 = vmatpush1.bf16.msra.mxu0 0
        %4129 = vmatprep.subr.bf16.mxu0 0
        %4130 = vmatpush1.bf16.msra.mxu0 0
        %4131 = vmatprep.mubr.bf16.mxu0 0
        %4132 = vmatmul.mubr.bf16.gmra.mrb[0].mxu0 %v4094
        %v4133 = vpop.f32.mrb[0].mxu0
        %v4134 = vadd.f32 0.0, %v4133
        %v4135 = vpop.f32.mrb[0].mxu0
        %v4136 = vpop.f32.mrb[0].mxu0
        %v4137 = vadd.f32 0.0, %v4136
        %v4138 = vpop.f32.mrb[0].mxu0
        %4139 = vdwg.mxu0
        %v4140 = vadd.f32 %v4084, %v4134
        %v4141 = vadd.f32 %v4085, %v4137
        %v4142 = vpack.c.bf16 %v3800, %v3799
        %s4143 = scalar_lea.vmem %s7, 12
        %v4144 = vld [vmem:[%s4143] sm:$0x3]
        %v4146 = vsel %vm3770, %v4142, 0
        %v4149 = vsel %vm3823, %v4144, 0
        %4151 = vmatprep.subr.bf16.mxu0 0
        %4152 = vmatpush1.bf16.msra.mxu0 %v4149
        %4153 = vmatprep.subr.bf16.mxu0 0
        %4154 = vmatpush1.bf16.msra.mxu0 0
        %4155 = vmatprep.subr.bf16.mxu0 0
        %4156 = vmatpush1.bf16.msra.mxu0 0
        %4157 = vmatprep.subr.bf16.mxu0 0
        %4158 = vmatpush1.bf16.msra.mxu0 0
        %4159 = vmatprep.subr.bf16.mxu0 0
        %4160 = vmatpush1.bf16.msra.mxu0 0
        %4161 = vmatprep.subr.bf16.mxu0 0
        %4162 = vmatpush1.bf16.msra.mxu0 0
        %4163 = vmatprep.subr.bf16.mxu0 0
        %4164 = vmatpush1.bf16.msra.mxu0 0
        %4165 = vmatprep.subr.bf16.mxu0 0
        %4166 = vmatpush1.bf16.msra.mxu0 0
        %4167 = vmatprep.subr.bf16.mxu0 0
        %4168 = vmatpush1.bf16.msra.mxu0 0
        %4169 = vmatprep.subr.bf16.mxu0 0
        %4170 = vmatpush1.bf16.msra.mxu0 0
        %4171 = vmatprep.subr.bf16.mxu0 0
        %4172 = vmatpush1.bf16.msra.mxu0 0
        %4173 = vmatprep.subr.bf16.mxu0 0
        %4174 = vmatpush1.bf16.msra.mxu0 0
        %4175 = vmatprep.subr.bf16.mxu0 0
        %4176 = vmatpush1.bf16.msra.mxu0 0
        %4177 = vmatprep.subr.bf16.mxu0 0
        %4178 = vmatpush1.bf16.msra.mxu0 0
        %4179 = vmatprep.subr.bf16.mxu0 0
        %4180 = vmatpush1.bf16.msra.mxu0 0
        %4181 = vmatprep.subr.bf16.mxu0 0
        %4182 = vmatpush1.bf16.msra.mxu0 0
        %4183 = vmatprep.mubr.bf16.mxu0 0
        %4184 = vmatmul.mubr.bf16.gmra.mrb[0].mxu0 %v4146
        %v4185 = vpop.f32.mrb[0].mxu0
        %v4186 = vadd.f32 0.0, %v4185
        %v4187 = vpop.f32.mrb[0].mxu0
        %v4188 = vpop.f32.mrb[0].mxu0
        %v4189 = vadd.f32 0.0, %v4188
        %v4190 = vpop.f32.mrb[0].mxu0
        %4191 = vdwg.mxu0
        %v4192 = vadd.f32 %v4140, %v4186
        %v4193 = vadd.f32 %v4141, %v4189
        %v4194 = vpack.c.bf16 %v3801, %v3801
        %s4195 = scalar_lea.vmem %s7, 14
        %v4196 = vld [vmem:[%s4195] sm:$0x3]
        %v4197 = vshrl.u32 %v4142, 16
        %v4199 = vshll.u32 %v4142, 16
        %v4201 = vrot.slane %v4199, 1
        %v4202 = vor.u32 %v4197, %v4201
        %v4204 = vshll.u32 %v4194, 16
        %v4206 = vrot.slane %v4204, 1
        %v4207 = vsel %vm3807, %v4202, %v4206
        %v4209 = vsel %vm3770, %v4207, 0
        %v4212 = vsel %vm3823, %v4196, 0
        %4214 = vmatprep.subr.bf16.mxu0 0
        %4215 = vmatpush1.bf16.msra.mxu0 %v4212
        %4216 = vmatprep.subr.bf16.mxu0 0
        %4217 = vmatpush1.bf16.msra.mxu0 0
        %4218 = vmatprep.subr.bf16.mxu0 0
        %4219 = vmatpush1.bf16.msra.mxu0 0
        %4220 = vmatprep.subr.bf16.mxu0 0
        %4221 = vmatpush1.bf16.msra.mxu0 0
        %4222 = vmatprep.subr.bf16.mxu0 0
        %4223 = vmatpush1.bf16.msra.mxu0 0
        %4224 = vmatprep.subr.bf16.mxu0 0
        %4225 = vmatpush1.bf16.msra.mxu0 0
        %4226 = vmatprep.subr.bf16.mxu0 0
        %4227 = vmatpush1.bf16.msra.mxu0 0
        %4228 = vmatprep.subr.bf16.mxu0 0
        %4229 = vmatpush1.bf16.msra.mxu0 0
        %4230 = vmatprep.subr.bf16.mxu0 0
        %4231 = vmatpush1.bf16.msra.mxu0 0
        %4232 = vmatprep.subr.bf16.mxu0 0
        %4233 = vmatpush1.bf16.msra.mxu0 0
        %4234 = vmatprep.subr.bf16.mxu0 0
        %4235 = vmatpush1.bf16.msra.mxu0 0
        %4236 = vmatprep.subr.bf16.mxu0 0
        %4237 = vmatpush1.bf16.msra.mxu0 0
        %4238 = vmatprep.subr.bf16.mxu0 0
        %4239 = vmatpush1.bf16.msra.mxu0 0
        %4240 = vmatprep.subr.bf16.mxu0 0
        %4241 = vmatpush1.bf16.msra.mxu0 0
        %4242 = vmatprep.subr.bf16.mxu0 0
        %4243 = vmatpush1.bf16.msra.mxu0 0
        %4244 = vmatprep.subr.bf16.mxu0 0
        %4245 = vmatpush1.bf16.msra.mxu0 0
        %4246 = vmatprep.mubr.bf16.mxu0 0
        %4247 = vmatmul.mubr.bf16.gmra.mrb[0].mxu0 %v4209
        %v4248 = vpop.f32.mrb[0].mxu0
        %v4249 = vadd.f32 0.0, %v4248
        %v4250 = vpop.f32.mrb[0].mxu0
        %v4251 = vpop.f32.mrb[0].mxu0
        %v4252 = vadd.f32 0.0, %v4251
        %v4253 = vpop.f32.mrb[0].mxu0
        %4254 = vdwg.mxu0
        %v4255 = vadd.f32 %v4192, %v4249
        %v4256 = vadd.f32 %v4193, %v4252
        %s4257 = scalar_lea.vmem %s7, 16
        %v4258 = vld [vmem:[%s4257] sm:$0x3]
        %v4261 = vrot.slane %v4142, 1
        %v4262 = vrot.slane %v4194, 1
        %v4263 = vsel %vm3918, %v4261, %v4262
        %v4265 = vsel %vm3770, %v4263, 0
        %v4268 = vsel %vm3823, %v4258, 0
        %4270 = vmatprep.subr.bf16.mxu0 0
        %4271 = vmatpush1.bf16.msra.mxu0 %v4268
        %4272 = vmatprep.subr.bf16.mxu0 0
        %4273 = vmatpush1.bf16.msra.mxu0 0
        %4274 = vmatprep.subr.bf16.mxu0 0
        %4275 = vmatpush1.bf16.msra.mxu0 0
        %4276 = vmatprep.subr.bf16.mxu0 0
        %4277 = vmatpush1.bf16.msra.mxu0 0
        %4278 = vmatprep.subr.bf16.mxu0 0
        %4279 = vmatpush1.bf16.msra.mxu0 0
        %4280 = vmatprep.subr.bf16.mxu0 0
        %4281 = vmatpush1.bf16.msra.mxu0 0
        %4282 = vmatprep.subr.bf16.mxu0 0
        %4283 = vmatpush1.bf16.msra.mxu0 0
        %4284 = vmatprep.subr.bf16.mxu0 0
        %4285 = vmatpush1.bf16.msra.mxu0 0
        %4286 = vmatprep.subr.bf16.mxu0 0
        %4287 = vmatpush1.bf16.msra.mxu0 0
        %4288 = vmatprep.subr.bf16.mxu0 0
        %4289 = vmatpush1.bf16.msra.mxu0 0
        %4290 = vmatprep.subr.bf16.mxu0 0
        %4291 = vmatpush1.bf16.msra.mxu0 0
        %4292 = vmatprep.subr.bf16.mxu0 0
        %4293 = vmatpush1.bf16.msra.mxu0 0
        %4294 = vmatprep.subr.bf16.mxu0 0
        %4295 = vmatpush1.bf16.msra.mxu0 0
        %4296 = vmatprep.subr.bf16.mxu0 0
        %4297 = vmatpush1.bf16.msra.mxu0 0
        %4298 = vmatprep.subr.bf16.mxu0 0
        %4299 = vmatpush1.bf16.msra.mxu0 0
        %4300 = vmatprep.subr.bf16.mxu0 0
        %4301 = vmatpush1.bf16.msra.mxu0 0
        %4302 = vmatprep.mubr.bf16.mxu0 0
        %4303 = vmatmul.mubr.bf16.gmra.mrb[0].mxu0 %v4265
        %v4304 = vpop.f32.mrb[0].mxu0
        %v4305 = vadd.f32 0.0, %v4304
        %v4306 = vpop.f32.mrb[0].mxu0
        %v4307 = vpop.f32.mrb[0].mxu0
        %v4308 = vadd.f32 0.0, %v4307
        %v4309 = vpop.f32.mrb[0].mxu0
        %4310 = vdwg.mxu0
        %v4311 = vadd.f32 %v4255, %v4305
        %v4312 = vadd.f32 %v4256, %v4308
        %v4313 = vld [vmem:[%s8] sm:$0x1]
        %v4315 = vlaneseq
        %v4316 = vshrl.u32 %v4315, 7
        %v4317 = vsub.s32 0, %v4316
        %v4318 = vrot.slane %v4313, %v4317
        %v4320 = vadd.f32 %v4311, %v4318
        %v4321 = vadd.f32 %v4312, %v4318
        %v4322 = vmax.f32 %v4320, 0.0
        %v4323 = vmax.f32 %v4321, 0.0
        %4324 = vxpose.xlu0.b32.start [1/16] %v4322, 128
        %4325 = vxpose.xlu0.b32.cont [2/16] %v4323, 128
        %4326 = vxpose.xlu0.b32.cont [3/16] 0.0, 128
        %4327 = vxpose.xlu0.b32.cont [4/16] 0.0, 128
        %4328 = vxpose.xlu0.b32.cont [5/16] 0.0, 128
        %4329 = vxpose.xlu0.b32.cont [6/16] 0.0, 128
        %4330 = vxpose.xlu0.b32.cont [7/16] 0.0, 128
        %4331 = vxpose.xlu0.b32.cont [8/16] 0.0, 128
        %4332 = vxpose.xlu0.b32.cont [9/16] 0.0, 128
        %4333 = vxpose.xlu0.b32.cont [10/16] 0.0, 128
        %4334 = vxpose.xlu0.b32.cont [11/16] 0.0, 128
        %4335 = vxpose.xlu0.b32.cont [12/16] 0.0, 128
        %4336 = vxpose.xlu0.b32.cont [13/16] 0.0, 128
        %4337 = vxpose.xlu0.b32.cont [14/16] 0.0, 128
        %4338 = vxpose.xlu0.b32.cont [15/16] 0.0, 128
        %4339 = vxpose.xlu0.b32.end [16/16] 0.0, 128
        %v4340 = vpop.trf.xlu0
        %v4341 = vpop.trf.xlu0
        %v4342 = vpop.trf.xlu0
        %v4343 = vpop.trf.xlu0
        %v4344 = vpop.trf.xlu0
        %v4345 = vpop.trf.xlu0
        %v4346 = vpop.trf.xlu0
        %v4347 = vpop.trf.xlu0
        %v4348 = vpop.trf.xlu0
        %v4349 = vpop.trf.xlu0
        %v4350 = vpop.trf.xlu0
        %v4351 = vpop.trf.xlu0
        %v4352 = vpop.trf.xlu0
        %v4353 = vpop.trf.xlu0
        %v4354 = vpop.trf.xlu0
        %v4355 = vpop.trf.xlu0
        %v4356 = vpack.c.bf16 %v4340, %v4340
        %v4357 = vld [vmem:[%s9] sm:$0xf]
        %v4358 = vld [vmem:[%s9 + $0x4] sm:$0xf]
        %v4361 = vunpack.c.l.b16 %v4357
        %v4362 = vunpack.c.l.b16 %v4358
        %v4363 = vpack.c.b16 %v4362, %v4361
        %v4366 = vsel %vm518, %v4356, 0
        %4368 = vmatprep.subr.bf16.mxu0 0
        %4369 = vmatpush1.bf16.msra.mxu0 %v4363
        %4370 = vmatprep.subr.bf16.mxu0 0
        %4371 = vmatpush1.bf16.msra.mxu0 0
        %4372 = vmatprep.subr.bf16.mxu0 0
        %4373 = vmatpush1.bf16.msra.mxu0 0
        %4374 = vmatprep.subr.bf16.mxu0 0
        %4375 = vmatpush1.bf16.msra.mxu0 0
        %4376 = vmatprep.subr.bf16.mxu0 0
        %4377 = vmatpush1.bf16.msra.mxu0 0
        %4378 = vmatprep.subr.bf16.mxu0 0
        %4379 = vmatpush1.bf16.msra.mxu0 0
        %4380 = vmatprep.subr.bf16.mxu0 0
        %4381 = vmatpush1.bf16.msra.mxu0 0
        %4382 = vmatprep.subr.bf16.mxu0 0
        %4383 = vmatpush1.bf16.msra.mxu0 0
        %4384 = vmatprep.subr.bf16.mxu0 0
        %4385 = vmatpush1.bf16.msra.mxu0 0
        %4386 = vmatprep.subr.bf16.mxu0 0
        %4387 = vmatpush1.bf16.msra.mxu0 0
        %4388 = vmatprep.subr.bf16.mxu0 0
        %4389 = vmatpush1.bf16.msra.mxu0 0
        %4390 = vmatprep.subr.bf16.mxu0 0
        %4391 = vmatpush1.bf16.msra.mxu0 0
        %4392 = vmatprep.subr.bf16.mxu0 0
        %4393 = vmatpush1.bf16.msra.mxu0 0
        %4394 = vmatprep.subr.bf16.mxu0 0
        %4395 = vmatpush1.bf16.msra.mxu0 0
        %4396 = vmatprep.subr.bf16.mxu0 0
        %4397 = vmatpush1.bf16.msra.mxu0 0
        %4398 = vmatprep.subr.bf16.mxu0 0
        %4399 = vmatpush1.bf16.msra.mxu0 0
        %4400 = vmatprep.mubr.bf16.mxu0 0
        %4401 = vmatmul.mubr.bf16.gmra.mrb[0].mxu0 %v4366
        %v4402 = vpop.f32.mrb[0].mxu0
        %v4403 = vadd.f32 0.0, %v4402
        %v4404 = vpop.f32.mrb[0].mxu0
        %v4405 = vpop.f32.mrb[0].mxu0
        %v4406 = vpop.f32.mrb[0].mxu0
        %4407 = vdwg.mxu0
        %v4409 = vcombine.high %v4403, %v4403
        %v4411 = vunpack.c.l.s4 1966171168
        %v4412 = vunpack.c.0.s8 %v4411
        %v4413 = vlaneseq
        %v4414 = vshrl.u32 %v4413, 7
        %v4415 = vsub.s32 %v4412, %v4414
        %v4416 = vrot.slane %v4403, %v4415
        %v4418 = vunpack.c.l.s4 1966171168
        %v4419 = vunpack.c.0.s8 %v4418
        %v4420 = vlaneseq
        %v4421 = vshrl.u32 %v4420, 7
        %v4422 = vsub.s32 %v4419, %v4421
        %v4423 = vrot.slane %v4409, %v4422
        %v4424 = vcombine.high %v4416, %v4416
        %v4425 = vcombine.high %v4423, %v4423
        %v4427 = vunpack.c.l.s4 1966171168
        %v4428 = vunpack.c.0.s8 %v4427
        %v4429 = vlaneseq
        %v4430 = vshrl.u32 %v4429, 7
        %v4431 = vsub.s32 %v4428, %v4430
        %v4432 = vrot.slane %v4416, %v4431
        %v4434 = vunpack.c.l.s4 1966171168
        %v4435 = vunpack.c.0.s8 %v4434
        %v4436 = vlaneseq
        %v4437 = vshrl.u32 %v4436, 7
        %v4438 = vsub.s32 %v4435, %v4437
        %v4439 = vrot.slane %v4423, %v4438
        %v4441 = vunpack.c.l.s4 1966171168
        %v4442 = vunpack.c.0.s8 %v4441
        %v4443 = vlaneseq
        %v4444 = vshrl.u32 %v4443, 7
        %v4445 = vsub.s32 %v4442, %v4444
        %v4446 = vrot.slane %v4424, %v4445
        %v4448 = vunpack.c.l.s4 1966171168
        %v4449 = vunpack.c.0.s8 %v4448
        %v4450 = vlaneseq
        %v4451 = vshrl.u32 %v4450, 7
        %v4452 = vsub.s32 %v4449, %v4451
        %v4453 = vrot.slane %v4425, %v4452
        %v4454 = vcombine.high %v4432, %v4432
        %v4455 = vcombine.high %v4439, %v4439
        %v4456 = vcombine.high %v4446, %v4446
        %v4457 = vcombine.high %v4453, %v4453
        %4466 = vst [vmem:[%s352] sm:$0x1] %v4432
        %4467 = vst [vmem:[%s352 + $0x1] sm:$0x1] %v4446
        %4468 = vst [vmem:[%s352 + $0x2] sm:$0x1] %v4454
        %4469 = vst [vmem:[%s352 + $0x3] sm:$0x1] %v4456
        %4470 = vst [vmem:[%s352 + $0x4] sm:$0x1] %v4439
        %4471 = vst [vmem:[%s352 + $0x5] sm:$0x1] %v4453
        %4472 = vst [vmem:[%s352 + $0x6] sm:$0x1] %v4455
        %4473 = vst [vmem:[%s352 + $0x7] sm:$0x1] %v4457
        %s4474 = sand.u32 %s247, 1
        %s4475 = scalar_lea.sflag [#allocation6], %s4474
        %s4476 = sand.u32 %s247, 1
        %s4477 = smul.addr %s4476, 8
        %s4478 = scalar_lea.vmem [#allocation5], %s4477
        // Predicated region
        $region61: #{tpu_custom_call.1} parent=59 // pred_check
          %p4479 = pneg %p257
        $region62: #{tpu_custom_call.1} parent=59 // pred_check_branch
          %4481 = sbr.rel (%p4479) target = $region64
        $region63: #{tpu_custom_call.1} parent=59 // pred_region
          %s4483 = ssub.s32 128, 128
          %4484 = vsyncadd %s4475, %s4483
          %s4485 = smul.addr %s24, 8
          %s4486 = smul.addr %s4485, 16
          %s4487 = scalar_lea.hbm %s10, %s4486
          %s4488 = sshll.u32 %s4478, 4
          %s4489 = int_to_ptr.vmem [resolvable:$true] %s4488
          %4494 = dma.vmem_to_hbm [thread:$0]  %s4489, 128, %s4487, %s4475, 16, 16, 1
        $region64: #{tpu_custom_call.1} parent=59 // pred_fallthru
          _
      $region60: #{tpu_custom_call.1} parent=5 // pred_fallthru
        _
      %p4495 = scmp.le.s32.totalorder 2, %s19
      // Predicated region
      $region65: #{tpu_custom_call.1} parent=5 // pred_check
        %p4496 = pneg %p4495
      $region66: #{tpu_custom_call.1} parent=5 // pred_check_branch
        %4498 = sbr.rel (%p4496) target = $region68
      $region67: #{tpu_custom_call.1} parent=5 // pred_region
        %s4499 = ssub.s32 %s19, 2
        // Predicated region
        $region69: #{tpu_custom_call.1} parent=67 // pred_check
          %p4500 = pneg %p263
        $region70: #{tpu_custom_call.1} parent=67 // pred_check_branch
          %4502 = sbr.rel (%p4500) target = $region72
        $region71: #{tpu_custom_call.1} parent=67 // pred_region
          %s4503 = sand.u32 %s248, 1
          %s4504 = scalar_lea.sflag [#allocation6], %s4503
          %s4505 = sand.u32 %s248, 1
          %s4506 = smul.addr %s4505, 8
          %s4507 = scalar_lea.vmem [#allocation5], %s4506
          %4508 = dma.done %s4504, 128
        $region72: #{tpu_custom_call.1} parent=67 // pred_fallthru
          _
      $region68: #{tpu_custom_call.1} parent=5 // pred_fallthru
        _
    $region6: #{tpu_custom_call.1} parent=1 // loop_footer
      %s23 = sadd.s32 1, %s19
    $region7: #{tpu_custom_call.1} parent=1 // loop_footer_branch
      %18 = sbr.rel target = $region3
    $region8: #{tpu_custom_call.1} parent=1 // loop_exit
      _
    %4509 = vsyncpa [#allocation6], 1
    %s4510 = scalar_lea.sflag [#allocation6], 1
    %4511 = vsyncpa %s4510, 1

</llo_original>
